<compile_context>
chip_gen: v7x
topology: tpu7x:2x2x1
jax: 0.10.0
libtpu: 0.0.40
codegen_flags: <defaults>
</compile_context>

<pallas_src>
import math
import functools
import numpy as np
import jax
import jax.numpy as jnp
from jax import lax
from jax.experimental import pallas as pl
from jax.experimental.pallas import tpu as pltpu


# --------------------------------------------------------------------------
# host-side helpers (layout / constant construction)
# --------------------------------------------------------------------------

def _round_up(x, m):
    return (x + m - 1) // m * m


def _fp_dims(h, w):
    """Flat zero-padded ('FP') layout of an (h, w) image: (h+2)*(w+2) positions,
    with a margin of (w+3) zeros on each side so every 3x3 tap is a contiguous
    lane slice of the buffer."""
    hp, wp = h + 2, w + 2
    lfp = hp * wp
    margin = wp + 1
    lbuf = lfp + 2 * margin
    return hp, wp, lfp, margin, lbuf


def _interp_matrix_2x(n_in):
    """1-D bilinear interpolation matrix, scale_factor=2, align_corners=True."""
    n_out = 2 * n_in
    a = np.zeros((n_out, n_in), np.float32)
    for i in range(n_out):
        src = i * (n_in - 1) / (n_out - 1)
        i0 = int(math.floor(src))
        i1 = min(i0 + 1, n_in - 1)
        f = src - i0
        a[i, i0] += 1.0 - f
        a[i, i1] += f
    return a


def _select_matrix_s2(n_in):
    """1-D even-position selection matrix: stride-2 conv output == stride-1 conv
    output sampled at even positions (k=3, pad=1)."""
    n_out = n_in // 2
    s = np.zeros((n_out, n_in), np.float32)
    for i in range(n_out):
        s[i, 2 * i] = 1.0
    return s


def _resize_spec(mh, mw):
    """Separable resize given valid-domain matrices mh:(ho,hi), mw:(wo,wi).
    Returns per-output-row H-axis taps (FP row index, weight) and the W-axis
    matrix in FP coordinates (padding rows/cols are zero)."""
    ho, hi = mh.shape
    wo, wi = mw.shape
    row_taps = []
    for r in range(ho):
        taps = tuple((int(i) + 1, float(mh[r, i])) for i in range(hi) if mh[r, i] != 0.0)
        row_taps.append(taps)
    mw_fp = np.zeros((wi + 2, wo + 2), np.float32)
    mw_fp[1:wi + 1, 1:wo + 1] = mw.T
    return tuple(row_taps), mw_fp


def _fp_valid_mask(h, w):
    """(1, (h+2)*(w+2)) mask: 1 at valid pixels, 0 at the zero-padding border."""
    m = np.zeros((h + 2, w + 2), np.float32)
    m[1:h + 1, 1:w + 1] = 1.0
    return m.reshape(1, (h + 2) * (w + 2))


# --------------------------------------------------------------------------
# in-kernel helpers
# --------------------------------------------------------------------------

def _conv3x3_fp(src_ref, w_ref, sc_ref, bi_ref, hp, wp, margin):
    """3x3 conv (stride 1) as ONE im2col matmul on the flat FP layout, fused with
    the folded-BN affine + ReLU.  src_ref: (Cin, Lbuf) VMEM scratch,
    w_ref: (Cout, 9*Cin), sc/bi: (Cout, 1).  Returns (Cout, hp*wp) f32 (values at
    FP padding positions are meaningless until masked / ignored)."""
    lfp = hp * wp
    taps = []
    for kh in range(3):
        for kw in range(3):
            off = margin + (kh - 1) * wp + (kw - 1)
            taps.append(src_ref[:, off:off + lfp])            # contiguous lane slice
    patches = jnp.concatenate(taps, axis=0)                   # (9*Cin, lfp)
    y = jnp.dot(w_ref[...], patches, preferred_element_type=jnp.float32)
    return jnp.maximum(y * sc_ref[...] + bi_ref[...], 0.0)


def _resize_fp_to_ref(src, dst_ref, mw_fp, row_taps, wpi, wpo, dst_margin):
    """Separable spatial resize from an FP(hi,wi) value `src` (C, hpi*wpi) into the
    FP(ho,wo) scratch `dst_ref`.  H axis: per-output-row linear combination of
    source row slabs (host-precomputed taps).  W axis: one small matmul for all
    output rows at once."""
    c = src.shape[0]
    slabs = []
    for taps in row_taps:
        acc = None
        for ri, wgt in taps:
            piece = src[:, ri * wpi:(ri + 1) * wpi]
            if wgt != 1.0:
                piece = piece * wgt
            acc = piece if acc is None else acc + piece
        slabs.append(acc)
    stacked = jnp.concatenate(slabs, axis=0)                              # (ho*C, wpi)
    res = jnp.dot(stacked, mw_fp, preferred_element_type=jnp.float32)     # (ho*C, wpo)
    for k in range(len(row_taps)):
        r = k + 1                                                         # valid FP rows start at 1
        dst_ref[:, dst_margin + r * wpo:dst_margin + (r + 1) * wpo] = res[k * c:(k + 1) * c, :]


# --------------------------------------------------------------------------
# the fused kernel (one batch element per grid step)
# --------------------------------------------------------------------------

def _guiding_net_kernel(x_ref, e_ref, m16_ref,
                        cw1, sc1, bi1, cw2, sc2, bi2, cw3, sc3, bi3,
                        cw4, sc4, bi4, cw5, sc5, bi5, cw6, sc6, bi6,
                        mw1, mw2, mw3,
                        o_ref,
                        s_in, s_g, s_d1, s_u1, s_u2, s_f,
                        *, H, W, Cx, rz1, rz2, rz3):
    hp, wp, lfp, mg, _ = _fp_dims(H, W)
    hp2, wp2, lfp2, mg2, _ = _fp_dims(H // 2, W // 2)

    # Zero the scratch buffers: the halo / margin / padded-channel positions must be
    # exact zeros (they provide the conv zero padding).  Done every step so the
    # kernel is correct regardless of how the "parallel" batch axis is split
    # across TensorCores.
    for sref in (s_in, s_g, s_d1, s_u1, s_u2, s_f):
        sref[...] = jnp.zeros(sref.shape, jnp.float32)

    # ---- scatter x and the (pre-binarised) edge channel into FP(H,W) ----------
    xv = x_ref[0]                                   # (Cx, H*W)
    ev = e_ref[0]                                   # (1,  H*W)
    for i in range(H):
        dst = mg + (i + 1) * wp + 1
        s_in[0:Cx, dst:dst + W] = xv[:, i * W:(i + 1) * W]
        s_in[Cx:Cx + 1, dst:dst + W] = ev[:, i * W:(i + 1) * W]

    mask16 = m16_ref[...]                           # (1, lfp)

    # guide_conv : conv(in->mid) + BN + ReLU            (FP16 -> FP16)
    g = _conv3x3_fp(s_in, cw1, sc1, bi1, hp, wp, mg) * mask16
    s_g[:, mg:mg + lfp] = g

    # guide_conv_feat[0] : stride-2 conv(mid->2mid); even-pixel selection in-kernel
    y = _conv3x3_fp(s_g, cw2, sc2, bi2, hp, wp, mg)
    _resize_fp_to_ref(y, s_d1, mw1[...], rz1, wp, wp2, mg2)        # FP16 -> FP8

    # guide_conv_feat[3] (stride 2) composed with guide_deconv Upsample(2x)
    y = _conv3x3_fp(s_d1, cw3, sc3, bi3, hp2, wp2, mg2)
    _resize_fp_to_ref(y, s_u1, mw2[...], rz2, wp2, wp2, mg2)       # FP8 -> FP4 -> FP8

    # guide_deconv conv(4mid->2mid), then Upsample(2x)
    y = _conv3x3_fp(s_u1, cw4, sc4, bi4, hp2, wp2, mg2)
    _resize_fp_to_ref(y, s_u2, mw3[...], rz3, wp2, wp, mg)         # FP8 -> FP16

    # guide_deconv conv(2mid->mid) + residual add with guide_feat (fused)
    y = _conv3x3_fp(s_u2, cw5, sc5, bi5, hp, wp, mg) * mask16
    s_f[:, mg:mg + lfp] = y + s_g[:, mg:mg + lfp]

    # guide_decoder conv(mid->out); gather valid pixels into the lane-dense output
    y = _conv3x3_fp(s_f, cw6, sc6, bi6, hp, wp, mg)
    for i in range(H):
        src = (i + 1) * wp + 1
        o_ref[0, :, i * W:(i + 1) * W] = y[:, src:src + W]


# --------------------------------------------------------------------------
# parameters + host-side folding
# --------------------------------------------------------------------------

def _init_conv_bn(key, cin, cout):
    k1, k2, k3, k4 = jax.random.split(key, 4)
    return {
        "w": 0.1 * jax.random.normal(k1, (cout, cin, 3, 3), jnp.float32),   # OIHW (torch layout)
        "b": 0.1 * jax.random.normal(k2, (cout,), jnp.float32),
        "gamma": 1.0 + 0.1 * jax.random.normal(k3, (cout,), jnp.float32),
        "beta": 0.1 * jax.random.normal(k4, (cout,), jnp.float32),
    }


def init_params(key, in_ch, mid_ch, out_ch):
    ks = jax.random.split(key, 6)
    return {
        "conv1": _init_conv_bn(ks[0], in_ch, mid_ch),            # guide_conv
        "down1": _init_conv_bn(ks[1], mid_ch, 2 * mid_ch),       # guide_conv_feat[0]
        "down2": _init_conv_bn(ks[2], 2 * mid_ch, 4 * mid_ch),   # guide_conv_feat[3]
        "up1":   _init_conv_bn(ks[3], 4 * mid_ch, 2 * mid_ch),   # guide_deconv[1]
        "up2":   _init_conv_bn(ks[4], 2 * mid_ch, mid_ch),       # guide_deconv[5]
        "dec":   _init_conv_bn(ks[5], mid_ch, out_ch),           # guide_decoder
    }


def _fold_conv_bn(layer, cin_pad):
    """Fold Conv2d weight/bias + inference-mode BatchNorm into a 2-D (Cout, 9*cin_pad)
    matmul weight (tap-major, channel-minor) and a per-channel (scale, bias)."""
    w = layer["w"]                                   # (Cout, Cin, 3, 3)
    cout, cin = w.shape[0], w.shape[1]
    wt = jnp.transpose(w, (0, 2, 3, 1))              # (Cout, 3, 3, Cin)
    if cin_pad > cin:
        wt = jnp.pad(wt, ((0, 0), (0, 0), (0, 0), (0, cin_pad - cin)))
    w2d = wt.reshape(cout, 9 * cin_pad)
    scale = layer["gamma"] / jnp.sqrt(1.0 + 1e-5)
    bias = layer["beta"] + scale * layer["b"]
    return w2d, scale.reshape(cout, 1), bias.reshape(cout, 1)


# --------------------------------------------------------------------------
# public forward (wrapper around the single pallas_call)
# --------------------------------------------------------------------------

def guiding_network_forward(params, x, edge):
    """x: (N, Cx, H, W), edge: (N, 1, H, W) — NCHW (PyTorch layout).
    Returns (out (N, out_ch, 1, H, W), edge_bin (N, 1, H, W))."""
    N, Cx, H, W = x.shape
    assert H % 4 == 0 and W % 4 == 0, "two stride-2 stages require H, W divisible by 4"
    mid = params["conv1"]["w"].shape[0]
    assert mid % 8 == 0, "mid_ch must be a multiple of 8 (sublane alignment of the im2col)"
    out_ch = params["dec"]["w"].shape[0]

    # edge[edge != 0] = 1  (the modified edge is also a module output)
    edge_bin = jnp.where(edge != 0.0, jnp.float32(1.0), edge)

    c_in = Cx + 1
    c_in_pad = _round_up(c_in, 8)

    # fold conv + BN per layer
    l1 = _fold_conv_bn(params["conv1"], c_in_pad)
    l2 = _fold_conv_bn(params["down1"], mid)
    l3 = _fold_conv_bn(params["down2"], 2 * mid)
    l4 = _fold_conv_bn(params["up1"], 4 * mid)
    l5 = _fold_conv_bn(params["up2"], 2 * mid)
    l6 = _fold_conv_bn(params["dec"], mid)

    # separable resize constants (FP coordinates): O(H^2 + W^2), no Kronecker matrix
    h2, w2 = H // 2, W // 2
    h4, w4 = H // 4, W // 4
    rz1, mw1 = _resize_spec(_select_matrix_s2(H), _select_matrix_s2(W))        # stride-2 select
    rz2, mw2 = _resize_spec(_interp_matrix_2x(h4) @ _select_matrix_s2(h2),     # select + 2x up
                            _interp_matrix_2x(w4) @ _select_matrix_s2(w2))
    rz3, mw3 = _resize_spec(_interp_matrix_2x(h2), _interp_matrix_2x(w2))      # 2x up
    mask16 = _fp_valid_mask(H, W)

    lbuf16 = _fp_dims(H, W)[4]
    lbuf8 = _fp_dims(h2, w2)[4]

    kernel = functools.partial(_guiding_net_kernel,
                               H=H, W=W, Cx=Cx, rz1=rz1, rz2=rz2, rz3=rz3)

    HW = H * W
    x_flat = x.reshape(N, Cx, HW)              # flattened NCHW (free reshape, lane-dense)
    e_flat = edge_bin.reshape(N, 1, HW)

    def batch_spec(c):
        return pl.BlockSpec((1, c, HW), lambda n: (n, 0, 0))

    def const_spec(arr):
        shape = arr.shape
        return pl.BlockSpec(shape, lambda n: (0,) * len(shape))

    consts = [jnp.asarray(mask16),
              *l1, *l2, *l3, *l4, *l5, *l6,
              jnp.asarray(mw1), jnp.asarray(mw2), jnp.asarray(mw3)]

    in_specs = [batch_spec(Cx), batch_spec(1)] + [const_spec(a) for a in consts]

    out = pl.pallas_call(
        kernel,
        out_shape=jax.ShapeDtypeStruct((N, out_ch, HW), jnp.float32),
        grid_spec=pltpu.PrefetchScalarGridSpec(
            num_scalar_prefetch=0,
            grid=(N,),
            in_specs=in_specs,
            out_specs=pl.BlockSpec((1, out_ch, HW), lambda n: (n, 0, 0)),
            scratch_shapes=[
                pltpu.VMEM((c_in_pad, lbuf16), jnp.float32),   # s_in : x ‖ edge, FP(H,W)
                pltpu.VMEM((mid, lbuf16), jnp.float32),        # s_g  : guide_feat
                pltpu.VMEM((2 * mid, lbuf8), jnp.float32),     # s_d1 : down1 output
                pltpu.VMEM((4 * mid, lbuf8), jnp.float32),     # s_u1 : up1 conv input
                pltpu.VMEM((2 * mid, lbuf16), jnp.float32),    # s_u2 : up2 conv input
                pltpu.VMEM((mid, lbuf16), jnp.float32),        # s_f  : residual sum
            ],
        ),
        compiler_params=pltpu.CompilerParams(
            dimension_semantics=("parallel",),                 # batch -> megacore on v7x
        ),
    )(x_flat, e_flat, *consts)

    out = out.reshape(N, out_ch, H, W)
    return out[:, :, None, :, :], edge_bin                     # unsqueeze(2)


# --------------------------------------------------------------------------
# pure-JAX reference (for the numerical check)
# --------------------------------------------------------------------------

def _ref_conv_bn_relu(x, layer, stride=1):
    y = lax.conv_general_dilated(
        x, layer["w"], (stride, stride), ((1, 1), (1, 1)),
        dimension_numbers=("NCHW", "OIHW", "NCHW"))
    scale = layer["gamma"] / jnp.sqrt(1.0 + 1e-5)
    bias = layer["beta"] + scale * layer["b"]
    return jnp.maximum(y * scale[None, :, None, None] + bias[None, :, None, None], 0.0)


def _ref_upsample2x(x):
    n, c, h, w = x.shape
    ah = jnp.asarray(_interp_matrix_2x(h))
    aw = jnp.asarray(_interp_matrix_2x(w))
    y = jnp.einsum("ph,nchw->ncpw", ah, x)
    return jnp.einsum("qw,ncpw->ncpq", aw, y)


def _ref_forward(params, x, edge):
    edge_bin = jnp.where(edge != 0.0, jnp.float32(1.0), edge)
    h = jnp.concatenate([x, edge_bin], axis=1)
    g = _ref_conv_bn_relu(h, params["conv1"])
    f = _ref_conv_bn_relu(g, params["down1"], stride=2)
    f = _ref_conv_bn_relu(f, params["down2"], stride=2)
    f = _ref_upsample2x(f)
    f = _ref_conv_bn_relu(f, params["up1"])
    f = _ref_upsample2x(f)
    f = _ref_conv_bn_relu(f, params["up2"]) + g
    out = _ref_conv_bn_relu(f, params["dec"])
    return out[:, :, None, :, :], edge_bin


# --------------------------------------------------------------------------
# main
# --------------------------------------------------------------------------

if __name__ == "__main__":
    key = jax.random.PRNGKey(0)
    kx, ke, km, kp = jax.random.split(key, 4)

    N, Cx, H, W = 2, 3, 16, 16
    mid_ch, out_ch = 8, 4
    in_ch = Cx + 1          # image channels + edge channel (concatenated)

    x = jax.random.normal(kx, (N, Cx, H, W), jnp.float32)
    edge_vals = jax.random.normal(ke, (N, 1, H, W), jnp.float32)
    edge = jnp.where(jax.random.uniform(km, (N, 1, H, W)) > 0.5, edge_vals, 0.0)

    params = init_params(kp, in_ch, mid_ch, out_ch)

    out, edge_out = guiding_network_forward(params, x, edge)
    out = jax.block_until_ready(out)
    edge_out = jax.block_until_ready(edge_out)

    assert out.shape == (N, out_ch, 1, H, W), out.shape
    assert edge_out.shape == (N, 1, H, W), edge_out.shape

    ref_out, ref_edge = _ref_forward(params, x, edge)
    np.testing.assert_allclose(np.asarray(out), np.asarray(ref_out), rtol=2e-2, atol=2e-2)
    np.testing.assert_allclose(np.asarray(edge_out), np.asarray(ref_edge), rtol=0, atol=0)

    print("KERNEL_OK")
</pallas_src>

<mosaic_0001>
module attributes {stable_mosaic.version = 11 : i64} {
  func.func @_guiding_net_kernel(%arg0: i32, %arg1: memref<1x3x256xf32, #tpu.memory_space<vmem>>, %arg2: memref<1x1x256xf32, #tpu.memory_space<vmem>>, %arg3: memref<1x324xf32, #tpu.memory_space<vmem>>, %arg4: memref<8x72xf32, #tpu.memory_space<vmem>>, %arg5: memref<8x1xf32, #tpu.memory_space<vmem>>, %arg6: memref<8x1xf32, #tpu.memory_space<vmem>>, %arg7: memref<16x72xf32, #tpu.memory_space<vmem>>, %arg8: memref<16x1xf32, #tpu.memory_space<vmem>>, %arg9: memref<16x1xf32, #tpu.memory_space<vmem>>, %arg10: memref<32x144xf32, #tpu.memory_space<vmem>>, %arg11: memref<32x1xf32, #tpu.memory_space<vmem>>, %arg12: memref<32x1xf32, #tpu.memory_space<vmem>>, %arg13: memref<16x288xf32, #tpu.memory_space<vmem>>, %arg14: memref<16x1xf32, #tpu.memory_space<vmem>>, %arg15: memref<16x1xf32, #tpu.memory_space<vmem>>, %arg16: memref<8x144xf32, #tpu.memory_space<vmem>>, %arg17: memref<8x1xf32, #tpu.memory_space<vmem>>, %arg18: memref<8x1xf32, #tpu.memory_space<vmem>>, %arg19: memref<4x72xf32, #tpu.memory_space<vmem>>, %arg20: memref<4x1xf32, #tpu.memory_space<vmem>>, %arg21: memref<4x1xf32, #tpu.memory_space<vmem>>, %arg22: memref<18x10xf32, #tpu.memory_space<vmem>>, %arg23: memref<10x10xf32, #tpu.memory_space<vmem>>, %arg24: memref<10x18xf32, #tpu.memory_space<vmem>>, %arg25: memref<1x4x256xf32, #tpu.memory_space<vmem>>, %arg26: memref<8x362xf32, #tpu.memory_space<vmem>>, %arg27: memref<8x362xf32, #tpu.memory_space<vmem>>, %arg28: memref<16x122xf32, #tpu.memory_space<vmem>>, %arg29: memref<32x122xf32, #tpu.memory_space<vmem>>, %arg30: memref<16x362xf32, #tpu.memory_space<vmem>>, %arg31: memref<8x362xf32, #tpu.memory_space<vmem>>) attributes {dimension_semantics = [#tpu.dimension_semantics<parallel>], iteration_bounds = array<i64: 2>, scalar_prefetch = 0 : i64, scratch_operands = 6 : i64, tpu.core_type = #tpu.core_type<tc>, window_params = [{transform_indices = @transform_0, window_bounds = array<i64: 1, 3, 256>}, {transform_indices = @transform_1, window_bounds = array<i64: 1, 1, 256>}, {pipeline_mode = #tpu.pipeline_mode<synchronous>, transform_indices = @transform_2, window_bounds = array<i64: 1, 324>}, {pipeline_mode = #tpu.pipeline_mode<synchronous>, transform_indices = @transform_3, window_bounds = array<i64: 8, 72>}, {pipeline_mode = #tpu.pipeline_mode<synchronous>, transform_indices = @transform_4, window_bounds = array<i64: 8, 1>}, {pipeline_mode = #tpu.pipeline_mode<synchronous>, transform_indices = @transform_5, window_bounds = array<i64: 8, 1>}, {pipeline_mode = #tpu.pipeline_mode<synchronous>, transform_indices = @transform_6, window_bounds = array<i64: 16, 72>}, {pipeline_mode = #tpu.pipeline_mode<synchronous>, transform_indices = @transform_7, window_bounds = array<i64: 16, 1>}, {pipeline_mode = #tpu.pipeline_mode<synchronous>, transform_indices = @transform_8, window_bounds = array<i64: 16, 1>}, {pipeline_mode = #tpu.pipeline_mode<synchronous>, transform_indices = @transform_9, window_bounds = array<i64: 32, 144>}, {pipeline_mode = #tpu.pipeline_mode<synchronous>, transform_indices = @transform_10, window_bounds = array<i64: 32, 1>}, {pipeline_mode = #tpu.pipeline_mode<synchronous>, transform_indices = @transform_11, window_bounds = array<i64: 32, 1>}, {pipeline_mode = #tpu.pipeline_mode<synchronous>, transform_indices = @transform_12, window_bounds = array<i64: 16, 288>}, {pipeline_mode = #tpu.pipeline_mode<synchronous>, transform_indices = @transform_13, window_bounds = array<i64: 16, 1>}, {pipeline_mode = #tpu.pipeline_mode<synchronous>, transform_indices = @transform_14, window_bounds = array<i64: 16, 1>}, {pipeline_mode = #tpu.pipeline_mode<synchronous>, transform_indices = @transform_15, window_bounds = array<i64: 8, 144>}, {pipeline_mode = #tpu.pipeline_mode<synchronous>, transform_indices = @transform_16, window_bounds = array<i64: 8, 1>}, {pipeline_mode = #tpu.pipeline_mode<synchronous>, transform_indices = @transform_17, window_bounds = array<i64: 8, 1>}, {pipeline_mode = #tpu.pipeline_mode<synchronous>, transform_indices = @transform_18, window_bounds = array<i64: 4, 72>}, {pipeline_mode = #tpu.pipeline_mode<synchronous>, transform_indices = @transform_19, window_bounds = array<i64: 4, 1>}, {pipeline_mode = #tpu.pipeline_mode<synchronous>, transform_indices = @transform_20, window_bounds = array<i64: 4, 1>}, {pipeline_mode = #tpu.pipeline_mode<synchronous>, transform_indices = @transform_21, window_bounds = array<i64: 18, 10>}, {pipeline_mode = #tpu.pipeline_mode<synchronous>, transform_indices = @transform_22, window_bounds = array<i64: 10, 10>}, {pipeline_mode = #tpu.pipeline_mode<synchronous>, transform_indices = @transform_23, window_bounds = array<i64: 10, 18>}, {transform_indices = @transform_24, window_bounds = array<i64: 1, 4, 256>}]} {
    %cst = arith.constant 0.000000e+00 : f32
    %0 = vector.broadcast %cst : f32 to vector<8x362xf32>
    %c0 = arith.constant 0 : index
    %c0_0 = arith.constant 0 : index
    %1 = vector.load %arg26[%c0, %c0_0] : memref<8x362xf32, #tpu.memory_space<vmem>>, vector<8x362xf32>
    tpu.vector_store %arg26[%c0, %c0_0], %0 {strides = array<i32>} : memref<8x362xf32, #tpu.memory_space<vmem>>, vector<8x362xf32>,
    %cst_1 = arith.constant 0.000000e+00 : f32
    %2 = vector.broadcast %cst_1 : f32 to vector<8x362xf32>
    %c0_2 = arith.constant 0 : index
    %c0_3 = arith.constant 0 : index
    %3 = vector.load %arg27[%c0_2, %c0_3] : memref<8x362xf32, #tpu.memory_space<vmem>>, vector<8x362xf32>
    tpu.vector_store %arg27[%c0_2, %c0_3], %2 {strides = array<i32>} : memref<8x362xf32, #tpu.memory_space<vmem>>, vector<8x362xf32>,
    %cst_4 = arith.constant 0.000000e+00 : f32
    %4 = vector.broadcast %cst_4 : f32 to vector<16x122xf32>
    %c0_5 = arith.constant 0 : index
    %c0_6 = arith.constant 0 : index
    %5 = vector.load %arg28[%c0_5, %c0_6] : memref<16x122xf32, #tpu.memory_space<vmem>>, vector<16x122xf32>
    tpu.vector_store %arg28[%c0_5, %c0_6], %4 {strides = array<i32>} : memref<16x122xf32, #tpu.memory_space<vmem>>, vector<16x122xf32>,
    %cst_7 = arith.constant 0.000000e+00 : f32
    %6 = vector.broadcast %cst_7 : f32 to vector<32x122xf32>
    %c0_8 = arith.constant 0 : index
    %c0_9 = arith.constant 0 : index
    %7 = vector.load %arg29[%c0_8, %c0_9] : memref<32x122xf32, #tpu.memory_space<vmem>>, vector<32x122xf32>
    tpu.vector_store %arg29[%c0_8, %c0_9], %6 {strides = array<i32>} : memref<32x122xf32, #tpu.memory_space<vmem>>, vector<32x122xf32>,
    %cst_10 = arith.constant 0.000000e+00 : f32
    %8 = vector.broadcast %cst_10 : f32 to vector<16x362xf32>
    %c0_11 = arith.constant 0 : index
    %c0_12 = arith.constant 0 : index
    %9 = vector.load %arg30[%c0_11, %c0_12] : memref<16x362xf32, #tpu.memory_space<vmem>>, vector<16x362xf32>
    tpu.vector_store %arg30[%c0_11, %c0_12], %8 {strides = array<i32>} : memref<16x362xf32, #tpu.memory_space<vmem>>, vector<16x362xf32>,
    %cst_13 = arith.constant 0.000000e+00 : f32
    %10 = vector.broadcast %cst_13 : f32 to vector<8x362xf32>
    %c0_14 = arith.constant 0 : index
    %c0_15 = arith.constant 0 : index
    %11 = vector.load %arg31[%c0_14, %c0_15] : memref<8x362xf32, #tpu.memory_space<vmem>>, vector<8x362xf32>
    tpu.vector_store %arg31[%c0_14, %c0_15], %10 {strides = array<i32>} : memref<8x362xf32, #tpu.memory_space<vmem>>, vector<8x362xf32>,
    %c0_16 = arith.constant 0 : index
    %c0_17 = arith.constant 0 : index
    %c0_18 = arith.constant 0 : index
    %12 = vector.load %arg1[%c0_16, %c0_17, %c0_18] : memref<1x3x256xf32, #tpu.memory_space<vmem>>, vector<1x3x256xf32>
    %13 = vector.shape_cast %12 : vector<1x3x256xf32> to vector<3x256xf32>
    %c0_19 = arith.constant 0 : index
    %c0_20 = arith.constant 0 : index
    %c0_21 = arith.constant 0 : index
    %14 = vector.load %arg2[%c0_19, %c0_20, %c0_21] : memref<1x1x256xf32, #tpu.memory_space<vmem>>, vector<1x1x256xf32>
    %15 = vector.shape_cast %14 : vector<1x1x256xf32> to vector<1x256xf32>
    %16 = vector.extract_strided_slice %13 {offsets = [0, 0], sizes = [3, 16], strides = [1, 1]} : vector<3x256xf32> to vector<3x16xf32>
    %c0_22 = arith.constant 0 : index
    %c38 = arith.constant 38 : index
    %17 = vector.load %arg26[%c0_22, %c38] : memref<8x362xf32, #tpu.memory_space<vmem>>, vector<3x16xf32>
    tpu.vector_store %arg26[%c0_22, %c38], %16 {strides = array<i32>} : memref<8x362xf32, #tpu.memory_space<vmem>>, vector<3x16xf32>,
    %18 = vector.extract_strided_slice %15 {offsets = [0, 0], sizes = [1, 16], strides = [1, 1]} : vector<1x256xf32> to vector<1x16xf32>
    %c3 = arith.constant 3 : index
    %c38_23 = arith.constant 38 : index
    %19 = vector.load %arg26[%c3, %c38_23] : memref<8x362xf32, #tpu.memory_space<vmem>>, vector<1x16xf32>
    tpu.vector_store %arg26[%c3, %c38_23], %18 {strides = array<i32>} : memref<8x362xf32, #tpu.memory_space<vmem>>, vector<1x16xf32>,
    %20 = vector.extract_strided_slice %13 {offsets = [0, 16], sizes = [3, 16], strides = [1, 1]} : vector<3x256xf32> to vector<3x16xf32>
    %c0_24 = arith.constant 0 : index
    %c56 = arith.constant 56 : index
    %21 = vector.load %arg26[%c0_24, %c56] : memref<8x362xf32, #tpu.memory_space<vmem>>, vector<3x16xf32>
    tpu.vector_store %arg26[%c0_24, %c56], %20 {strides = array<i32>} : memref<8x362xf32, #tpu.memory_space<vmem>>, vector<3x16xf32>,
    %22 = vector.extract_strided_slice %15 {offsets = [0, 16], sizes = [1, 16], strides = [1, 1]} : vector<1x256xf32> to vector<1x16xf32>
    %c3_25 = arith.constant 3 : index
    %c56_26 = arith.constant 56 : index
    %23 = vector.load %arg26[%c3_25, %c56_26] : memref<8x362xf32, #tpu.memory_space<vmem>>, vector<1x16xf32>
    tpu.vector_store %arg26[%c3_25, %c56_26], %22 {strides = array<i32>} : memref<8x362xf32, #tpu.memory_space<vmem>>, vector<1x16xf32>,
    %24 = vector.extract_strided_slice %13 {offsets = [0, 32], sizes = [3, 16], strides = [1, 1]} : vector<3x256xf32> to vector<3x16xf32>
    %c0_27 = arith.constant 0 : index
    %c74 = arith.constant 74 : index
    %25 = vector.load %arg26[%c0_27, %c74] : memref<8x362xf32, #tpu.memory_space<vmem>>, vector<3x16xf32>
    tpu.vector_store %arg26[%c0_27, %c74], %24 {strides = array<i32>} : memref<8x362xf32, #tpu.memory_space<vmem>>, vector<3x16xf32>,
    %26 = vector.extract_strided_slice %15 {offsets = [0, 32], sizes = [1, 16], strides = [1, 1]} : vector<1x256xf32> to vector<1x16xf32>
    %c3_28 = arith.constant 3 : index
    %c74_29 = arith.constant 74 : index
    %27 = vector.load %arg26[%c3_28, %c74_29] : memref<8x362xf32, #tpu.memory_space<vmem>>, vector<1x16xf32>
    tpu.vector_store %arg26[%c3_28, %c74_29], %26 {strides = array<i32>} : memref<8x362xf32, #tpu.memory_space<vmem>>, vector<1x16xf32>,
    %28 = vector.extract_strided_slice %13 {offsets = [0, 48], sizes = [3, 16], strides = [1, 1]} : vector<3x256xf32> to vector<3x16xf32>
    %c0_30 = arith.constant 0 : index
    %c92 = arith.constant 92 : index
    %29 = vector.load %arg26[%c0_30, %c92] : memref<8x362xf32, #tpu.memory_space<vmem>>, vector<3x16xf32>
    tpu.vector_store %arg26[%c0_30, %c92], %28 {strides = array<i32>} : memref<8x362xf32, #tpu.memory_space<vmem>>, vector<3x16xf32>,
    %30 = vector.extract_strided_slice %15 {offsets = [0, 48], sizes = [1, 16], strides = [1, 1]} : vector<1x256xf32> to vector<1x16xf32>
    %c3_31 = arith.constant 3 : index
    %c92_32 = arith.constant 92 : index
    %31 = vector.load %arg26[%c3_31, %c92_32] : memref<8x362xf32, #tpu.memory_space<vmem>>, vector<1x16xf32>
    tpu.vector_store %arg26[%c3_31, %c92_32], %30 {strides = array<i32>} : memref<8x362xf32, #tpu.memory_space<vmem>>, vector<1x16xf32>,
    %32 = vector.extract_strided_slice %13 {offsets = [0, 64], sizes = [3, 16], strides = [1, 1]} : vector<3x256xf32> to vector<3x16xf32>
    %c0_33 = arith.constant 0 : index
    %c110 = arith.constant 110 : index
    %33 = vector.load %arg26[%c0_33, %c110] : memref<8x362xf32, #tpu.memory_space<vmem>>, vector<3x16xf32>
    tpu.vector_store %arg26[%c0_33, %c110], %32 {strides = array<i32>} : memref<8x362xf32, #tpu.memory_space<vmem>>, vector<3x16xf32>,
    %34 = vector.extract_strided_slice %15 {offsets = [0, 64], sizes = [1, 16], strides = [1, 1]} : vector<1x256xf32> to vector<1x16xf32>
    %c3_34 = arith.constant 3 : index
    %c110_35 = arith.constant 110 : index
    %35 = vector.load %arg26[%c3_34, %c110_35] : memref<8x362xf32, #tpu.memory_space<vmem>>, vector<1x16xf32>
    tpu.vector_store %arg26[%c3_34, %c110_35], %34 {strides = array<i32>} : memref<8x362xf32, #tpu.memory_space<vmem>>, vector<1x16xf32>,
    %36 = vector.extract_strided_slice %13 {offsets = [0, 80], sizes = [3, 16], strides = [1, 1]} : vector<3x256xf32> to vector<3x16xf32>
    %c0_36 = arith.constant 0 : index
    %c128 = arith.constant 128 : index
    %37 = vector.load %arg26[%c0_36, %c128] : memref<8x362xf32, #tpu.memory_space<vmem>>, vector<3x16xf32>
    tpu.vector_store %arg26[%c0_36, %c128], %36 {strides = array<i32>} : memref<8x362xf32, #tpu.memory_space<vmem>>, vector<3x16xf32>,
    %38 = vector.extract_strided_slice %15 {offsets = [0, 80], sizes = [1, 16], strides = [1, 1]} : vector<1x256xf32> to vector<1x16xf32>
    %c3_37 = arith.constant 3 : index
    %c128_38 = arith.constant 128 : index
    %39 = vector.load %arg26[%c3_37, %c128_38] : memref<8x362xf32, #tpu.memory_space<vmem>>, vector<1x16xf32>
    tpu.vector_store %arg26[%c3_37, %c128_38], %38 {strides = array<i32>} : memref<8x362xf32, #tpu.memory_space<vmem>>, vector<1x16xf32>,
    %40 = vector.extract_strided_slice %13 {offsets = [0, 96], sizes = [3, 16], strides = [1, 1]} : vector<3x256xf32> to vector<3x16xf32>
    %c0_39 = arith.constant 0 : index
    %c146 = arith.constant 146 : index
    %41 = vector.load %arg26[%c0_39, %c146] : memref<8x362xf32, #tpu.memory_space<vmem>>, vector<3x16xf32>
    tpu.vector_store %arg26[%c0_39, %c146], %40 {strides = array<i32>} : memref<8x362xf32, #tpu.memory_space<vmem>>, vector<3x16xf32>,
    %42 = vector.extract_strided_slice %15 {offsets = [0, 96], sizes = [1, 16], strides = [1, 1]} : vector<1x256xf32> to vector<1x16xf32>
    %c3_40 = arith.constant 3 : index
    %c146_41 = arith.constant 146 : index
    %43 = vector.load %arg26[%c3_40, %c146_41] : memref<8x362xf32, #tpu.memory_space<vmem>>, vector<1x16xf32>
    tpu.vector_store %arg26[%c3_40, %c146_41], %42 {strides = array<i32>} : memref<8x362xf32, #tpu.memory_space<vmem>>, vector<1x16xf32>,
    %44 = vector.extract_strided_slice %13 {offsets = [0, 112], sizes = [3, 16], strides = [1, 1]} : vector<3x256xf32> to vector<3x16xf32>
    %c0_42 = arith.constant 0 : index
    %c164 = arith.constant 164 : index
    %45 = vector.load %arg26[%c0_42, %c164] : memref<8x362xf32, #tpu.memory_space<vmem>>, vector<3x16xf32>
    tpu.vector_store %arg26[%c0_42, %c164], %44 {strides = array<i32>} : memref<8x362xf32, #tpu.memory_space<vmem>>, vector<3x16xf32>,
    %46 = vector.extract_strided_slice %15 {offsets = [0, 112], sizes = [1, 16], strides = [1, 1]} : vector<1x256xf32> to vector<1x16xf32>
    %c3_43 = arith.constant 3 : index
    %c164_44 = arith.constant 164 : index
    %47 = vector.load %arg26[%c3_43, %c164_44] : memref<8x362xf32, #tpu.memory_space<vmem>>, vector<1x16xf32>
    tpu.vector_store %arg26[%c3_43, %c164_44], %46 {strides = array<i32>} : memref<8x362xf32, #tpu.memory_space<vmem>>, vector<1x16xf32>,
    %48 = vector.extract_strided_slice %13 {offsets = [0, 128], sizes = [3, 16], strides = [1, 1]} : vector<3x256xf32> to vector<3x16xf32>
    %c0_45 = arith.constant 0 : index
    %c182 = arith.constant 182 : index
    %49 = vector.load %arg26[%c0_45, %c182] : memref<8x362xf32, #tpu.memory_space<vmem>>, vector<3x16xf32>
    tpu.vector_store %arg26[%c0_45, %c182], %48 {strides = array<i32>} : memref<8x362xf32, #tpu.memory_space<vmem>>, vector<3x16xf32>,
    %50 = vector.extract_strided_slice %15 {offsets = [0, 128], sizes = [1, 16], strides = [1, 1]} : vector<1x256xf32> to vector<1x16xf32>
    %c3_46 = arith.constant 3 : index
    %c182_47 = arith.constant 182 : index
    %51 = vector.load %arg26[%c3_46, %c182_47] : memref<8x362xf32, #tpu.memory_space<vmem>>, vector<1x16xf32>
    tpu.vector_store %arg26[%c3_46, %c182_47], %50 {strides = array<i32>} : memref<8x362xf32, #tpu.memory_space<vmem>>, vector<1x16xf32>,
    %52 = vector.extract_strided_slice %13 {offsets = [0, 144], sizes = [3, 16], strides = [1, 1]} : vector<3x256xf32> to vector<3x16xf32>
    %c0_48 = arith.constant 0 : index
    %c200 = arith.constant 200 : index
    %53 = vector.load %arg26[%c0_48, %c200] : memref<8x362xf32, #tpu.memory_space<vmem>>, vector<3x16xf32>
    tpu.vector_store %arg26[%c0_48, %c200], %52 {strides = array<i32>} : memref<8x362xf32, #tpu.memory_space<vmem>>, vector<3x16xf32>,
    %54 = vector.extract_strided_slice %15 {offsets = [0, 144], sizes = [1, 16], strides = [1, 1]} : vector<1x256xf32> to vector<1x16xf32>
    %c3_49 = arith.constant 3 : index
    %c200_50 = arith.constant 200 : index
    %55 = vector.load %arg26[%c3_49, %c200_50] : memref<8x362xf32, #tpu.memory_space<vmem>>, vector<1x16xf32>
    tpu.vector_store %arg26[%c3_49, %c200_50], %54 {strides = array<i32>} : memref<8x362xf32, #tpu.memory_space<vmem>>, vector<1x16xf32>,
    %56 = vector.extract_strided_slice %13 {offsets = [0, 160], sizes = [3, 16], strides = [1, 1]} : vector<3x256xf32> to vector<3x16xf32>
    %c0_51 = arith.constant 0 : index
    %c218 = arith.constant 218 : index
    %57 = vector.load %arg26[%c0_51, %c218] : memref<8x362xf32, #tpu.memory_space<vmem>>, vector<3x16xf32>
    tpu.vector_store %arg26[%c0_51, %c218], %56 {strides = array<i32>} : memref<8x362xf32, #tpu.memory_space<vmem>>, vector<3x16xf32>,
    %58 = vector.extract_strided_slice %15 {offsets = [0, 160], sizes = [1, 16], strides = [1, 1]} : vector<1x256xf32> to vector<1x16xf32>
    %c3_52 = arith.constant 3 : index
    %c218_53 = arith.constant 218 : index
    %59 = vector.load %arg26[%c3_52, %c218_53] : memref<8x362xf32, #tpu.memory_space<vmem>>, vector<1x16xf32>
    tpu.vector_store %arg26[%c3_52, %c218_53], %58 {strides = array<i32>} : memref<8x362xf32, #tpu.memory_space<vmem>>, vector<1x16xf32>,
    %60 = vector.extract_strided_slice %13 {offsets = [0, 176], sizes = [3, 16], strides = [1, 1]} : vector<3x256xf32> to vector<3x16xf32>
    %c0_54 = arith.constant 0 : index
    %c236 = arith.constant 236 : index
    %61 = vector.load %arg26[%c0_54, %c236] : memref<8x362xf32, #tpu.memory_space<vmem>>, vector<3x16xf32>
    tpu.vector_store %arg26[%c0_54, %c236], %60 {strides = array<i32>} : memref<8x362xf32, #tpu.memory_space<vmem>>, vector<3x16xf32>,
    %62 = vector.extract_strided_slice %15 {offsets = [0, 176], sizes = [1, 16], strides = [1, 1]} : vector<1x256xf32> to vector<1x16xf32>
    %c3_55 = arith.constant 3 : index
    %c236_56 = arith.constant 236 : index
    %63 = vector.load %arg26[%c3_55, %c236_56] : memref<8x362xf32, #tpu.memory_space<vmem>>, vector<1x16xf32>
    tpu.vector_store %arg26[%c3_55, %c236_56], %62 {strides = array<i32>} : memref<8x362xf32, #tpu.memory_space<vmem>>, vector<1x16xf32>,
    %64 = vector.extract_strided_slice %13 {offsets = [0, 192], sizes = [3, 16], strides = [1, 1]} : vector<3x256xf32> to vector<3x16xf32>
    %c0_57 = arith.constant 0 : index
    %c254 = arith.constant 254 : index
    %65 = vector.load %arg26[%c0_57, %c254] : memref<8x362xf32, #tpu.memory_space<vmem>>, vector<3x16xf32>
    tpu.vector_store %arg26[%c0_57, %c254], %64 {strides = array<i32>} : memref<8x362xf32, #tpu.memory_space<vmem>>, vector<3x16xf32>,
    %66 = vector.extract_strided_slice %15 {offsets = [0, 192], sizes = [1, 16], strides = [1, 1]} : vector<1x256xf32> to vector<1x16xf32>
    %c3_58 = arith.constant 3 : index
    %c254_59 = arith.constant 254 : index
    %67 = vector.load %arg26[%c3_58, %c254_59] : memref<8x362xf32, #tpu.memory_space<vmem>>, vector<1x16xf32>
    tpu.vector_store %arg26[%c3_58, %c254_59], %66 {strides = array<i32>} : memref<8x362xf32, #tpu.memory_space<vmem>>, vector<1x16xf32>,
    %68 = vector.extract_strided_slice %13 {offsets = [0, 208], sizes = [3, 16], strides = [1, 1]} : vector<3x256xf32> to vector<3x16xf32>
    %c0_60 = arith.constant 0 : index
    %c272 = arith.constant 272 : index
    %69 = vector.load %arg26[%c0_60, %c272] : memref<8x362xf32, #tpu.memory_space<vmem>>, vector<3x16xf32>
    tpu.vector_store %arg26[%c0_60, %c272], %68 {strides = array<i32>} : memref<8x362xf32, #tpu.memory_space<vmem>>, vector<3x16xf32>,
    %70 = vector.extract_strided_slice %15 {offsets = [0, 208], sizes = [1, 16], strides = [1, 1]} : vector<1x256xf32> to vector<1x16xf32>
    %c3_61 = arith.constant 3 : index
    %c272_62 = arith.constant 272 : index
    %71 = vector.load %arg26[%c3_61, %c272_62] : memref<8x362xf32, #tpu.memory_space<vmem>>, vector<1x16xf32>
    tpu.vector_store %arg26[%c3_61, %c272_62], %70 {strides = array<i32>} : memref<8x362xf32, #tpu.memory_space<vmem>>, vector<1x16xf32>,
    %72 = vector.extract_strided_slice %13 {offsets = [0, 224], sizes = [3, 16], strides = [1, 1]} : vector<3x256xf32> to vector<3x16xf32>
    %c0_63 = arith.constant 0 : index
    %c290 = arith.constant 290 : index
    %73 = vector.load %arg26[%c0_63, %c290] : memref<8x362xf32, #tpu.memory_space<vmem>>, vector<3x16xf32>
    tpu.vector_store %arg26[%c0_63, %c290], %72 {strides = array<i32>} : memref<8x362xf32, #tpu.memory_space<vmem>>, vector<3x16xf32>,
    %74 = vector.extract_strided_slice %15 {offsets = [0, 224], sizes = [1, 16], strides = [1, 1]} : vector<1x256xf32> to vector<1x16xf32>
    %c3_64 = arith.constant 3 : index
    %c290_65 = arith.constant 290 : index
    %75 = vector.load %arg26[%c3_64, %c290_65] : memref<8x362xf32, #tpu.memory_space<vmem>>, vector<1x16xf32>
    tpu.vector_store %arg26[%c3_64, %c290_65], %74 {strides = array<i32>} : memref<8x362xf32, #tpu.memory_space<vmem>>, vector<1x16xf32>,
    %76 = vector.extract_strided_slice %13 {offsets = [0, 240], sizes = [3, 16], strides = [1, 1]} : vector<3x256xf32> to vector<3x16xf32>
    %c0_66 = arith.constant 0 : index
    %c308 = arith.constant 308 : index
    %77 = vector.load %arg26[%c0_66, %c308] : memref<8x362xf32, #tpu.memory_space<vmem>>, vector<3x16xf32>
    tpu.vector_store %arg26[%c0_66, %c308], %76 {strides = array<i32>} : memref<8x362xf32, #tpu.memory_space<vmem>>, vector<3x16xf32>,
    %78 = vector.extract_strided_slice %15 {offsets = [0, 240], sizes = [1, 16], strides = [1, 1]} : vector<1x256xf32> to vector<1x16xf32>
    %c3_67 = arith.constant 3 : index
    %c308_68 = arith.constant 308 : index
    %79 = vector.load %arg26[%c3_67, %c308_68] : memref<8x362xf32, #tpu.memory_space<vmem>>, vector<1x16xf32>
    tpu.vector_store %arg26[%c3_67, %c308_68], %78 {strides = array<i32>} : memref<8x362xf32, #tpu.memory_space<vmem>>, vector<1x16xf32>,
    %c0_69 = arith.constant 0 : index
    %c0_70 = arith.constant 0 : index
    %80 = vector.load %arg3[%c0_69, %c0_70] : memref<1x324xf32, #tpu.memory_space<vmem>>, vector<1x324xf32>
    %c0_71 = arith.constant 0 : index
    %c0_72 = arith.constant 0 : index
    %81 = vector.load %arg26[%c0_71, %c0_72] : memref<8x362xf32, #tpu.memory_space<vmem>>, vector<8x324xf32>
    %c0_73 = arith.constant 0 : index
    %c1 = arith.constant 1 : index
    %82 = vector.load %arg26[%c0_73, %c1] : memref<8x362xf32, #tpu.memory_space<vmem>>, vector<8x324xf32>
    %c0_74 = arith.constant 0 : index
    %c2 = arith.constant 2 : index
    %83 = vector.load %arg26[%c0_74, %c2] : memref<8x362xf32, #tpu.memory_space<vmem>>, vector<8x324xf32>
    %c0_75 = arith.constant 0 : index
    %c18 = arith.constant 18 : index
    %84 = vector.load %arg26[%c0_75, %c18] : memref<8x362xf32, #tpu.memory_space<vmem>>, vector<8x324xf32>
    %c0_76 = arith.constant 0 : index
    %c19 = arith.constant 19 : index
    %85 = vector.load %arg26[%c0_76, %c19] : memref<8x362xf32, #tpu.memory_space<vmem>>, vector<8x324xf32>
    %c0_77 = arith.constant 0 : index
    %c20 = arith.constant 20 : index
    %86 = vector.load %arg26[%c0_77, %c20] : memref<8x362xf32, #tpu.memory_space<vmem>>, vector<8x324xf32>
    %c0_78 = arith.constant 0 : index
    %c36 = arith.constant 36 : index
    %87 = vector.load %arg26[%c0_78, %c36] : memref<8x362xf32, #tpu.memory_space<vmem>>, vector<8x324xf32>
    %c0_79 = arith.constant 0 : index
    %c37 = arith.constant 37 : index
    %88 = vector.load %arg26[%c0_79, %c37] : memref<8x362xf32, #tpu.memory_space<vmem>>, vector<8x324xf32>
    %c0_80 = arith.constant 0 : index
    %c38_81 = arith.constant 38 : index
    %89 = vector.load %arg26[%c0_80, %c38_81] : memref<8x362xf32, #tpu.memory_space<vmem>>, vector<8x324xf32>
    %90 = tpu.concatenate %81, %82, %83, %84, %85, %86, %87, %88, %89 in 0 : vector<8x324xf32>, vector<8x324xf32>, vector<8x324xf32>, vector<8x324xf32>, vector<8x324xf32>, vector<8x324xf32>, vector<8x324xf32>, vector<8x324xf32>, vector<8x324xf32> -> vector<72x324xf32>
    %c0_82 = arith.constant 0 : index
    %c0_83 = arith.constant 0 : index
    %91 = vector.load %arg4[%c0_82, %c0_83] : memref<8x72xf32, #tpu.memory_space<vmem>>, vector<8x72xf32>
    %cst_84 = arith.constant dense<0.000000e+00> : vector<8x324xf32>
    %92 = tpu.matmul %91, %90, %cst_84 {dimension_numbers = #tpu.dot_dimension_numbers<[1], [0], [0], [1], [0, 0, 1, 1], [], []>} : vector<8x72xf32>, vector<72x324xf32>, vector<8x324xf32> -> vector<8x324xf32>
    %c0_85 = arith.constant 0 : index
    %c0_86 = arith.constant 0 : index
    %93 = vector.load %arg5[%c0_85, %c0_86] : memref<8x1xf32, #tpu.memory_space<vmem>>, vector<8x1xf32>
    %94 = vector.broadcast %93 : vector<8x1xf32> to vector<8x324xf32>
    %95 = arith.mulf %92, %94 : vector<8x324xf32>
    %c0_87 = arith.constant 0 : index
    %c0_88 = arith.constant 0 : index
    %96 = vector.load %arg6[%c0_87, %c0_88] : memref<8x1xf32, #tpu.memory_space<vmem>>, vector<8x1xf32>
    %97 = vector.broadcast %96 : vector<8x1xf32> to vector<8x324xf32>
    %98 = arith.addf %95, %97 : vector<8x324xf32>
    %cst_89 = arith.constant 0.000000e+00 : f32
    %99 = vector.broadcast %cst_89 : f32 to vector<8x324xf32>
    %100 = arith.maximumf %98, %99 : vector<8x324xf32>
    %101 = vector.broadcast %80 : vector<1x324xf32> to vector<8x324xf32>
    %102 = arith.mulf %100, %101 : vector<8x324xf32>
    %c0_90 = arith.constant 0 : index
    %c19_91 = arith.constant 19 : index
    %103 = vector.load %arg27[%c0_90, %c19_91] : memref<8x362xf32, #tpu.memory_space<vmem>>, vector<8x324xf32>
    tpu.vector_store %arg27[%c0_90, %c19_91], %102 {strides = array<i32>} : memref<8x362xf32, #tpu.memory_space<vmem>>, vector<8x324xf32>,
    %c0_92 = arith.constant 0 : index
    %c0_93 = arith.constant 0 : index
    %104 = vector.load %arg27[%c0_92, %c0_93] : memref<8x362xf32, #tpu.memory_space<vmem>>, vector<8x324xf32>
    %c0_94 = arith.constant 0 : index
    %c1_95 = arith.constant 1 : index
    %105 = vector.load %arg27[%c0_94, %c1_95] : memref<8x362xf32, #tpu.memory_space<vmem>>, vector<8x324xf32>
    %c0_96 = arith.constant 0 : index
    %c2_97 = arith.constant 2 : index
    %106 = vector.load %arg27[%c0_96, %c2_97] : memref<8x362xf32, #tpu.memory_space<vmem>>, vector<8x324xf32>
    %c0_98 = arith.constant 0 : index
    %c18_99 = arith.constant 18 : index
    %107 = vector.load %arg27[%c0_98, %c18_99] : memref<8x362xf32, #tpu.memory_space<vmem>>, vector<8x324xf32>
    %c0_100 = arith.constant 0 : index
    %c19_101 = arith.constant 19 : index
    %108 = vector.load %arg27[%c0_100, %c19_101] : memref<8x362xf32, #tpu.memory_space<vmem>>, vector<8x324xf32>
    %c0_102 = arith.constant 0 : index
    %c20_103 = arith.constant 20 : index
    %109 = vector.load %arg27[%c0_102, %c20_103] : memref<8x362xf32, #tpu.memory_space<vmem>>, vector<8x324xf32>
    %c0_104 = arith.constant 0 : index
    %c36_105 = arith.constant 36 : index
    %110 = vector.load %arg27[%c0_104, %c36_105] : memref<8x362xf32, #tpu.memory_space<vmem>>, vector<8x324xf32>
    %c0_106 = arith.constant 0 : index
    %c37_107 = arith.constant 37 : index
    %111 = vector.load %arg27[%c0_106, %c37_107] : memref<8x362xf32, #tpu.memory_space<vmem>>, vector<8x324xf32>
    %c0_108 = arith.constant 0 : index
    %c38_109 = arith.constant 38 : index
    %112 = vector.load %arg27[%c0_108, %c38_109] : memref<8x362xf32, #tpu.memory_space<vmem>>, vector<8x324xf32>
    %113 = tpu.concatenate %104, %105, %106, %107, %108, %109, %110, %111, %112 in 0 : vector<8x324xf32>, vector<8x324xf32>, vector<8x324xf32>, vector<8x324xf32>, vector<8x324xf32>, vector<8x324xf32>, vector<8x324xf32>, vector<8x324xf32>, vector<8x324xf32> -> vector<72x324xf32>
    %c0_110 = arith.constant 0 : index
    %c0_111 = arith.constant 0 : index
    %114 = vector.load %arg7[%c0_110, %c0_111] : memref<16x72xf32, #tpu.memory_space<vmem>>, vector<16x72xf32>
    %cst_112 = arith.constant dense<0.000000e+00> : vector<16x324xf32>
    %115 = tpu.matmul %114, %113, %cst_112 {dimension_numbers = #tpu.dot_dimension_numbers<[1], [0], [0], [1], [0, 0, 1, 1], [], []>} : vector<16x72xf32>, vector<72x324xf32>, vector<16x324xf32> -> vector<16x324xf32>
    %c0_113 = arith.constant 0 : index
    %c0_114 = arith.constant 0 : index
    %116 = vector.load %arg8[%c0_113, %c0_114] : memref<16x1xf32, #tpu.memory_space<vmem>>, vector<16x1xf32>
    %117 = vector.broadcast %116 : vector<16x1xf32> to vector<16x324xf32>
    %118 = arith.mulf %115, %117 : vector<16x324xf32>
    %c0_115 = arith.constant 0 : index
    %c0_116 = arith.constant 0 : index
    %119 = vector.load %arg9[%c0_115, %c0_116] : memref<16x1xf32, #tpu.memory_space<vmem>>, vector<16x1xf32>
    %120 = vector.broadcast %119 : vector<16x1xf32> to vector<16x324xf32>
    %121 = arith.addf %118, %120 : vector<16x324xf32>
    %cst_117 = arith.constant 0.000000e+00 : f32
    %122 = vector.broadcast %cst_117 : f32 to vector<16x324xf32>
    %123 = arith.maximumf %121, %122 : vector<16x324xf32>
    %c0_118 = arith.constant 0 : index
    %c0_119 = arith.constant 0 : index
    %124 = vector.load %arg22[%c0_118, %c0_119] : memref<18x10xf32, #tpu.memory_space<vmem>>, vector<18x10xf32>
    %125 = vector.extract_strided_slice %123 {offsets = [0, 18], sizes = [16, 18], strides = [1, 1]} : vector<16x324xf32> to vector<16x18xf32>
    %126 = vector.extract_strided_slice %123 {offsets = [0, 54], sizes = [16, 18], strides = [1, 1]} : vector<16x324xf32> to vector<16x18xf32>
    %127 = vector.extract_strided_slice %123 {offsets = [0, 90], sizes = [16, 18], strides = [1, 1]} : vector<16x324xf32> to vector<16x18xf32>
    %128 = vector.extract_strided_slice %123 {offsets = [0, 126], sizes = [16, 18], strides = [1, 1]} : vector<16x324xf32> to vector<16x18xf32>
    %129 = vector.extract_strided_slice %123 {offsets = [0, 162], sizes = [16, 18], strides = [1, 1]} : vector<16x324xf32> to vector<16x18xf32>
    %130 = vector.extract_strided_slice %123 {offsets = [0, 198], sizes = [16, 18], strides = [1, 1]} : vector<16x324xf32> to vector<16x18xf32>
    %131 = vector.extract_strided_slice %123 {offsets = [0, 234], sizes = [16, 18], strides = [1, 1]} : vector<16x324xf32> to vector<16x18xf32>
    %132 = vector.extract_strided_slice %123 {offsets = [0, 270], sizes = [16, 18], strides = [1, 1]} : vector<16x324xf32> to vector<16x18xf32>
    %133 = tpu.concatenate %125, %126, %127, %128, %129, %130, %131, %132 in 0 : vector<16x18xf32>, vector<16x18xf32>, vector<16x18xf32>, vector<16x18xf32>, vector<16x18xf32>, vector<16x18xf32>, vector<16x18xf32>, vector<16x18xf32> -> vector<128x18xf32>
    %cst_120 = arith.constant dense<0.000000e+00> : vector<128x10xf32>
    %134 = tpu.matmul %133, %124, %cst_120 {dimension_numbers = #tpu.dot_dimension_numbers<[1], [0], [0], [1], [0, 0, 1, 1], [], []>} : vector<128x18xf32>, vector<18x10xf32>, vector<128x10xf32> -> vector<128x10xf32>
    %135 = vector.extract_strided_slice %134 {offsets = [0, 0], sizes = [16, 10], strides = [1, 1]} : vector<128x10xf32> to vector<16x10xf32>
    %c0_121 = arith.constant 0 : index
    %c21 = arith.constant 21 : index
    %136 = vector.load %arg28[%c0_121, %c21] : memref<16x122xf32, #tpu.memory_space<vmem>>, vector<16x10xf32>
    tpu.vector_store %arg28[%c0_121, %c21], %135 {strides = array<i32>} : memref<16x122xf32, #tpu.memory_space<vmem>>, vector<16x10xf32>,
    %137 = vector.extract_strided_slice %134 {offsets = [16, 0], sizes = [16, 10], strides = [1, 1]} : vector<128x10xf32> to vector<16x10xf32>
    %c0_122 = arith.constant 0 : index
    %c31 = arith.constant 31 : index
    %138 = vector.load %arg28[%c0_122, %c31] : memref<16x122xf32, #tpu.memory_space<vmem>>, vector<16x10xf32>
    tpu.vector_store %arg28[%c0_122, %c31], %137 {strides = array<i32>} : memref<16x122xf32, #tpu.memory_space<vmem>>, vector<16x10xf32>,
    %139 = vector.extract_strided_slice %134 {offsets = [32, 0], sizes = [16, 10], strides = [1, 1]} : vector<128x10xf32> to vector<16x10xf32>
    %c0_123 = arith.constant 0 : index
    %c41 = arith.constant 41 : index
    %140 = vector.load %arg28[%c0_123, %c41] : memref<16x122xf32, #tpu.memory_space<vmem>>, vector<16x10xf32>
    tpu.vector_store %arg28[%c0_123, %c41], %139 {strides = array<i32>} : memref<16x122xf32, #tpu.memory_space<vmem>>, vector<16x10xf32>,
    %141 = vector.extract_strided_slice %134 {offsets = [48, 0], sizes = [16, 10], strides = [1, 1]} : vector<128x10xf32> to vector<16x10xf32>
    %c0_124 = arith.constant 0 : index
    %c51 = arith.constant 51 : index
    %142 = vector.load %arg28[%c0_124, %c51] : memref<16x122xf32, #tpu.memory_space<vmem>>, vector<16x10xf32>
    tpu.vector_store %arg28[%c0_124, %c51], %141 {strides = array<i32>} : memref<16x122xf32, #tpu.memory_space<vmem>>, vector<16x10xf32>,
    %143 = vector.extract_strided_slice %134 {offsets = [64, 0], sizes = [16, 10], strides = [1, 1]} : vector<128x10xf32> to vector<16x10xf32>
    %c0_125 = arith.constant 0 : index
    %c61 = arith.constant 61 : index
    %144 = vector.load %arg28[%c0_125, %c61] : memref<16x122xf32, #tpu.memory_space<vmem>>, vector<16x10xf32>
    tpu.vector_store %arg28[%c0_125, %c61], %143 {strides = array<i32>} : memref<16x122xf32, #tpu.memory_space<vmem>>, vector<16x10xf32>,
    %145 = vector.extract_strided_slice %134 {offsets = [80, 0], sizes = [16, 10], strides = [1, 1]} : vector<128x10xf32> to vector<16x10xf32>
    %c0_126 = arith.constant 0 : index
    %c71 = arith.constant 71 : index
    %146 = vector.load %arg28[%c0_126, %c71] : memref<16x122xf32, #tpu.memory_space<vmem>>, vector<16x10xf32>
    tpu.vector_store %arg28[%c0_126, %c71], %145 {strides = array<i32>} : memref<16x122xf32, #tpu.memory_space<vmem>>, vector<16x10xf32>,
    %147 = vector.extract_strided_slice %134 {offsets = [96, 0], sizes = [16, 10], strides = [1, 1]} : vector<128x10xf32> to vector<16x10xf32>
    %c0_127 = arith.constant 0 : index
    %c81 = arith.constant 81 : index
    %148 = vector.load %arg28[%c0_127, %c81] : memref<16x122xf32, #tpu.memory_space<vmem>>, vector<16x10xf32>
    tpu.vector_store %arg28[%c0_127, %c81], %147 {strides = array<i32>} : memref<16x122xf32, #tpu.memory_space<vmem>>, vector<16x10xf32>,
    %149 = vector.extract_strided_slice %134 {offsets = [112, 0], sizes = [16, 10], strides = [1, 1]} : vector<128x10xf32> to vector<16x10xf32>
    %c0_128 = arith.constant 0 : index
    %c91 = arith.constant 91 : index
    %150 = vector.load %arg28[%c0_128, %c91] : memref<16x122xf32, #tpu.memory_space<vmem>>, vector<16x10xf32>
    tpu.vector_store %arg28[%c0_128, %c91], %149 {strides = array<i32>} : memref<16x122xf32, #tpu.memory_space<vmem>>, vector<16x10xf32>,
    %c0_129 = arith.constant 0 : index
    %c0_130 = arith.constant 0 : index
    %151 = vector.load %arg28[%c0_129, %c0_130] : memref<16x122xf32, #tpu.memory_space<vmem>>, vector<16x100xf32>
    %c0_131 = arith.constant 0 : index
    %c1_132 = arith.constant 1 : index
    %152 = vector.load %arg28[%c0_131, %c1_132] : memref<16x122xf32, #tpu.memory_space<vmem>>, vector<16x100xf32>
    %c0_133 = arith.constant 0 : index
    %c2_134 = arith.constant 2 : index
    %153 = vector.load %arg28[%c0_133, %c2_134] : memref<16x122xf32, #tpu.memory_space<vmem>>, vector<16x100xf32>
    %c0_135 = arith.constant 0 : index
    %c10 = arith.constant 10 : index
    %154 = vector.load %arg28[%c0_135, %c10] : memref<16x122xf32, #tpu.memory_space<vmem>>, vector<16x100xf32>
    %c0_136 = arith.constant 0 : index
    %c11 = arith.constant 11 : index
    %155 = vector.load %arg28[%c0_136, %c11] : memref<16x122xf32, #tpu.memory_space<vmem>>, vector<16x100xf32>
    %c0_137 = arith.constant 0 : index
    %c12 = arith.constant 12 : index
    %156 = vector.load %arg28[%c0_137, %c12] : memref<16x122xf32, #tpu.memory_space<vmem>>, vector<16x100xf32>
    %c0_138 = arith.constant 0 : index
    %c20_139 = arith.constant 20 : index
    %157 = vector.load %arg28[%c0_138, %c20_139] : memref<16x122xf32, #tpu.memory_space<vmem>>, vector<16x100xf32>
    %c0_140 = arith.constant 0 : index
    %c21_141 = arith.constant 21 : index
    %158 = vector.load %arg28[%c0_140, %c21_141] : memref<16x122xf32, #tpu.memory_space<vmem>>, vector<16x100xf32>
    %c0_142 = arith.constant 0 : index
    %c22 = arith.constant 22 : index
    %159 = vector.load %arg28[%c0_142, %c22] : memref<16x122xf32, #tpu.memory_space<vmem>>, vector<16x100xf32>
    %160 = tpu.concatenate %151, %152, %153, %154, %155, %156, %157, %158, %159 in 0 : vector<16x100xf32>, vector<16x100xf32>, vector<16x100xf32>, vector<16x100xf32>, vector<16x100xf32>, vector<16x100xf32>, vector<16x100xf32>, vector<16x100xf32>, vector<16x100xf32> -> vector<144x100xf32>
    %c0_143 = arith.constant 0 : index
    %c0_144 = arith.constant 0 : index
    %161 = vector.load %arg10[%c0_143, %c0_144] : memref<32x144xf32, #tpu.memory_space<vmem>>, vector<32x144xf32>
    %cst_145 = arith.constant dense<0.000000e+00> : vector<32x100xf32>
    %162 = tpu.matmul %161, %160, %cst_145 {dimension_numbers = #tpu.dot_dimension_numbers<[1], [0], [0], [1], [0, 0, 1, 1], [], []>} : vector<32x144xf32>, vector<144x100xf32>, vector<32x100xf32> -> vector<32x100xf32>
    %c0_146 = arith.constant 0 : index
    %c0_147 = arith.constant 0 : index
    %163 = vector.load %arg11[%c0_146, %c0_147] : memref<32x1xf32, #tpu.memory_space<vmem>>, vector<32x1xf32>
    %164 = vector.broadcast %163 : vector<32x1xf32> to vector<32x100xf32>
    %165 = arith.mulf %162, %164 : vector<32x100xf32>
    %c0_148 = arith.constant 0 : index
    %c0_149 = arith.constant 0 : index
    %166 = vector.load %arg12[%c0_148, %c0_149] : memref<32x1xf32, #tpu.memory_space<vmem>>, vector<32x1xf32>
    %167 = vector.broadcast %166 : vector<32x1xf32> to vector<32x100xf32>
    %168 = arith.addf %165, %167 : vector<32x100xf32>
    %cst_150 = arith.constant 0.000000e+00 : f32
    %169 = vector.broadcast %cst_150 : f32 to vector<32x100xf32>
    %170 = arith.maximumf %168, %169 : vector<32x100xf32>
    %c0_151 = arith.constant 0 : index
    %c0_152 = arith.constant 0 : index
    %171 = vector.load %arg23[%c0_151, %c0_152] : memref<10x10xf32, #tpu.memory_space<vmem>>, vector<10x10xf32>
    %172 = vector.extract_strided_slice %170 {offsets = [0, 10], sizes = [32, 10], strides = [1, 1]} : vector<32x100xf32> to vector<32x10xf32>
    %173 = vector.extract_strided_slice %170 {offsets = [0, 10], sizes = [32, 10], strides = [1, 1]} : vector<32x100xf32> to vector<32x10xf32>
    %cst_153 = arith.constant 0.571428597 : f32
    %174 = vector.broadcast %cst_153 : f32 to vector<32x10xf32>
    %175 = arith.mulf %173, %174 : vector<32x10xf32>
    %176 = vector.extract_strided_slice %170 {offsets = [0, 30], sizes = [32, 10], strides = [1, 1]} : vector<32x100xf32> to vector<32x10xf32>
    %cst_154 = arith.constant 0.428571433 : f32
    %177 = vector.broadcast %cst_154 : f32 to vector<32x10xf32>
    %178 = arith.mulf %176, %177 : vector<32x10xf32>
    %179 = arith.addf %175, %178 : vector<32x10xf32>
    %180 = vector.extract_strided_slice %170 {offsets = [0, 10], sizes = [32, 10], strides = [1, 1]} : vector<32x100xf32> to vector<32x10xf32>
    %cst_155 = arith.constant 0.142857149 : f32
    %181 = vector.broadcast %cst_155 : f32 to vector<32x10xf32>
    %182 = arith.mulf %180, %181 : vector<32x10xf32>
    %183 = vector.extract_strided_slice %170 {offsets = [0, 30], sizes = [32, 10], strides = [1, 1]} : vector<32x100xf32> to vector<32x10xf32>
    %cst_156 = arith.constant 0.857142865 : f32
    %184 = vector.broadcast %cst_156 : f32 to vector<32x10xf32>
    %185 = arith.mulf %183, %184 : vector<32x10xf32>
    %186 = arith.addf %182, %185 : vector<32x10xf32>
    %187 = vector.extract_strided_slice %170 {offsets = [0, 30], sizes = [32, 10], strides = [1, 1]} : vector<32x100xf32> to vector<32x10xf32>
    %cst_157 = arith.constant 0.714285731 : f32
    %188 = vector.broadcast %cst_157 : f32 to vector<32x10xf32>
    %189 = arith.mulf %187, %188 : vector<32x10xf32>
    %190 = vector.extract_strided_slice %170 {offsets = [0, 50], sizes = [32, 10], strides = [1, 1]} : vector<32x100xf32> to vector<32x10xf32>
    %cst_158 = arith.constant 0.285714298 : f32
    %191 = vector.broadcast %cst_158 : f32 to vector<32x10xf32>
    %192 = arith.mulf %190, %191 : vector<32x10xf32>
    %193 = arith.addf %189, %192 : vector<32x10xf32>
    %194 = vector.extract_strided_slice %170 {offsets = [0, 30], sizes = [32, 10], strides = [1, 1]} : vector<32x100xf32> to vector<32x10xf32>
    %cst_159 = arith.constant 0.285714298 : f32
    %195 = vector.broadcast %cst_159 : f32 to vector<32x10xf32>
    %196 = arith.mulf %194, %195 : vector<32x10xf32>
    %197 = vector.extract_strided_slice %170 {offsets = [0, 50], sizes = [32, 10], strides = [1, 1]} : vector<32x100xf32> to vector<32x10xf32>
    %cst_160 = arith.constant 0.714285731 : f32
    %198 = vector.broadcast %cst_160 : f32 to vector<32x10xf32>
    %199 = arith.mulf %197, %198 : vector<32x10xf32>
    %200 = arith.addf %196, %199 : vector<32x10xf32>
    %201 = vector.extract_strided_slice %170 {offsets = [0, 50], sizes = [32, 10], strides = [1, 1]} : vector<32x100xf32> to vector<32x10xf32>
    %cst_161 = arith.constant 0.857142865 : f32
    %202 = vector.broadcast %cst_161 : f32 to vector<32x10xf32>
    %203 = arith.mulf %201, %202 : vector<32x10xf32>
    %204 = vector.extract_strided_slice %170 {offsets = [0, 70], sizes = [32, 10], strides = [1, 1]} : vector<32x100xf32> to vector<32x10xf32>
    %cst_162 = arith.constant 0.142857149 : f32
    %205 = vector.broadcast %cst_162 : f32 to vector<32x10xf32>
    %206 = arith.mulf %204, %205 : vector<32x10xf32>
    %207 = arith.addf %203, %206 : vector<32x10xf32>
    %208 = vector.extract_strided_slice %170 {offsets = [0, 50], sizes = [32, 10], strides = [1, 1]} : vector<32x100xf32> to vector<32x10xf32>
    %cst_163 = arith.constant 0.428571433 : f32
    %209 = vector.broadcast %cst_163 : f32 to vector<32x10xf32>
    %210 = arith.mulf %208, %209 : vector<32x10xf32>
    %211 = vector.extract_strided_slice %170 {offsets = [0, 70], sizes = [32, 10], strides = [1, 1]} : vector<32x100xf32> to vector<32x10xf32>
    %cst_164 = arith.constant 0.571428597 : f32
    %212 = vector.broadcast %cst_164 : f32 to vector<32x10xf32>
    %213 = arith.mulf %211, %212 : vector<32x10xf32>
    %214 = arith.addf %210, %213 : vector<32x10xf32>
    %215 = vector.extract_strided_slice %170 {offsets = [0, 70], sizes = [32, 10], strides = [1, 1]} : vector<32x100xf32> to vector<32x10xf32>
    %216 = tpu.concatenate %172, %179, %186, %193, %200, %207, %214, %215 in 0 : vector<32x10xf32>, vector<32x10xf32>, vector<32x10xf32>, vector<32x10xf32>, vector<32x10xf32>, vector<32x10xf32>, vector<32x10xf32>, vector<32x10xf32> -> vector<256x10xf32>
    %cst_165 = arith.constant dense<0.000000e+00> : vector<256x10xf32>
    %217 = tpu.matmul %216, %171, %cst_165 {dimension_numbers = #tpu.dot_dimension_numbers<[1], [0], [0], [1], [0, 0, 1, 1], [], []>} : vector<256x10xf32>, vector<10x10xf32>, vector<256x10xf32> -> vector<256x10xf32>
    %218 = vector.extract_strided_slice %217 {offsets = [0, 0], sizes = [32, 10], strides = [1, 1]} : vector<256x10xf32> to vector<32x10xf32>
    %c0_166 = arith.constant 0 : index
    %c21_167 = arith.constant 21 : index
    %219 = vector.load %arg29[%c0_166, %c21_167] : memref<32x122xf32, #tpu.memory_space<vmem>>, vector<32x10xf32>
    tpu.vector_store %arg29[%c0_166, %c21_167], %218 {strides = array<i32>} : memref<32x122xf32, #tpu.memory_space<vmem>>, vector<32x10xf32>,
    %220 = vector.extract_strided_slice %217 {offsets = [32, 0], sizes = [32, 10], strides = [1, 1]} : vector<256x10xf32> to vector<32x10xf32>
    %c0_168 = arith.constant 0 : index
    %c31_169 = arith.constant 31 : index
    %221 = vector.load %arg29[%c0_168, %c31_169] : memref<32x122xf32, #tpu.memory_space<vmem>>, vector<32x10xf32>
    tpu.vector_store %arg29[%c0_168, %c31_169], %220 {strides = array<i32>} : memref<32x122xf32, #tpu.memory_space<vmem>>, vector<32x10xf32>,
    %222 = vector.extract_strided_slice %217 {offsets = [64, 0], sizes = [32, 10], strides = [1, 1]} : vector<256x10xf32> to vector<32x10xf32>
    %c0_170 = arith.constant 0 : index
    %c41_171 = arith.constant 41 : index
    %223 = vector.load %arg29[%c0_170, %c41_171] : memref<32x122xf32, #tpu.memory_space<vmem>>, vector<32x10xf32>
    tpu.vector_store %arg29[%c0_170, %c41_171], %222 {strides = array<i32>} : memref<32x122xf32, #tpu.memory_space<vmem>>, vector<32x10xf32>,
    %224 = vector.extract_strided_slice %217 {offsets = [96, 0], sizes = [32, 10], strides = [1, 1]} : vector<256x10xf32> to vector<32x10xf32>
    %c0_172 = arith.constant 0 : index
    %c51_173 = arith.constant 51 : index
    %225 = vector.load %arg29[%c0_172, %c51_173] : memref<32x122xf32, #tpu.memory_space<vmem>>, vector<32x10xf32>
    tpu.vector_store %arg29[%c0_172, %c51_173], %224 {strides = array<i32>} : memref<32x122xf32, #tpu.memory_space<vmem>>, vector<32x10xf32>,
    %226 = vector.extract_strided_slice %217 {offsets = [128, 0], sizes = [32, 10], strides = [1, 1]} : vector<256x10xf32> to vector<32x10xf32>
    %c0_174 = arith.constant 0 : index
    %c61_175 = arith.constant 61 : index
    %227 = vector.load %arg29[%c0_174, %c61_175] : memref<32x122xf32, #tpu.memory_space<vmem>>, vector<32x10xf32>
    tpu.vector_store %arg29[%c0_174, %c61_175], %226 {strides = array<i32>} : memref<32x122xf32, #tpu.memory_space<vmem>>, vector<32x10xf32>,
    %228 = vector.extract_strided_slice %217 {offsets = [160, 0], sizes = [32, 10], strides = [1, 1]} : vector<256x10xf32> to vector<32x10xf32>
    %c0_176 = arith.constant 0 : index
    %c71_177 = arith.constant 71 : index
    %229 = vector.load %arg29[%c0_176, %c71_177] : memref<32x122xf32, #tpu.memory_space<vmem>>, vector<32x10xf32>
    tpu.vector_store %arg29[%c0_176, %c71_177], %228 {strides = array<i32>} : memref<32x122xf32, #tpu.memory_space<vmem>>, vector<32x10xf32>,
    %230 = vector.extract_strided_slice %217 {offsets = [192, 0], sizes = [32, 10], strides = [1, 1]} : vector<256x10xf32> to vector<32x10xf32>
    %c0_178 = arith.constant 0 : index
    %c81_179 = arith.constant 81 : index
    %231 = vector.load %arg29[%c0_178, %c81_179] : memref<32x122xf32, #tpu.memory_space<vmem>>, vector<32x10xf32>
    tpu.vector_store %arg29[%c0_178, %c81_179], %230 {strides = array<i32>} : memref<32x122xf32, #tpu.memory_space<vmem>>, vector<32x10xf32>,
    %232 = vector.extract_strided_slice %217 {offsets = [224, 0], sizes = [32, 10], strides = [1, 1]} : vector<256x10xf32> to vector<32x10xf32>
    %c0_180 = arith.constant 0 : index
    %c91_181 = arith.constant 91 : index
    %233 = vector.load %arg29[%c0_180, %c91_181] : memref<32x122xf32, #tpu.memory_space<vmem>>, vector<32x10xf32>
    tpu.vector_store %arg29[%c0_180, %c91_181], %232 {strides = array<i32>} : memref<32x122xf32, #tpu.memory_space<vmem>>, vector<32x10xf32>,
    %c0_182 = arith.constant 0 : index
    %c0_183 = arith.constant 0 : index
    %234 = vector.load %arg29[%c0_182, %c0_183] : memref<32x122xf32, #tpu.memory_space<vmem>>, vector<32x100xf32>
    %c0_184 = arith.constant 0 : index
    %c1_185 = arith.constant 1 : index
    %235 = vector.load %arg29[%c0_184, %c1_185] : memref<32x122xf32, #tpu.memory_space<vmem>>, vector<32x100xf32>
    %c0_186 = arith.constant 0 : index
    %c2_187 = arith.constant 2 : index
    %236 = vector.load %arg29[%c0_186, %c2_187] : memref<32x122xf32, #tpu.memory_space<vmem>>, vector<32x100xf32>
    %c0_188 = arith.constant 0 : index
    %c10_189 = arith.constant 10 : index
    %237 = vector.load %arg29[%c0_188, %c10_189] : memref<32x122xf32, #tpu.memory_space<vmem>>, vector<32x100xf32>
    %c0_190 = arith.constant 0 : index
    %c11_191 = arith.constant 11 : index
    %238 = vector.load %arg29[%c0_190, %c11_191] : memref<32x122xf32, #tpu.memory_space<vmem>>, vector<32x100xf32>
    %c0_192 = arith.constant 0 : index
    %c12_193 = arith.constant 12 : index
    %239 = vector.load %arg29[%c0_192, %c12_193] : memref<32x122xf32, #tpu.memory_space<vmem>>, vector<32x100xf32>
    %c0_194 = arith.constant 0 : index
    %c20_195 = arith.constant 20 : index
    %240 = vector.load %arg29[%c0_194, %c20_195] : memref<32x122xf32, #tpu.memory_space<vmem>>, vector<32x100xf32>
    %c0_196 = arith.constant 0 : index
    %c21_197 = arith.constant 21 : index
    %241 = vector.load %arg29[%c0_196, %c21_197] : memref<32x122xf32, #tpu.memory_space<vmem>>, vector<32x100xf32>
    %c0_198 = arith.constant 0 : index
    %c22_199 = arith.constant 22 : index
    %242 = vector.load %arg29[%c0_198, %c22_199] : memref<32x122xf32, #tpu.memory_space<vmem>>, vector<32x100xf32>
    %243 = tpu.concatenate %234, %235, %236, %237, %238, %239, %240, %241, %242 in 0 : vector<32x100xf32>, vector<32x100xf32>, vector<32x100xf32>, vector<32x100xf32>, vector<32x100xf32>, vector<32x100xf32>, vector<32x100xf32>, vector<32x100xf32>, vector<32x100xf32> -> vector<288x100xf32>
    %c0_200 = arith.constant 0 : index
    %c0_201 = arith.constant 0 : index
    %244 = vector.load %arg13[%c0_200, %c0_201] : memref<16x288xf32, #tpu.memory_space<vmem>>, vector<16x288xf32>
    %cst_202 = arith.constant dense<0.000000e+00> : vector<16x100xf32>
    %245 = tpu.matmul %244, %243, %cst_202 {dimension_numbers = #tpu.dot_dimension_numbers<[1], [0], [0], [1], [0, 0, 1, 1], [], []>} : vector<16x288xf32>, vector<288x100xf32>, vector<16x100xf32> -> vector<16x100xf32>
    %c0_203 = arith.constant 0 : index
    %c0_204 = arith.constant 0 : index
    %246 = vector.load %arg14[%c0_203, %c0_204] : memref<16x1xf32, #tpu.memory_space<vmem>>, vector<16x1xf32>
    %247 = vector.broadcast %246 : vector<16x1xf32> to vector<16x100xf32>
    %248 = arith.mulf %245, %247 : vector<16x100xf32>
    %c0_205 = arith.constant 0 : index
    %c0_206 = arith.constant 0 : index
    %249 = vector.load %arg15[%c0_205, %c0_206] : memref<16x1xf32, #tpu.memory_space<vmem>>, vector<16x1xf32>
    %250 = vector.broadcast %249 : vector<16x1xf32> to vector<16x100xf32>
    %251 = arith.addf %248, %250 : vector<16x100xf32>
    %cst_207 = arith.constant 0.000000e+00 : f32
    %252 = vector.broadcast %cst_207 : f32 to vector<16x100xf32>
    %253 = arith.maximumf %251, %252 : vector<16x100xf32>
    %c0_208 = arith.constant 0 : index
    %c0_209 = arith.constant 0 : index
    %254 = vector.load %arg24[%c0_208, %c0_209] : memref<10x18xf32, #tpu.memory_space<vmem>>, vector<10x18xf32>
    %255 = vector.extract_strided_slice %253 {offsets = [0, 10], sizes = [16, 10], strides = [1, 1]} : vector<16x100xf32> to vector<16x10xf32>
    %256 = vector.extract_strided_slice %253 {offsets = [0, 10], sizes = [16, 10], strides = [1, 1]} : vector<16x100xf32> to vector<16x10xf32>
    %cst_210 = arith.constant 0.533333361 : f32
    %257 = vector.broadcast %cst_210 : f32 to vector<16x10xf32>
    %258 = arith.mulf %256, %257 : vector<16x10xf32>
    %259 = vector.extract_strided_slice %253 {offsets = [0, 20], sizes = [16, 10], strides = [1, 1]} : vector<16x100xf32> to vector<16x10xf32>
    %cst_211 = arith.constant 0.466666669 : f32
    %260 = vector.broadcast %cst_211 : f32 to vector<16x10xf32>
    %261 = arith.mulf %259, %260 : vector<16x10xf32>
    %262 = arith.addf %258, %261 : vector<16x10xf32>
    %263 = vector.extract_strided_slice %253 {offsets = [0, 10], sizes = [16, 10], strides = [1, 1]} : vector<16x100xf32> to vector<16x10xf32>
    %cst_212 = arith.constant 0.0666666701 : f32
    %264 = vector.broadcast %cst_212 : f32 to vector<16x10xf32>
    %265 = arith.mulf %263, %264 : vector<16x10xf32>
    %266 = vector.extract_strided_slice %253 {offsets = [0, 20], sizes = [16, 10], strides = [1, 1]} : vector<16x100xf32> to vector<16x10xf32>
    %cst_213 = arith.constant 0.933333337 : f32
    %267 = vector.broadcast %cst_213 : f32 to vector<16x10xf32>
    %268 = arith.mulf %266, %267 : vector<16x10xf32>
    %269 = arith.addf %265, %268 : vector<16x10xf32>
    %270 = vector.extract_strided_slice %253 {offsets = [0, 20], sizes = [16, 10], strides = [1, 1]} : vector<16x100xf32> to vector<16x10xf32>
    %cst_214 = arith.constant 6.000000e-01 : f32
    %271 = vector.broadcast %cst_214 : f32 to vector<16x10xf32>
    %272 = arith.mulf %270, %271 : vector<16x10xf32>
    %273 = vector.extract_strided_slice %253 {offsets = [0, 30], sizes = [16, 10], strides = [1, 1]} : vector<16x100xf32> to vector<16x10xf32>
    %cst_215 = arith.constant 4.000000e-01 : f32
    %274 = vector.broadcast %cst_215 : f32 to vector<16x10xf32>
    %275 = arith.mulf %273, %274 : vector<16x10xf32>
    %276 = arith.addf %272, %275 : vector<16x10xf32>
    %277 = vector.extract_strided_slice %253 {offsets = [0, 20], sizes = [16, 10], strides = [1, 1]} : vector<16x100xf32> to vector<16x10xf32>
    %cst_216 = arith.constant 0.13333334 : f32
    %278 = vector.broadcast %cst_216 : f32 to vector<16x10xf32>
    %279 = arith.mulf %277, %278 : vector<16x10xf32>
    %280 = vector.extract_strided_slice %253 {offsets = [0, 30], sizes = [16, 10], strides = [1, 1]} : vector<16x100xf32> to vector<16x10xf32>
    %cst_217 = arith.constant 0.866666674 : f32
    %281 = vector.broadcast %cst_217 : f32 to vector<16x10xf32>
    %282 = arith.mulf %280, %281 : vector<16x10xf32>
    %283 = arith.addf %279, %282 : vector<16x10xf32>
    %284 = vector.extract_strided_slice %253 {offsets = [0, 30], sizes = [16, 10], strides = [1, 1]} : vector<16x100xf32> to vector<16x10xf32>
    %cst_218 = arith.constant 0.666666686 : f32
    %285 = vector.broadcast %cst_218 : f32 to vector<16x10xf32>
    %286 = arith.mulf %284, %285 : vector<16x10xf32>
    %287 = vector.extract_strided_slice %253 {offsets = [0, 40], sizes = [16, 10], strides = [1, 1]} : vector<16x100xf32> to vector<16x10xf32>
    %cst_219 = arith.constant 0.333333343 : f32
    %288 = vector.broadcast %cst_219 : f32 to vector<16x10xf32>
    %289 = arith.mulf %287, %288 : vector<16x10xf32>
    %290 = arith.addf %286, %289 : vector<16x10xf32>
    %291 = vector.extract_strided_slice %253 {offsets = [0, 30], sizes = [16, 10], strides = [1, 1]} : vector<16x100xf32> to vector<16x10xf32>
    %cst_220 = arith.constant 2.000000e-01 : f32
    %292 = vector.broadcast %cst_220 : f32 to vector<16x10xf32>
    %293 = arith.mulf %291, %292 : vector<16x10xf32>
    %294 = vector.extract_strided_slice %253 {offsets = [0, 40], sizes = [16, 10], strides = [1, 1]} : vector<16x100xf32> to vector<16x10xf32>
    %cst_221 = arith.constant 8.000000e-01 : f32
    %295 = vector.broadcast %cst_221 : f32 to vector<16x10xf32>
    %296 = arith.mulf %294, %295 : vector<16x10xf32>
    %297 = arith.addf %293, %296 : vector<16x10xf32>
    %298 = vector.extract_strided_slice %253 {offsets = [0, 40], sizes = [16, 10], strides = [1, 1]} : vector<16x100xf32> to vector<16x10xf32>
    %cst_222 = arith.constant 0.733333349 : f32
    %299 = vector.broadcast %cst_222 : f32 to vector<16x10xf32>
    %300 = arith.mulf %298, %299 : vector<16x10xf32>
    %301 = vector.extract_strided_slice %253 {offsets = [0, 50], sizes = [16, 10], strides = [1, 1]} : vector<16x100xf32> to vector<16x10xf32>
    %cst_223 = arith.constant 0.266666681 : f32
    %302 = vector.broadcast %cst_223 : f32 to vector<16x10xf32>
    %303 = arith.mulf %301, %302 : vector<16x10xf32>
    %304 = arith.addf %300, %303 : vector<16x10xf32>
    %305 = vector.extract_strided_slice %253 {offsets = [0, 40], sizes = [16, 10], strides = [1, 1]} : vector<16x100xf32> to vector<16x10xf32>
    %cst_224 = arith.constant 0.266666681 : f32
    %306 = vector.broadcast %cst_224 : f32 to vector<16x10xf32>
    %307 = arith.mulf %305, %306 : vector<16x10xf32>
    %308 = vector.extract_strided_slice %253 {offsets = [0, 50], sizes = [16, 10], strides = [1, 1]} : vector<16x100xf32> to vector<16x10xf32>
    %cst_225 = arith.constant 0.733333349 : f32
    %309 = vector.broadcast %cst_225 : f32 to vector<16x10xf32>
    %310 = arith.mulf %308, %309 : vector<16x10xf32>
    %311 = arith.addf %307, %310 : vector<16x10xf32>
    %312 = vector.extract_strided_slice %253 {offsets = [0, 50], sizes = [16, 10], strides = [1, 1]} : vector<16x100xf32> to vector<16x10xf32>
    %cst_226 = arith.constant 8.000000e-01 : f32
    %313 = vector.broadcast %cst_226 : f32 to vector<16x10xf32>
    %314 = arith.mulf %312, %313 : vector<16x10xf32>
    %315 = vector.extract_strided_slice %253 {offsets = [0, 60], sizes = [16, 10], strides = [1, 1]} : vector<16x100xf32> to vector<16x10xf32>
    %cst_227 = arith.constant 2.000000e-01 : f32
    %316 = vector.broadcast %cst_227 : f32 to vector<16x10xf32>
    %317 = arith.mulf %315, %316 : vector<16x10xf32>
    %318 = arith.addf %314, %317 : vector<16x10xf32>
    %319 = vector.extract_strided_slice %253 {offsets = [0, 50], sizes = [16, 10], strides = [1, 1]} : vector<16x100xf32> to vector<16x10xf32>
    %cst_228 = arith.constant 0.333333343 : f32
    %320 = vector.broadcast %cst_228 : f32 to vector<16x10xf32>
    %321 = arith.mulf %319, %320 : vector<16x10xf32>
    %322 = vector.extract_strided_slice %253 {offsets = [0, 60], sizes = [16, 10], strides = [1, 1]} : vector<16x100xf32> to vector<16x10xf32>
    %cst_229 = arith.constant 0.666666686 : f32
    %323 = vector.broadcast %cst_229 : f32 to vector<16x10xf32>
    %324 = arith.mulf %322, %323 : vector<16x10xf32>
    %325 = arith.addf %321, %324 : vector<16x10xf32>
    %326 = vector.extract_strided_slice %253 {offsets = [0, 60], sizes = [16, 10], strides = [1, 1]} : vector<16x100xf32> to vector<16x10xf32>
    %cst_230 = arith.constant 0.866666674 : f32
    %327 = vector.broadcast %cst_230 : f32 to vector<16x10xf32>
    %328 = arith.mulf %326, %327 : vector<16x10xf32>
    %329 = vector.extract_strided_slice %253 {offsets = [0, 70], sizes = [16, 10], strides = [1, 1]} : vector<16x100xf32> to vector<16x10xf32>
    %cst_231 = arith.constant 0.13333334 : f32
    %330 = vector.broadcast %cst_231 : f32 to vector<16x10xf32>
    %331 = arith.mulf %329, %330 : vector<16x10xf32>
    %332 = arith.addf %328, %331 : vector<16x10xf32>
    %333 = vector.extract_strided_slice %253 {offsets = [0, 60], sizes = [16, 10], strides = [1, 1]} : vector<16x100xf32> to vector<16x10xf32>
    %cst_232 = arith.constant 4.000000e-01 : f32
    %334 = vector.broadcast %cst_232 : f32 to vector<16x10xf32>
    %335 = arith.mulf %333, %334 : vector<16x10xf32>
    %336 = vector.extract_strided_slice %253 {offsets = [0, 70], sizes = [16, 10], strides = [1, 1]} : vector<16x100xf32> to vector<16x10xf32>
    %cst_233 = arith.constant 6.000000e-01 : f32
    %337 = vector.broadcast %cst_233 : f32 to vector<16x10xf32>
    %338 = arith.mulf %336, %337 : vector<16x10xf32>
    %339 = arith.addf %335, %338 : vector<16x10xf32>
    %340 = vector.extract_strided_slice %253 {offsets = [0, 70], sizes = [16, 10], strides = [1, 1]} : vector<16x100xf32> to vector<16x10xf32>
    %cst_234 = arith.constant 0.933333337 : f32
    %341 = vector.broadcast %cst_234 : f32 to vector<16x10xf32>
    %342 = arith.mulf %340, %341 : vector<16x10xf32>
    %343 = vector.extract_strided_slice %253 {offsets = [0, 80], sizes = [16, 10], strides = [1, 1]} : vector<16x100xf32> to vector<16x10xf32>
    %cst_235 = arith.constant 0.0666666701 : f32
    %344 = vector.broadcast %cst_235 : f32 to vector<16x10xf32>
    %345 = arith.mulf %343, %344 : vector<16x10xf32>
    %346 = arith.addf %342, %345 : vector<16x10xf32>
    %347 = vector.extract_strided_slice %253 {offsets = [0, 70], sizes = [16, 10], strides = [1, 1]} : vector<16x100xf32> to vector<16x10xf32>
    %cst_236 = arith.constant 0.466666669 : f32
    %348 = vector.broadcast %cst_236 : f32 to vector<16x10xf32>
    %349 = arith.mulf %347, %348 : vector<16x10xf32>
    %350 = vector.extract_strided_slice %253 {offsets = [0, 80], sizes = [16, 10], strides = [1, 1]} : vector<16x100xf32> to vector<16x10xf32>
    %cst_237 = arith.constant 0.533333361 : f32
    %351 = vector.broadcast %cst_237 : f32 to vector<16x10xf32>
    %352 = arith.mulf %350, %351 : vector<16x10xf32>
    %353 = arith.addf %349, %352 : vector<16x10xf32>
    %354 = vector.extract_strided_slice %253 {offsets = [0, 80], sizes = [16, 10], strides = [1, 1]} : vector<16x100xf32> to vector<16x10xf32>
    %355 = tpu.concatenate %255, %262, %269, %276, %283, %290, %297, %304, %311, %318, %325, %332, %339, %346, %353, %354 in 0 : vector<16x10xf32>, vector<16x10xf32>, vector<16x10xf32>, vector<16x10xf32>, vector<16x10xf32>, vector<16x10xf32>, vector<16x10xf32>, vector<16x10xf32>, vector<16x10xf32>, vector<16x10xf32>, vector<16x10xf32>, vector<16x10xf32>, vector<16x10xf32>, vector<16x10xf32>, vector<16x10xf32>, vector<16x10xf32> -> vector<256x10xf32>
    %cst_238 = arith.constant dense<0.000000e+00> : vector<256x18xf32>
    %356 = tpu.matmul %355, %254, %cst_238 {dimension_numbers = #tpu.dot_dimension_numbers<[1], [0], [0], [1], [0, 0, 1, 1], [], []>} : vector<256x10xf32>, vector<10x18xf32>, vector<256x18xf32> -> vector<256x18xf32>
    %357 = vector.extract_strided_slice %356 {offsets = [0, 0], sizes = [16, 18], strides = [1, 1]} : vector<256x18xf32> to vector<16x18xf32>
    %c0_239 = arith.constant 0 : index
    %c37_240 = arith.constant 37 : index
    %358 = vector.load %arg30[%c0_239, %c37_240] : memref<16x362xf32, #tpu.memory_space<vmem>>, vector<16x18xf32>
    tpu.vector_store %arg30[%c0_239, %c37_240], %357 {strides = array<i32>} : memref<16x362xf32, #tpu.memory_space<vmem>>, vector<16x18xf32>,
    %359 = vector.extract_strided_slice %356 {offsets = [16, 0], sizes = [16, 18], strides = [1, 1]} : vector<256x18xf32> to vector<16x18xf32>
    %c0_241 = arith.constant 0 : index
    %c55 = arith.constant 55 : index
    %360 = vector.load %arg30[%c0_241, %c55] : memref<16x362xf32, #tpu.memory_space<vmem>>, vector<16x18xf32>
    tpu.vector_store %arg30[%c0_241, %c55], %359 {strides = array<i32>} : memref<16x362xf32, #tpu.memory_space<vmem>>, vector<16x18xf32>,
    %361 = vector.extract_strided_slice %356 {offsets = [32, 0], sizes = [16, 18], strides = [1, 1]} : vector<256x18xf32> to vector<16x18xf32>
    %c0_242 = arith.constant 0 : index
    %c73 = arith.constant 73 : index
    %362 = vector.load %arg30[%c0_242, %c73] : memref<16x362xf32, #tpu.memory_space<vmem>>, vector<16x18xf32>
    tpu.vector_store %arg30[%c0_242, %c73], %361 {strides = array<i32>} : memref<16x362xf32, #tpu.memory_space<vmem>>, vector<16x18xf32>,
    %363 = vector.extract_strided_slice %356 {offsets = [48, 0], sizes = [16, 18], strides = [1, 1]} : vector<256x18xf32> to vector<16x18xf32>
    %c0_243 = arith.constant 0 : index
    %c91_244 = arith.constant 91 : index
    %364 = vector.load %arg30[%c0_243, %c91_244] : memref<16x362xf32, #tpu.memory_space<vmem>>, vector<16x18xf32>
    tpu.vector_store %arg30[%c0_243, %c91_244], %363 {strides = array<i32>} : memref<16x362xf32, #tpu.memory_space<vmem>>, vector<16x18xf32>,
    %365 = vector.extract_strided_slice %356 {offsets = [64, 0], sizes = [16, 18], strides = [1, 1]} : vector<256x18xf32> to vector<16x18xf32>
    %c0_245 = arith.constant 0 : index
    %c109 = arith.constant 109 : index
    %366 = vector.load %arg30[%c0_245, %c109] : memref<16x362xf32, #tpu.memory_space<vmem>>, vector<16x18xf32>
    tpu.vector_store %arg30[%c0_245, %c109], %365 {strides = array<i32>} : memref<16x362xf32, #tpu.memory_space<vmem>>, vector<16x18xf32>,
    %367 = vector.extract_strided_slice %356 {offsets = [80, 0], sizes = [16, 18], strides = [1, 1]} : vector<256x18xf32> to vector<16x18xf32>
    %c0_246 = arith.constant 0 : index
    %c127 = arith.constant 127 : index
    %368 = vector.load %arg30[%c0_246, %c127] : memref<16x362xf32, #tpu.memory_space<vmem>>, vector<16x18xf32>
    tpu.vector_store %arg30[%c0_246, %c127], %367 {strides = array<i32>} : memref<16x362xf32, #tpu.memory_space<vmem>>, vector<16x18xf32>,
    %369 = vector.extract_strided_slice %356 {offsets = [96, 0], sizes = [16, 18], strides = [1, 1]} : vector<256x18xf32> to vector<16x18xf32>
    %c0_247 = arith.constant 0 : index
    %c145 = arith.constant 145 : index
    %370 = vector.load %arg30[%c0_247, %c145] : memref<16x362xf32, #tpu.memory_space<vmem>>, vector<16x18xf32>
    tpu.vector_store %arg30[%c0_247, %c145], %369 {strides = array<i32>} : memref<16x362xf32, #tpu.memory_space<vmem>>, vector<16x18xf32>,
    %371 = vector.extract_strided_slice %356 {offsets = [112, 0], sizes = [16, 18], strides = [1, 1]} : vector<256x18xf32> to vector<16x18xf32>
    %c0_248 = arith.constant 0 : index
    %c163 = arith.constant 163 : index
    %372 = vector.load %arg30[%c0_248, %c163] : memref<16x362xf32, #tpu.memory_space<vmem>>, vector<16x18xf32>
    tpu.vector_store %arg30[%c0_248, %c163], %371 {strides = array<i32>} : memref<16x362xf32, #tpu.memory_space<vmem>>, vector<16x18xf32>,
    %373 = vector.extract_strided_slice %356 {offsets = [128, 0], sizes = [16, 18], strides = [1, 1]} : vector<256x18xf32> to vector<16x18xf32>
    %c0_249 = arith.constant 0 : index
    %c181 = arith.constant 181 : index
    %374 = vector.load %arg30[%c0_249, %c181] : memref<16x362xf32, #tpu.memory_space<vmem>>, vector<16x18xf32>
    tpu.vector_store %arg30[%c0_249, %c181], %373 {strides = array<i32>} : memref<16x362xf32, #tpu.memory_space<vmem>>, vector<16x18xf32>,
    %375 = vector.extract_strided_slice %356 {offsets = [144, 0], sizes = [16, 18], strides = [1, 1]} : vector<256x18xf32> to vector<16x18xf32>
    %c0_250 = arith.constant 0 : index
    %c199 = arith.constant 199 : index
    %376 = vector.load %arg30[%c0_250, %c199] : memref<16x362xf32, #tpu.memory_space<vmem>>, vector<16x18xf32>
    tpu.vector_store %arg30[%c0_250, %c199], %375 {strides = array<i32>} : memref<16x362xf32, #tpu.memory_space<vmem>>, vector<16x18xf32>,
    %377 = vector.extract_strided_slice %356 {offsets = [160, 0], sizes = [16, 18], strides = [1, 1]} : vector<256x18xf32> to vector<16x18xf32>
    %c0_251 = arith.constant 0 : index
    %c217 = arith.constant 217 : index
    %378 = vector.load %arg30[%c0_251, %c217] : memref<16x362xf32, #tpu.memory_space<vmem>>, vector<16x18xf32>
    tpu.vector_store %arg30[%c0_251, %c217], %377 {strides = array<i32>} : memref<16x362xf32, #tpu.memory_space<vmem>>, vector<16x18xf32>,
    %379 = vector.extract_strided_slice %356 {offsets = [176, 0], sizes = [16, 18], strides = [1, 1]} : vector<256x18xf32> to vector<16x18xf32>
    %c0_252 = arith.constant 0 : index
    %c235 = arith.constant 235 : index
    %380 = vector.load %arg30[%c0_252, %c235] : memref<16x362xf32, #tpu.memory_space<vmem>>, vector<16x18xf32>
    tpu.vector_store %arg30[%c0_252, %c235], %379 {strides = array<i32>} : memref<16x362xf32, #tpu.memory_space<vmem>>, vector<16x18xf32>,
    %381 = vector.extract_strided_slice %356 {offsets = [192, 0], sizes = [16, 18], strides = [1, 1]} : vector<256x18xf32> to vector<16x18xf32>
    %c0_253 = arith.constant 0 : index
    %c253 = arith.constant 253 : index
    %382 = vector.load %arg30[%c0_253, %c253] : memref<16x362xf32, #tpu.memory_space<vmem>>, vector<16x18xf32>
    tpu.vector_store %arg30[%c0_253, %c253], %381 {strides = array<i32>} : memref<16x362xf32, #tpu.memory_space<vmem>>, vector<16x18xf32>,
    %383 = vector.extract_strided_slice %356 {offsets = [208, 0], sizes = [16, 18], strides = [1, 1]} : vector<256x18xf32> to vector<16x18xf32>
    %c0_254 = arith.constant 0 : index
    %c271 = arith.constant 271 : index
    %384 = vector.load %arg30[%c0_254, %c271] : memref<16x362xf32, #tpu.memory_space<vmem>>, vector<16x18xf32>
    tpu.vector_store %arg30[%c0_254, %c271], %383 {strides = array<i32>} : memref<16x362xf32, #tpu.memory_space<vmem>>, vector<16x18xf32>,
    %385 = vector.extract_strided_slice %356 {offsets = [224, 0], sizes = [16, 18], strides = [1, 1]} : vector<256x18xf32> to vector<16x18xf32>
    %c0_255 = arith.constant 0 : index
    %c289 = arith.constant 289 : index
    %386 = vector.load %arg30[%c0_255, %c289] : memref<16x362xf32, #tpu.memory_space<vmem>>, vector<16x18xf32>
    tpu.vector_store %arg30[%c0_255, %c289], %385 {strides = array<i32>} : memref<16x362xf32, #tpu.memory_space<vmem>>, vector<16x18xf32>,
    %387 = vector.extract_strided_slice %356 {offsets = [240, 0], sizes = [16, 18], strides = [1, 1]} : vector<256x18xf32> to vector<16x18xf32>
    %c0_256 = arith.constant 0 : index
    %c307 = arith.constant 307 : index
    %388 = vector.load %arg30[%c0_256, %c307] : memref<16x362xf32, #tpu.memory_space<vmem>>, vector<16x18xf32>
    tpu.vector_store %arg30[%c0_256, %c307], %387 {strides = array<i32>} : memref<16x362xf32, #tpu.memory_space<vmem>>, vector<16x18xf32>,
    %c0_257 = arith.constant 0 : index
    %c0_258 = arith.constant 0 : index
    %389 = vector.load %arg30[%c0_257, %c0_258] : memref<16x362xf32, #tpu.memory_space<vmem>>, vector<16x324xf32>
    %c0_259 = arith.constant 0 : index
    %c1_260 = arith.constant 1 : index
    %390 = vector.load %arg30[%c0_259, %c1_260] : memref<16x362xf32, #tpu.memory_space<vmem>>, vector<16x324xf32>
    %c0_261 = arith.constant 0 : index
    %c2_262 = arith.constant 2 : index
    %391 = vector.load %arg30[%c0_261, %c2_262] : memref<16x362xf32, #tpu.memory_space<vmem>>, vector<16x324xf32>
    %c0_263 = arith.constant 0 : index
    %c18_264 = arith.constant 18 : index
    %392 = vector.load %arg30[%c0_263, %c18_264] : memref<16x362xf32, #tpu.memory_space<vmem>>, vector<16x324xf32>
    %c0_265 = arith.constant 0 : index
    %c19_266 = arith.constant 19 : index
    %393 = vector.load %arg30[%c0_265, %c19_266] : memref<16x362xf32, #tpu.memory_space<vmem>>, vector<16x324xf32>
    %c0_267 = arith.constant 0 : index
    %c20_268 = arith.constant 20 : index
    %394 = vector.load %arg30[%c0_267, %c20_268] : memref<16x362xf32, #tpu.memory_space<vmem>>, vector<16x324xf32>
    %c0_269 = arith.constant 0 : index
    %c36_270 = arith.constant 36 : index
    %395 = vector.load %arg30[%c0_269, %c36_270] : memref<16x362xf32, #tpu.memory_space<vmem>>, vector<16x324xf32>
    %c0_271 = arith.constant 0 : index
    %c37_272 = arith.constant 37 : index
    %396 = vector.load %arg30[%c0_271, %c37_272] : memref<16x362xf32, #tpu.memory_space<vmem>>, vector<16x324xf32>
    %c0_273 = arith.constant 0 : index
    %c38_274 = arith.constant 38 : index
    %397 = vector.load %arg30[%c0_273, %c38_274] : memref<16x362xf32, #tpu.memory_space<vmem>>, vector<16x324xf32>
    %398 = tpu.concatenate %389, %390, %391, %392, %393, %394, %395, %396, %397 in 0 : vector<16x324xf32>, vector<16x324xf32>, vector<16x324xf32>, vector<16x324xf32>, vector<16x324xf32>, vector<16x324xf32>, vector<16x324xf32>, vector<16x324xf32>, vector<16x324xf32> -> vector<144x324xf32>
    %c0_275 = arith.constant 0 : index
    %c0_276 = arith.constant 0 : index
    %399 = vector.load %arg16[%c0_275, %c0_276] : memref<8x144xf32, #tpu.memory_space<vmem>>, vector<8x144xf32>
    %cst_277 = arith.constant dense<0.000000e+00> : vector<8x324xf32>
    %400 = tpu.matmul %399, %398, %cst_277 {dimension_numbers = #tpu.dot_dimension_numbers<[1], [0], [0], [1], [0, 0, 1, 1], [], []>} : vector<8x144xf32>, vector<144x324xf32>, vector<8x324xf32> -> vector<8x324xf32>
    %c0_278 = arith.constant 0 : index
    %c0_279 = arith.constant 0 : index
    %401 = vector.load %arg17[%c0_278, %c0_279] : memref<8x1xf32, #tpu.memory_space<vmem>>, vector<8x1xf32>
    %402 = vector.broadcast %401 : vector<8x1xf32> to vector<8x324xf32>
    %403 = arith.mulf %400, %402 : vector<8x324xf32>
    %c0_280 = arith.constant 0 : index
    %c0_281 = arith.constant 0 : index
    %404 = vector.load %arg18[%c0_280, %c0_281] : memref<8x1xf32, #tpu.memory_space<vmem>>, vector<8x1xf32>
    %405 = vector.broadcast %404 : vector<8x1xf32> to vector<8x324xf32>
    %406 = arith.addf %403, %405 : vector<8x324xf32>
    %cst_282 = arith.constant 0.000000e+00 : f32
    %407 = vector.broadcast %cst_282 : f32 to vector<8x324xf32>
    %408 = arith.maximumf %406, %407 : vector<8x324xf32>
    %409 = vector.broadcast %80 : vector<1x324xf32> to vector<8x324xf32>
    %410 = arith.mulf %408, %409 : vector<8x324xf32>
    %c0_283 = arith.constant 0 : index
    %c19_284 = arith.constant 19 : index
    %411 = vector.load %arg27[%c0_283, %c19_284] : memref<8x362xf32, #tpu.memory_space<vmem>>, vector<8x324xf32>
    %412 = arith.addf %410, %411 : vector<8x324xf32>
    %c0_285 = arith.constant 0 : index
    %c19_286 = arith.constant 19 : index
    %413 = vector.load %arg31[%c0_285, %c19_286] : memref<8x362xf32, #tpu.memory_space<vmem>>, vector<8x324xf32>
    tpu.vector_store %arg31[%c0_285, %c19_286], %412 {strides = array<i32>} : memref<8x362xf32, #tpu.memory_space<vmem>>, vector<8x324xf32>,
    %c0_287 = arith.constant 0 : index
    %c0_288 = arith.constant 0 : index
    %414 = vector.load %arg31[%c0_287, %c0_288] : memref<8x362xf32, #tpu.memory_space<vmem>>, vector<8x324xf32>
    %c0_289 = arith.constant 0 : index
    %c1_290 = arith.constant 1 : index
    %415 = vector.load %arg31[%c0_289, %c1_290] : memref<8x362xf32, #tpu.memory_space<vmem>>, vector<8x324xf32>
    %c0_291 = arith.constant 0 : index
    %c2_292 = arith.constant 2 : index
    %416 = vector.load %arg31[%c0_291, %c2_292] : memref<8x362xf32, #tpu.memory_space<vmem>>, vector<8x324xf32>
    %c0_293 = arith.constant 0 : index
    %c18_294 = arith.constant 18 : index
    %417 = vector.load %arg31[%c0_293, %c18_294] : memref<8x362xf32, #tpu.memory_space<vmem>>, vector<8x324xf32>
    %c0_295 = arith.constant 0 : index
    %c19_296 = arith.constant 19 : index
    %418 = vector.load %arg31[%c0_295, %c19_296] : memref<8x362xf32, #tpu.memory_space<vmem>>, vector<8x324xf32>
    %c0_297 = arith.constant 0 : index
    %c20_298 = arith.constant 20 : index
    %419 = vector.load %arg31[%c0_297, %c20_298] : memref<8x362xf32, #tpu.memory_space<vmem>>, vector<8x324xf32>
    %c0_299 = arith.constant 0 : index
    %c36_300 = arith.constant 36 : index
    %420 = vector.load %arg31[%c0_299, %c36_300] : memref<8x362xf32, #tpu.memory_space<vmem>>, vector<8x324xf32>
    %c0_301 = arith.constant 0 : index
    %c37_302 = arith.constant 37 : index
    %421 = vector.load %arg31[%c0_301, %c37_302] : memref<8x362xf32, #tpu.memory_space<vmem>>, vector<8x324xf32>
    %c0_303 = arith.constant 0 : index
    %c38_304 = arith.constant 38 : index
    %422 = vector.load %arg31[%c0_303, %c38_304] : memref<8x362xf32, #tpu.memory_space<vmem>>, vector<8x324xf32>
    %423 = tpu.concatenate %414, %415, %416, %417, %418, %419, %420, %421, %422 in 0 : vector<8x324xf32>, vector<8x324xf32>, vector<8x324xf32>, vector<8x324xf32>, vector<8x324xf32>, vector<8x324xf32>, vector<8x324xf32>, vector<8x324xf32>, vector<8x324xf32> -> vector<72x324xf32>
    %c0_305 = arith.constant 0 : index
    %c0_306 = arith.constant 0 : index
    %424 = vector.load %arg19[%c0_305, %c0_306] : memref<4x72xf32, #tpu.memory_space<vmem>>, vector<4x72xf32>
    %cst_307 = arith.constant dense<0.000000e+00> : vector<4x324xf32>
    %425 = tpu.matmul %424, %423, %cst_307 {dimension_numbers = #tpu.dot_dimension_numbers<[1], [0], [0], [1], [0, 0, 1, 1], [], []>} : vector<4x72xf32>, vector<72x324xf32>, vector<4x324xf32> -> vector<4x324xf32>
    %c0_308 = arith.constant 0 : index
    %c0_309 = arith.constant 0 : index
    %426 = vector.load %arg20[%c0_308, %c0_309] : memref<4x1xf32, #tpu.memory_space<vmem>>, vector<4x1xf32>
    %427 = vector.broadcast %426 : vector<4x1xf32> to vector<4x324xf32>
    %428 = arith.mulf %425, %427 : vector<4x324xf32>
    %c0_310 = arith.constant 0 : index
    %c0_311 = arith.constant 0 : index
    %429 = vector.load %arg21[%c0_310, %c0_311] : memref<4x1xf32, #tpu.memory_space<vmem>>, vector<4x1xf32>
    %430 = vector.broadcast %429 : vector<4x1xf32> to vector<4x324xf32>
    %431 = arith.addf %428, %430 : vector<4x324xf32>
    %cst_312 = arith.constant 0.000000e+00 : f32
    %432 = vector.broadcast %cst_312 : f32 to vector<4x324xf32>
    %433 = arith.maximumf %431, %432 : vector<4x324xf32>
    %434 = vector.extract_strided_slice %433 {offsets = [0, 19], sizes = [4, 16], strides = [1, 1]} : vector<4x324xf32> to vector<4x16xf32>
    %c0_313 = arith.constant 0 : index
    %c0_314 = arith.constant 0 : index
    %c0_315 = arith.constant 0 : index
    %435 = vector.load %arg25[%c0_313, %c0_314, %c0_315] : memref<1x4x256xf32, #tpu.memory_space<vmem>>, vector<1x4x16xf32>
    %436 = vector.shape_cast %435 : vector<1x4x16xf32> to vector<4x16xf32>
    %437 = vector.shape_cast %434 : vector<4x16xf32> to vector<1x4x16xf32>
    tpu.vector_store %arg25[%c0_313, %c0_314, %c0_315], %437 {strides = array<i32>} : memref<1x4x256xf32, #tpu.memory_space<vmem>>, vector<1x4x16xf32>,
    %438 = vector.extract_strided_slice %433 {offsets = [0, 37], sizes = [4, 16], strides = [1, 1]} : vector<4x324xf32> to vector<4x16xf32>
    %c0_316 = arith.constant 0 : index
    %c0_317 = arith.constant 0 : index
    %c16 = arith.constant 16 : index
    %439 = vector.load %arg25[%c0_316, %c0_317, %c16] : memref<1x4x256xf32, #tpu.memory_space<vmem>>, vector<1x4x16xf32>
    %440 = vector.shape_cast %439 : vector<1x4x16xf32> to vector<4x16xf32>
    %441 = vector.shape_cast %438 : vector<4x16xf32> to vector<1x4x16xf32>
    tpu.vector_store %arg25[%c0_316, %c0_317, %c16], %441 {strides = array<i32>} : memref<1x4x256xf32, #tpu.memory_space<vmem>>, vector<1x4x16xf32>,
    %442 = vector.extract_strided_slice %433 {offsets = [0, 55], sizes = [4, 16], strides = [1, 1]} : vector<4x324xf32> to vector<4x16xf32>
    %c0_318 = arith.constant 0 : index
    %c0_319 = arith.constant 0 : index
    %c32 = arith.constant 32 : index
    %443 = vector.load %arg25[%c0_318, %c0_319, %c32] : memref<1x4x256xf32, #tpu.memory_space<vmem>>, vector<1x4x16xf32>
    %444 = vector.shape_cast %443 : vector<1x4x16xf32> to vector<4x16xf32>
    %445 = vector.shape_cast %442 : vector<4x16xf32> to vector<1x4x16xf32>
    tpu.vector_store %arg25[%c0_318, %c0_319, %c32], %445 {strides = array<i32>} : memref<1x4x256xf32, #tpu.memory_space<vmem>>, vector<1x4x16xf32>,
    %446 = vector.extract_strided_slice %433 {offsets = [0, 73], sizes = [4, 16], strides = [1, 1]} : vector<4x324xf32> to vector<4x16xf32>
    %c0_320 = arith.constant 0 : index
    %c0_321 = arith.constant 0 : index
    %c48 = arith.constant 48 : index
    %447 = vector.load %arg25[%c0_320, %c0_321, %c48] : memref<1x4x256xf32, #tpu.memory_space<vmem>>, vector<1x4x16xf32>
    %448 = vector.shape_cast %447 : vector<1x4x16xf32> to vector<4x16xf32>
    %449 = vector.shape_cast %446 : vector<4x16xf32> to vector<1x4x16xf32>
    tpu.vector_store %arg25[%c0_320, %c0_321, %c48], %449 {strides = array<i32>} : memref<1x4x256xf32, #tpu.memory_space<vmem>>, vector<1x4x16xf32>,
    %450 = vector.extract_strided_slice %433 {offsets = [0, 91], sizes = [4, 16], strides = [1, 1]} : vector<4x324xf32> to vector<4x16xf32>
    %c0_322 = arith.constant 0 : index
    %c0_323 = arith.constant 0 : index
    %c64 = arith.constant 64 : index
    %451 = vector.load %arg25[%c0_322, %c0_323, %c64] : memref<1x4x256xf32, #tpu.memory_space<vmem>>, vector<1x4x16xf32>
    %452 = vector.shape_cast %451 : vector<1x4x16xf32> to vector<4x16xf32>
    %453 = vector.shape_cast %450 : vector<4x16xf32> to vector<1x4x16xf32>
    tpu.vector_store %arg25[%c0_322, %c0_323, %c64], %453 {strides = array<i32>} : memref<1x4x256xf32, #tpu.memory_space<vmem>>, vector<1x4x16xf32>,
    %454 = vector.extract_strided_slice %433 {offsets = [0, 109], sizes = [4, 16], strides = [1, 1]} : vector<4x324xf32> to vector<4x16xf32>
    %c0_324 = arith.constant 0 : index
    %c0_325 = arith.constant 0 : index
    %c80 = arith.constant 80 : index
    %455 = vector.load %arg25[%c0_324, %c0_325, %c80] : memref<1x4x256xf32, #tpu.memory_space<vmem>>, vector<1x4x16xf32>
    %456 = vector.shape_cast %455 : vector<1x4x16xf32> to vector<4x16xf32>
    %457 = vector.shape_cast %454 : vector<4x16xf32> to vector<1x4x16xf32>
    tpu.vector_store %arg25[%c0_324, %c0_325, %c80], %457 {strides = array<i32>} : memref<1x4x256xf32, #tpu.memory_space<vmem>>, vector<1x4x16xf32>,
    %458 = vector.extract_strided_slice %433 {offsets = [0, 127], sizes = [4, 16], strides = [1, 1]} : vector<4x324xf32> to vector<4x16xf32>
    %c0_326 = arith.constant 0 : index
    %c0_327 = arith.constant 0 : index
    %c96 = arith.constant 96 : index
    %459 = vector.load %arg25[%c0_326, %c0_327, %c96] : memref<1x4x256xf32, #tpu.memory_space<vmem>>, vector<1x4x16xf32>
    %460 = vector.shape_cast %459 : vector<1x4x16xf32> to vector<4x16xf32>
    %461 = vector.shape_cast %458 : vector<4x16xf32> to vector<1x4x16xf32>
    tpu.vector_store %arg25[%c0_326, %c0_327, %c96], %461 {strides = array<i32>} : memref<1x4x256xf32, #tpu.memory_space<vmem>>, vector<1x4x16xf32>,
    %462 = vector.extract_strided_slice %433 {offsets = [0, 145], sizes = [4, 16], strides = [1, 1]} : vector<4x324xf32> to vector<4x16xf32>
    %c0_328 = arith.constant 0 : index
    %c0_329 = arith.constant 0 : index
    %c112 = arith.constant 112 : index
    %463 = vector.load %arg25[%c0_328, %c0_329, %c112] : memref<1x4x256xf32, #tpu.memory_space<vmem>>, vector<1x4x16xf32>
    %464 = vector.shape_cast %463 : vector<1x4x16xf32> to vector<4x16xf32>
    %465 = vector.shape_cast %462 : vector<4x16xf32> to vector<1x4x16xf32>
    tpu.vector_store %arg25[%c0_328, %c0_329, %c112], %465 {strides = array<i32>} : memref<1x4x256xf32, #tpu.memory_space<vmem>>, vector<1x4x16xf32>,
    %466 = vector.extract_strided_slice %433 {offsets = [0, 163], sizes = [4, 16], strides = [1, 1]} : vector<4x324xf32> to vector<4x16xf32>
    %c0_330 = arith.constant 0 : index
    %c0_331 = arith.constant 0 : index
    %c128_332 = arith.constant 128 : index
    %467 = vector.load %arg25[%c0_330, %c0_331, %c128_332] : memref<1x4x256xf32, #tpu.memory_space<vmem>>, vector<1x4x16xf32>
    %468 = vector.shape_cast %467 : vector<1x4x16xf32> to vector<4x16xf32>
    %469 = vector.shape_cast %466 : vector<4x16xf32> to vector<1x4x16xf32>
    tpu.vector_store %arg25[%c0_330, %c0_331, %c128_332], %469 {strides = array<i32>} : memref<1x4x256xf32, #tpu.memory_space<vmem>>, vector<1x4x16xf32>,
    %470 = vector.extract_strided_slice %433 {offsets = [0, 181], sizes = [4, 16], strides = [1, 1]} : vector<4x324xf32> to vector<4x16xf32>
    %c0_333 = arith.constant 0 : index
    %c0_334 = arith.constant 0 : index
    %c144 = arith.constant 144 : index
    %471 = vector.load %arg25[%c0_333, %c0_334, %c144] : memref<1x4x256xf32, #tpu.memory_space<vmem>>, vector<1x4x16xf32>
    %472 = vector.shape_cast %471 : vector<1x4x16xf32> to vector<4x16xf32>
    %473 = vector.shape_cast %470 : vector<4x16xf32> to vector<1x4x16xf32>
    tpu.vector_store %arg25[%c0_333, %c0_334, %c144], %473 {strides = array<i32>} : memref<1x4x256xf32, #tpu.memory_space<vmem>>, vector<1x4x16xf32>,
    %474 = vector.extract_strided_slice %433 {offsets = [0, 199], sizes = [4, 16], strides = [1, 1]} : vector<4x324xf32> to vector<4x16xf32>
    %c0_335 = arith.constant 0 : index
    %c0_336 = arith.constant 0 : index
    %c160 = arith.constant 160 : index
    %475 = vector.load %arg25[%c0_335, %c0_336, %c160] : memref<1x4x256xf32, #tpu.memory_space<vmem>>, vector<1x4x16xf32>
    %476 = vector.shape_cast %475 : vector<1x4x16xf32> to vector<4x16xf32>
    %477 = vector.shape_cast %474 : vector<4x16xf32> to vector<1x4x16xf32>
    tpu.vector_store %arg25[%c0_335, %c0_336, %c160], %477 {strides = array<i32>} : memref<1x4x256xf32, #tpu.memory_space<vmem>>, vector<1x4x16xf32>,
    %478 = vector.extract_strided_slice %433 {offsets = [0, 217], sizes = [4, 16], strides = [1, 1]} : vector<4x324xf32> to vector<4x16xf32>
    %c0_337 = arith.constant 0 : index
    %c0_338 = arith.constant 0 : index
    %c176 = arith.constant 176 : index
    %479 = vector.load %arg25[%c0_337, %c0_338, %c176] : memref<1x4x256xf32, #tpu.memory_space<vmem>>, vector<1x4x16xf32>
    %480 = vector.shape_cast %479 : vector<1x4x16xf32> to vector<4x16xf32>
    %481 = vector.shape_cast %478 : vector<4x16xf32> to vector<1x4x16xf32>
    tpu.vector_store %arg25[%c0_337, %c0_338, %c176], %481 {strides = array<i32>} : memref<1x4x256xf32, #tpu.memory_space<vmem>>, vector<1x4x16xf32>,
    %482 = vector.extract_strided_slice %433 {offsets = [0, 235], sizes = [4, 16], strides = [1, 1]} : vector<4x324xf32> to vector<4x16xf32>
    %c0_339 = arith.constant 0 : index
    %c0_340 = arith.constant 0 : index
    %c192 = arith.constant 192 : index
    %483 = vector.load %arg25[%c0_339, %c0_340, %c192] : memref<1x4x256xf32, #tpu.memory_space<vmem>>, vector<1x4x16xf32>
    %484 = vector.shape_cast %483 : vector<1x4x16xf32> to vector<4x16xf32>
    %485 = vector.shape_cast %482 : vector<4x16xf32> to vector<1x4x16xf32>
    tpu.vector_store %arg25[%c0_339, %c0_340, %c192], %485 {strides = array<i32>} : memref<1x4x256xf32, #tpu.memory_space<vmem>>, vector<1x4x16xf32>,
    %486 = vector.extract_strided_slice %433 {offsets = [0, 253], sizes = [4, 16], strides = [1, 1]} : vector<4x324xf32> to vector<4x16xf32>
    %c0_341 = arith.constant 0 : index
    %c0_342 = arith.constant 0 : index
    %c208 = arith.constant 208 : index
    %487 = vector.load %arg25[%c0_341, %c0_342, %c208] : memref<1x4x256xf32, #tpu.memory_space<vmem>>, vector<1x4x16xf32>
    %488 = vector.shape_cast %487 : vector<1x4x16xf32> to vector<4x16xf32>
    %489 = vector.shape_cast %486 : vector<4x16xf32> to vector<1x4x16xf32>
    tpu.vector_store %arg25[%c0_341, %c0_342, %c208], %489 {strides = array<i32>} : memref<1x4x256xf32, #tpu.memory_space<vmem>>, vector<1x4x16xf32>,
    %490 = vector.extract_strided_slice %433 {offsets = [0, 271], sizes = [4, 16], strides = [1, 1]} : vector<4x324xf32> to vector<4x16xf32>
    %c0_343 = arith.constant 0 : index
    %c0_344 = arith.constant 0 : index
    %c224 = arith.constant 224 : index
    %491 = vector.load %arg25[%c0_343, %c0_344, %c224] : memref<1x4x256xf32, #tpu.memory_space<vmem>>, vector<1x4x16xf32>
    %492 = vector.shape_cast %491 : vector<1x4x16xf32> to vector<4x16xf32>
    %493 = vector.shape_cast %490 : vector<4x16xf32> to vector<1x4x16xf32>
    tpu.vector_store %arg25[%c0_343, %c0_344, %c224], %493 {strides = array<i32>} : memref<1x4x256xf32, #tpu.memory_space<vmem>>, vector<1x4x16xf32>,
    %494 = vector.extract_strided_slice %433 {offsets = [0, 289], sizes = [4, 16], strides = [1, 1]} : vector<4x324xf32> to vector<4x16xf32>
    %c0_345 = arith.constant 0 : index
    %c0_346 = arith.constant 0 : index
    %c240 = arith.constant 240 : index
    %495 = vector.load %arg25[%c0_345, %c0_346, %c240] : memref<1x4x256xf32, #tpu.memory_space<vmem>>, vector<1x4x16xf32>
    %496 = vector.shape_cast %495 : vector<1x4x16xf32> to vector<4x16xf32>
    %497 = vector.shape_cast %494 : vector<4x16xf32> to vector<1x4x16xf32>
    tpu.vector_store %arg25[%c0_345, %c0_346, %c240], %497 {strides = array<i32>} : memref<1x4x256xf32, #tpu.memory_space<vmem>>, vector<1x4x16xf32>,
    return
  }
  func.func @transform_0(%arg0: i32) -> (i32, i32, i32) {
    %c0_i32 = arith.constant 0 : i32
    %c0_i32_0 = arith.constant 0 : i32
    %c0_i32_1 = arith.constant 0 : i32
    return %arg0, %c0_i32, %c0_i32_0 : i32, i32, i32
  }
  func.func @transform_1(%arg0: i32) -> (i32, i32, i32) {
    %c0_i32 = arith.constant 0 : i32
    %c0_i32_0 = arith.constant 0 : i32
    %c0_i32_1 = arith.constant 0 : i32
    return %arg0, %c0_i32, %c0_i32_0 : i32, i32, i32
  }
  func.func @transform_2(%arg0: i32) -> (i32, i32) {
    %c0_i32 = arith.constant 0 : i32
    %c0_i32_0 = arith.constant 0 : i32
    %c0_i32_1 = arith.constant 0 : i32
    return %c0_i32, %c0_i32_0 : i32, i32
  }
  func.func @transform_3(%arg0: i32) -> (i32, i32) {
    %c0_i32 = arith.constant 0 : i32
    %c0_i32_0 = arith.constant 0 : i32
    %c0_i32_1 = arith.constant 0 : i32
    return %c0_i32, %c0_i32_0 : i32, i32
  }
  func.func @transform_4(%arg0: i32) -> (i32, i32) {
    %c0_i32 = arith.constant 0 : i32
    %c0_i32_0 = arith.constant 0 : i32
    %c0_i32_1 = arith.constant 0 : i32
    return %c0_i32, %c0_i32_0 : i32, i32
  }
  func.func @transform_5(%arg0: i32) -> (i32, i32) {
    %c0_i32 = arith.constant 0 : i32
    %c0_i32_0 = arith.constant 0 : i32
    %c0_i32_1 = arith.constant 0 : i32
    return %c0_i32, %c0_i32_0 : i32, i32
  }
  func.func @transform_6(%arg0: i32) -> (i32, i32) {
    %c0_i32 = arith.constant 0 : i32
    %c0_i32_0 = arith.constant 0 : i32
    %c0_i32_1 = arith.constant 0 : i32
    return %c0_i32, %c0_i32_0 : i32, i32
  }
  func.func @transform_7(%arg0: i32) -> (i32, i32) {
    %c0_i32 = arith.constant 0 : i32
    %c0_i32_0 = arith.constant 0 : i32
    %c0_i32_1 = arith.constant 0 : i32
    return %c0_i32, %c0_i32_0 : i32, i32
  }
  func.func @transform_8(%arg0: i32) -> (i32, i32) {
    %c0_i32 = arith.constant 0 : i32
    %c0_i32_0 = arith.constant 0 : i32
    %c0_i32_1 = arith.constant 0 : i32
    return %c0_i32, %c0_i32_0 : i32, i32
  }
  func.func @transform_9(%arg0: i32) -> (i32, i32) {
    %c0_i32 = arith.constant 0 : i32
    %c0_i32_0 = arith.constant 0 : i32
    %c0_i32_1 = arith.constant 0 : i32
    return %c0_i32, %c0_i32_0 : i32, i32
  }
  func.func @transform_10(%arg0: i32) -> (i32, i32) {
    %c0_i32 = arith.constant 0 : i32
    %c0_i32_0 = arith.constant 0 : i32
    %c0_i32_1 = arith.constant 0 : i32
    return %c0_i32, %c0_i32_0 : i32, i32
  }
  func.func @transform_11(%arg0: i32) -> (i32, i32) {
    %c0_i32 = arith.constant 0 : i32
    %c0_i32_0 = arith.constant 0 : i32
    %c0_i32_1 = arith.constant 0 : i32
    return %c0_i32, %c0_i32_0 : i32, i32
  }
  func.func @transform_12(%arg0: i32) -> (i32, i32) {
    %c0_i32 = arith.constant 0 : i32
    %c0_i32_0 = arith.constant 0 : i32
    %c0_i32_1 = arith.constant 0 : i32
    return %c0_i32, %c0_i32_0 : i32, i32
  }
  func.func @transform_13(%arg0: i32) -> (i32, i32) {
    %c0_i32 = arith.constant 0 : i32
    %c0_i32_0 = arith.constant 0 : i32
    %c0_i32_1 = arith.constant 0 : i32
    return %c0_i32, %c0_i32_0 : i32, i32
  }
  func.func @transform_14(%arg0: i32) -> (i32, i32) {
    %c0_i32 = arith.constant 0 : i32
    %c0_i32_0 = arith.constant 0 : i32
    %c0_i32_1 = arith.constant 0 : i32
    return %c0_i32, %c0_i32_0 : i32, i32
  }
  func.func @transform_15(%arg0: i32) -> (i32, i32) {
    %c0_i32 = arith.constant 0 : i32
    %c0_i32_0 = arith.constant 0 : i32
    %c0_i32_1 = arith.constant 0 : i32
    return %c0_i32, %c0_i32_0 : i32, i32
  }
  func.func @transform_16(%arg0: i32) -> (i32, i32) {
    %c0_i32 = arith.constant 0 : i32
    %c0_i32_0 = arith.constant 0 : i32
    %c0_i32_1 = arith.constant 0 : i32
    return %c0_i32, %c0_i32_0 : i32, i32
  }
  func.func @transform_17(%arg0: i32) -> (i32, i32) {
    %c0_i32 = arith.constant 0 : i32
    %c0_i32_0 = arith.constant 0 : i32
    %c0_i32_1 = arith.constant 0 : i32
    return %c0_i32, %c0_i32_0 : i32, i32
  }
  func.func @transform_18(%arg0: i32) -> (i32, i32) {
    %c0_i32 = arith.constant 0 : i32
    %c0_i32_0 = arith.constant 0 : i32
    %c0_i32_1 = arith.constant 0 : i32
    return %c0_i32, %c0_i32_0 : i32, i32
  }
  func.func @transform_19(%arg0: i32) -> (i32, i32) {
    %c0_i32 = arith.constant 0 : i32
    %c0_i32_0 = arith.constant 0 : i32
    %c0_i32_1 = arith.constant 0 : i32
    return %c0_i32, %c0_i32_0 : i32, i32
  }
  func.func @transform_20(%arg0: i32) -> (i32, i32) {
    %c0_i32 = arith.constant 0 : i32
    %c0_i32_0 = arith.constant 0 : i32
    %c0_i32_1 = arith.constant 0 : i32
    return %c0_i32, %c0_i32_0 : i32, i32
  }
  func.func @transform_21(%arg0: i32) -> (i32, i32) {
    %c0_i32 = arith.constant 0 : i32
    %c0_i32_0 = arith.constant 0 : i32
    %c0_i32_1 = arith.constant 0 : i32
    return %c0_i32, %c0_i32_0 : i32, i32
  }
  func.func @transform_22(%arg0: i32) -> (i32, i32) {
    %c0_i32 = arith.constant 0 : i32
    %c0_i32_0 = arith.constant 0 : i32
    %c0_i32_1 = arith.constant 0 : i32
    return %c0_i32, %c0_i32_0 : i32, i32
  }
  func.func @transform_23(%arg0: i32) -> (i32, i32) {
    %c0_i32 = arith.constant 0 : i32
    %c0_i32_0 = arith.constant 0 : i32
    %c0_i32_1 = arith.constant 0 : i32
    return %c0_i32, %c0_i32_0 : i32, i32
  }
  func.func @transform_24(%arg0: i32) -> (i32, i32, i32) {
    %c0_i32 = arith.constant 0 : i32
    %c0_i32_0 = arith.constant 0 : i32
    %c0_i32_1 = arith.constant 0 : i32
    return %arg0, %c0_i32, %c0_i32_0 : i32, i32, i32
  }
}

</mosaic_0001>

<llo_original>
// kernel: tpu_custom_call.1
$region0: #{tpu_custom_call.1}
  #allocation0 [shape = 'u32[]', space=smem, size = 0x4, offset = 0x4, fixed_abs, tag = 'smem constant byte address 0x4 - core index']
  #allocation1 [shape = 'u32[144,128]{1,0:T(1,128)}', space=vmem, size = 0x12000, scoped, tag = 'internal scratch']
  #allocation2 [shape = 'f32[8,362]{1,0:T(8,128)}', space=vmem, size = 0x3000, scoped, tag = 'scratch operand']
  #allocation3 [shape = 'f32[8,362]{1,0:T(8,128)}', space=vmem, size = 0x3000, scoped, tag = 'scratch operand']
  #allocation4 [shape = 'f32[16,122]{1,0:T(8,128)}', space=vmem, size = 0x2000, scoped, tag = 'scratch operand']
  #allocation5 [shape = 'f32[32,122]{1,0:T(8,128)}', space=vmem, size = 0x4000, scoped, tag = 'scratch operand']
  #allocation6 [shape = 'f32[16,362]{1,0:T(8,128)}', space=vmem, size = 0x6000, scoped, tag = 'scratch operand']
  #allocation7 [shape = 'f32[8,362]{1,0:T(8,128)}', space=vmem, size = 0x3000, scoped, tag = 'scratch operand']
  %s0 = inlined_call_operand.vmem [shape: f32[2,3,256], index: 0, kind: input, shape index: {}]
  %s1 = inlined_call_operand.vmem [shape: f32[2,1,256], index: 1, kind: input, shape index: {}]
  %s2 = inlined_call_operand.vmem [shape: f32[1,324], index: 2, kind: input, shape index: {}]
  %s3 = inlined_call_operand.vmem [shape: f32[8,72], index: 3, kind: input, shape index: {}]
  %s4 = inlined_call_operand.vmem [shape: f32[8,1], index: 4, kind: input, shape index: {}]
  %s5 = inlined_call_operand.vmem [shape: f32[8,1], index: 5, kind: input, shape index: {}]
  %s6 = inlined_call_operand.vmem [shape: f32[16,72], index: 6, kind: input, shape index: {}]
  %s7 = inlined_call_operand.vmem [shape: f32[16,1], index: 7, kind: input, shape index: {}]
  %s8 = inlined_call_operand.vmem [shape: f32[16,1], index: 8, kind: input, shape index: {}]
  %s9 = inlined_call_operand.vmem [shape: f32[32,144], index: 9, kind: input, shape index: {}]
  %s10 = inlined_call_operand.vmem [shape: f32[32,1], index: 10, kind: input, shape index: {}]
  %s11 = inlined_call_operand.vmem [shape: f32[32,1], index: 11, kind: input, shape index: {}]
  %s12 = inlined_call_operand.vmem [shape: f32[16,288], index: 12, kind: input, shape index: {}]
  %s13 = inlined_call_operand.vmem [shape: f32[16,1], index: 13, kind: input, shape index: {}]
  %s14 = inlined_call_operand.vmem [shape: f32[16,1], index: 14, kind: input, shape index: {}]
  %s15 = inlined_call_operand.vmem [shape: f32[8,144], index: 15, kind: input, shape index: {}]
  %s16 = inlined_call_operand.vmem [shape: f32[8,1], index: 16, kind: input, shape index: {}]
  %s17 = inlined_call_operand.vmem [shape: f32[8,1], index: 17, kind: input, shape index: {}]
  %s18 = inlined_call_operand.vmem [shape: f32[4,72], index: 18, kind: input, shape index: {}]
  %s19 = inlined_call_operand.vmem [shape: f32[4,1], index: 19, kind: input, shape index: {}]
  %s20 = inlined_call_operand.vmem [shape: f32[4,1], index: 20, kind: input, shape index: {}]
  %s21 = inlined_call_operand.vmem [shape: f32[18,10], index: 21, kind: input, shape index: {}]
  %s22 = inlined_call_operand.vmem [shape: f32[10,10], index: 22, kind: input, shape index: {}]
  %s23 = inlined_call_operand.vmem [shape: f32[10,18], index: 23, kind: input, shape index: {}]
  %s24 = inlined_call_operand.hbm [shape: f32[2,4,256], index: 24, kind: output, shape index: {}]
  %s25 = sld [smem:[#allocation0]]
  $region129: #{tpu_custom_call.1} parent=0
    _
  %s27 = ssub.s32 1, %s25
  %s28 = scalar_select 0, %s27, %s25
  $region1: #{tpu_custom_call.1} parent=0
    #allocation8 [shape = 'u8[8192]{0}', space=vmem, size = 0x2000, scoped, tag = 'output window, operand 0']
    #allocation9 [shape = 's32[2]{0}', space=sflag, size = 0x8, scoped, tag = 'scoped memory for tpu_custom_call.1']
    %29 = vsyncpa [#allocation9], 0
    %s30 = scalar_lea.sflag [#allocation9], 1
    %31 = vsyncpa %s30, 0
    loop: start=0, step=1, limit=4
    $region2: #{tpu_custom_call.1} parent=1 // loop_pre_header
      _
    $region3: #{tpu_custom_call.1} parent=1 // loop_header
      %s33 = sphi 0, %s37
      %p34 = scmp.ge.s32.totalorder %s33, 4
      %s43 = sphi 0, %s45
      %s46 = sphi 0, %s43
      %s47 = sphi 0, %s46
      %s63 = sphi 0, %s47
      %s69 = sphi 0, %s71
      %s72 = sphi 0, %s69
      %s73 = sphi 0, %s72
      %s89 = sphi 0, %s73
      %s93 = sphi 0, %s93
      %s95 = sphi 0, %s93
      %s96 = sphi 0, %s95
      %s110 = sphi 0, %s96
      %s114 = sphi 0, %s114
      %s116 = sphi 0, %s114
      %s117 = sphi 0, %s116
      %s131 = sphi 0, %s117
      %s135 = sphi 0, %s135
      %s137 = sphi 0, %s135
      %s138 = sphi 0, %s137
      %s152 = sphi 0, %s138
      %s156 = sphi 0, %s156
      %s158 = sphi 0, %s156
      %s159 = sphi 0, %s158
      %s173 = sphi 0, %s159
      %s177 = sphi 0, %s177
      %s179 = sphi 0, %s177
      %s180 = sphi 0, %s179
      %s194 = sphi 0, %s180
      %s198 = sphi 0, %s198
      %s200 = sphi 0, %s198
      %s201 = sphi 0, %s200
      %s215 = sphi 0, %s201
      %s219 = sphi 0, %s219
      %s221 = sphi 0, %s219
      %s222 = sphi 0, %s221
      %s236 = sphi 0, %s222
      %s240 = sphi 0, %s240
      %s242 = sphi 0, %s240
      %s243 = sphi 0, %s242
      %s257 = sphi 0, %s243
      %s261 = sphi 0, %s261
      %s263 = sphi 0, %s261
      %s264 = sphi 0, %s263
      %s278 = sphi 0, %s264
      %s282 = sphi 0, %s282
      %s284 = sphi 0, %s282
      %s285 = sphi 0, %s284
      %s299 = sphi 0, %s285
      %s303 = sphi 0, %s303
      %s305 = sphi 0, %s303
      %s306 = sphi 0, %s305
      %s320 = sphi 0, %s306
      %s324 = sphi 0, %s324
      %s326 = sphi 0, %s324
      %s327 = sphi 0, %s326
      %s341 = sphi 0, %s327
      %s345 = sphi 0, %s345
      %s347 = sphi 0, %s345
      %s348 = sphi 0, %s347
      %s362 = sphi 0, %s348
      %s366 = sphi 0, %s366
      %s368 = sphi 0, %s366
      %s369 = sphi 0, %s368
      %s383 = sphi 0, %s369
      %s387 = sphi 0, %s387
      %s389 = sphi 0, %s387
      %s390 = sphi 0, %s389
      %s404 = sphi 0, %s390
      %s408 = sphi 0, %s408
      %s410 = sphi 0, %s408
      %s411 = sphi 0, %s410
      %s425 = sphi 0, %s411
      %s429 = sphi 0, %s429
      %s431 = sphi 0, %s429
      %s432 = sphi 0, %s431
      %s446 = sphi 0, %s432
      %s450 = sphi 0, %s450
      %s452 = sphi 0, %s450
      %s453 = sphi 0, %s452
      %s467 = sphi 0, %s453
      %s471 = sphi 0, %s471
      %s473 = sphi 0, %s471
      %s474 = sphi 0, %s473
      %s488 = sphi 0, %s474
      %s492 = sphi 0, %s492
      %s494 = sphi 0, %s492
      %s495 = sphi 0, %s494
      %s509 = sphi 0, %s495
      %s513 = sphi 0, %s513
      %s515 = sphi 0, %s513
      %s516 = sphi 0, %s515
      %s530 = sphi 0, %s516
      %s534 = sphi 0, %s534
      %s536 = sphi 0, %s534
      %s537 = sphi 0, %s536
      %s551 = sphi 0, %s537
      %s557 = sphi 0, %s559
      %s560 = sphi 0, %s557
      %s561 = sphi 0, %s560
      %s577 = sphi 0, %s561
    $region4: #{tpu_custom_call.1} parent=1 // loop_header_branch
      %36 = sbr.rel (%p34) target = $region8
    $region5: #{tpu_custom_call.1} parent=1 // loop_body
      %s38 = ssub.s32 %s33, 1
      %s39 = ssub.s32 %s33, 2
      %s40 = sadd.s32 %s33, 1
      %s41 = ssub.s32 %s33, %s40
      %p42 = scmp.eq.s32.totalorder %s41, 0
      %s44 = sadd.s32 %s43, 1
      %s45 = scalar_select %p42, %s43, %s44
      %p48 = pneg %p42
      %p49 = scmp.eq.s32.totalorder %s33, 1
      %p50 = por %p48, %p49
      %p51 = scmp.ne.s32.totalorder %s43, %s46
      %p52 = scmp.eq.s32.totalorder %s33, 0
      %p53 = por %p51, %p52
      %p54 = scmp.ne.s32.totalorder %s43, %s46
      %p55 = scmp.eq.s32.totalorder %s38, 1
      %p56 = por %p54, %p55
      %p57 = scmp.ne.s32.totalorder %s46, %s47
      %p58 = scmp.eq.s32.totalorder %s38, 0
      %p59 = por %p57, %p58
      %p60 = scmp.ne.s32.totalorder %s46, %s47
      %p61 = scmp.eq.s32.totalorder %s39, 1
      %p62 = por %p60, %p61
      %p64 = scmp.ne.s32.totalorder %s47, %s63
      %p65 = scmp.eq.s32.totalorder %s39, 0
      %p66 = por %p64, %p65
      %s67 = ssub.s32 %s33, %s40
      %p68 = scmp.eq.s32.totalorder %s67, 0
      %s70 = sadd.s32 %s69, 1
      %s71 = scalar_select %p68, %s69, %s70
      %p74 = pneg %p68
      %p75 = scmp.eq.s32.totalorder %s33, 1
      %p76 = por %p74, %p75
      %p77 = scmp.ne.s32.totalorder %s69, %s72
      %p78 = scmp.eq.s32.totalorder %s33, 0
      %p79 = por %p77, %p78
      %p80 = scmp.ne.s32.totalorder %s69, %s72
      %p81 = scmp.eq.s32.totalorder %s38, 1
      %p82 = por %p80, %p81
      %p83 = scmp.ne.s32.totalorder %s72, %s73
      %p84 = scmp.eq.s32.totalorder %s38, 0
      %p85 = por %p83, %p84
      %p86 = scmp.ne.s32.totalorder %s72, %s73
      %p87 = scmp.eq.s32.totalorder %s39, 1
      %p88 = por %p86, %p87
      %p90 = scmp.ne.s32.totalorder %s73, %s89
      %p91 = scmp.eq.s32.totalorder %s39, 0
      %p92 = por %p90, %p91
      %s94 = sadd.s32 %s93, 1
      %p97 = scmp.eq.s32.totalorder %s33, 1
      %p98 = scmp.ne.s32.totalorder %s93, %s95
      %p99 = scmp.eq.s32.totalorder %s33, 0
      %p100 = por %p98, %p99
      %p101 = scmp.ne.s32.totalorder %s93, %s95
      %p102 = scmp.eq.s32.totalorder %s38, 1
      %p103 = por %p101, %p102
      %p104 = scmp.ne.s32.totalorder %s95, %s96
      %p105 = scmp.eq.s32.totalorder %s38, 0
      %p106 = por %p104, %p105
      %p107 = scmp.ne.s32.totalorder %s95, %s96
      %p108 = scmp.eq.s32.totalorder %s39, 1
      %p109 = por %p107, %p108
      %p111 = scmp.ne.s32.totalorder %s96, %s110
      %p112 = scmp.eq.s32.totalorder %s39, 0
      %p113 = por %p111, %p112
      %s115 = sadd.s32 %s114, 1
      %p118 = scmp.eq.s32.totalorder %s33, 1
      %p119 = scmp.ne.s32.totalorder %s114, %s116
      %p120 = scmp.eq.s32.totalorder %s33, 0
      %p121 = por %p119, %p120
      %p122 = scmp.ne.s32.totalorder %s114, %s116
      %p123 = scmp.eq.s32.totalorder %s38, 1
      %p124 = por %p122, %p123
      %p125 = scmp.ne.s32.totalorder %s116, %s117
      %p126 = scmp.eq.s32.totalorder %s38, 0
      %p127 = por %p125, %p126
      %p128 = scmp.ne.s32.totalorder %s116, %s117
      %p129 = scmp.eq.s32.totalorder %s39, 1
      %p130 = por %p128, %p129
      %p132 = scmp.ne.s32.totalorder %s117, %s131
      %p133 = scmp.eq.s32.totalorder %s39, 0
      %p134 = por %p132, %p133
      %s136 = sadd.s32 %s135, 1
      %p139 = scmp.eq.s32.totalorder %s33, 1
      %p140 = scmp.ne.s32.totalorder %s135, %s137
      %p141 = scmp.eq.s32.totalorder %s33, 0
      %p142 = por %p140, %p141
      %p143 = scmp.ne.s32.totalorder %s135, %s137
      %p144 = scmp.eq.s32.totalorder %s38, 1
      %p145 = por %p143, %p144
      %p146 = scmp.ne.s32.totalorder %s137, %s138
      %p147 = scmp.eq.s32.totalorder %s38, 0
      %p148 = por %p146, %p147
      %p149 = scmp.ne.s32.totalorder %s137, %s138
      %p150 = scmp.eq.s32.totalorder %s39, 1
      %p151 = por %p149, %p150
      %p153 = scmp.ne.s32.totalorder %s138, %s152
      %p154 = scmp.eq.s32.totalorder %s39, 0
      %p155 = por %p153, %p154
      %s157 = sadd.s32 %s156, 1
      %p160 = scmp.eq.s32.totalorder %s33, 1
      %p161 = scmp.ne.s32.totalorder %s156, %s158
      %p162 = scmp.eq.s32.totalorder %s33, 0
      %p163 = por %p161, %p162
      %p164 = scmp.ne.s32.totalorder %s156, %s158
      %p165 = scmp.eq.s32.totalorder %s38, 1
      %p166 = por %p164, %p165
      %p167 = scmp.ne.s32.totalorder %s158, %s159
      %p168 = scmp.eq.s32.totalorder %s38, 0
      %p169 = por %p167, %p168
      %p170 = scmp.ne.s32.totalorder %s158, %s159
      %p171 = scmp.eq.s32.totalorder %s39, 1
      %p172 = por %p170, %p171
      %p174 = scmp.ne.s32.totalorder %s159, %s173
      %p175 = scmp.eq.s32.totalorder %s39, 0
      %p176 = por %p174, %p175
      %s178 = sadd.s32 %s177, 1
      %p181 = scmp.eq.s32.totalorder %s33, 1
      %p182 = scmp.ne.s32.totalorder %s177, %s179
      %p183 = scmp.eq.s32.totalorder %s33, 0
      %p184 = por %p182, %p183
      %p185 = scmp.ne.s32.totalorder %s177, %s179
      %p186 = scmp.eq.s32.totalorder %s38, 1
      %p187 = por %p185, %p186
      %p188 = scmp.ne.s32.totalorder %s179, %s180
      %p189 = scmp.eq.s32.totalorder %s38, 0
      %p190 = por %p188, %p189
      %p191 = scmp.ne.s32.totalorder %s179, %s180
      %p192 = scmp.eq.s32.totalorder %s39, 1
      %p193 = por %p191, %p192
      %p195 = scmp.ne.s32.totalorder %s180, %s194
      %p196 = scmp.eq.s32.totalorder %s39, 0
      %p197 = por %p195, %p196
      %s199 = sadd.s32 %s198, 1
      %p202 = scmp.eq.s32.totalorder %s33, 1
      %p203 = scmp.ne.s32.totalorder %s198, %s200
      %p204 = scmp.eq.s32.totalorder %s33, 0
      %p205 = por %p203, %p204
      %p206 = scmp.ne.s32.totalorder %s198, %s200
      %p207 = scmp.eq.s32.totalorder %s38, 1
      %p208 = por %p206, %p207
      %p209 = scmp.ne.s32.totalorder %s200, %s201
      %p210 = scmp.eq.s32.totalorder %s38, 0
      %p211 = por %p209, %p210
      %p212 = scmp.ne.s32.totalorder %s200, %s201
      %p213 = scmp.eq.s32.totalorder %s39, 1
      %p214 = por %p212, %p213
      %p216 = scmp.ne.s32.totalorder %s201, %s215
      %p217 = scmp.eq.s32.totalorder %s39, 0
      %p218 = por %p216, %p217
      %s220 = sadd.s32 %s219, 1
      %p223 = scmp.eq.s32.totalorder %s33, 1
      %p224 = scmp.ne.s32.totalorder %s219, %s221
      %p225 = scmp.eq.s32.totalorder %s33, 0
      %p226 = por %p224, %p225
      %p227 = scmp.ne.s32.totalorder %s219, %s221
      %p228 = scmp.eq.s32.totalorder %s38, 1
      %p229 = por %p227, %p228
      %p230 = scmp.ne.s32.totalorder %s221, %s222
      %p231 = scmp.eq.s32.totalorder %s38, 0
      %p232 = por %p230, %p231
      %p233 = scmp.ne.s32.totalorder %s221, %s222
      %p234 = scmp.eq.s32.totalorder %s39, 1
      %p235 = por %p233, %p234
      %p237 = scmp.ne.s32.totalorder %s222, %s236
      %p238 = scmp.eq.s32.totalorder %s39, 0
      %p239 = por %p237, %p238
      %s241 = sadd.s32 %s240, 1
      %p244 = scmp.eq.s32.totalorder %s33, 1
      %p245 = scmp.ne.s32.totalorder %s240, %s242
      %p246 = scmp.eq.s32.totalorder %s33, 0
      %p247 = por %p245, %p246
      %p248 = scmp.ne.s32.totalorder %s240, %s242
      %p249 = scmp.eq.s32.totalorder %s38, 1
      %p250 = por %p248, %p249
      %p251 = scmp.ne.s32.totalorder %s242, %s243
      %p252 = scmp.eq.s32.totalorder %s38, 0
      %p253 = por %p251, %p252
      %p254 = scmp.ne.s32.totalorder %s242, %s243
      %p255 = scmp.eq.s32.totalorder %s39, 1
      %p256 = por %p254, %p255
      %p258 = scmp.ne.s32.totalorder %s243, %s257
      %p259 = scmp.eq.s32.totalorder %s39, 0
      %p260 = por %p258, %p259
      %s262 = sadd.s32 %s261, 1
      %p265 = scmp.eq.s32.totalorder %s33, 1
      %p266 = scmp.ne.s32.totalorder %s261, %s263
      %p267 = scmp.eq.s32.totalorder %s33, 0
      %p268 = por %p266, %p267
      %p269 = scmp.ne.s32.totalorder %s261, %s263
      %p270 = scmp.eq.s32.totalorder %s38, 1
      %p271 = por %p269, %p270
      %p272 = scmp.ne.s32.totalorder %s263, %s264
      %p273 = scmp.eq.s32.totalorder %s38, 0
      %p274 = por %p272, %p273
      %p275 = scmp.ne.s32.totalorder %s263, %s264
      %p276 = scmp.eq.s32.totalorder %s39, 1
      %p277 = por %p275, %p276
      %p279 = scmp.ne.s32.totalorder %s264, %s278
      %p280 = scmp.eq.s32.totalorder %s39, 0
      %p281 = por %p279, %p280
      %s283 = sadd.s32 %s282, 1
      %p286 = scmp.eq.s32.totalorder %s33, 1
      %p287 = scmp.ne.s32.totalorder %s282, %s284
      %p288 = scmp.eq.s32.totalorder %s33, 0
      %p289 = por %p287, %p288
      %p290 = scmp.ne.s32.totalorder %s282, %s284
      %p291 = scmp.eq.s32.totalorder %s38, 1
      %p292 = por %p290, %p291
      %p293 = scmp.ne.s32.totalorder %s284, %s285
      %p294 = scmp.eq.s32.totalorder %s38, 0
      %p295 = por %p293, %p294
      %p296 = scmp.ne.s32.totalorder %s284, %s285
      %p297 = scmp.eq.s32.totalorder %s39, 1
      %p298 = por %p296, %p297
      %p300 = scmp.ne.s32.totalorder %s285, %s299
      %p301 = scmp.eq.s32.totalorder %s39, 0
      %p302 = por %p300, %p301
      %s304 = sadd.s32 %s303, 1
      %p307 = scmp.eq.s32.totalorder %s33, 1
      %p308 = scmp.ne.s32.totalorder %s303, %s305
      %p309 = scmp.eq.s32.totalorder %s33, 0
      %p310 = por %p308, %p309
      %p311 = scmp.ne.s32.totalorder %s303, %s305
      %p312 = scmp.eq.s32.totalorder %s38, 1
      %p313 = por %p311, %p312
      %p314 = scmp.ne.s32.totalorder %s305, %s306
      %p315 = scmp.eq.s32.totalorder %s38, 0
      %p316 = por %p314, %p315
      %p317 = scmp.ne.s32.totalorder %s305, %s306
      %p318 = scmp.eq.s32.totalorder %s39, 1
      %p319 = por %p317, %p318
      %p321 = scmp.ne.s32.totalorder %s306, %s320
      %p322 = scmp.eq.s32.totalorder %s39, 0
      %p323 = por %p321, %p322
      %s325 = sadd.s32 %s324, 1
      %p328 = scmp.eq.s32.totalorder %s33, 1
      %p329 = scmp.ne.s32.totalorder %s324, %s326
      %p330 = scmp.eq.s32.totalorder %s33, 0
      %p331 = por %p329, %p330
      %p332 = scmp.ne.s32.totalorder %s324, %s326
      %p333 = scmp.eq.s32.totalorder %s38, 1
      %p334 = por %p332, %p333
      %p335 = scmp.ne.s32.totalorder %s326, %s327
      %p336 = scmp.eq.s32.totalorder %s38, 0
      %p337 = por %p335, %p336
      %p338 = scmp.ne.s32.totalorder %s326, %s327
      %p339 = scmp.eq.s32.totalorder %s39, 1
      %p340 = por %p338, %p339
      %p342 = scmp.ne.s32.totalorder %s327, %s341
      %p343 = scmp.eq.s32.totalorder %s39, 0
      %p344 = por %p342, %p343
      %s346 = sadd.s32 %s345, 1
      %p349 = scmp.eq.s32.totalorder %s33, 1
      %p350 = scmp.ne.s32.totalorder %s345, %s347
      %p351 = scmp.eq.s32.totalorder %s33, 0
      %p352 = por %p350, %p351
      %p353 = scmp.ne.s32.totalorder %s345, %s347
      %p354 = scmp.eq.s32.totalorder %s38, 1
      %p355 = por %p353, %p354
      %p356 = scmp.ne.s32.totalorder %s347, %s348
      %p357 = scmp.eq.s32.totalorder %s38, 0
      %p358 = por %p356, %p357
      %p359 = scmp.ne.s32.totalorder %s347, %s348
      %p360 = scmp.eq.s32.totalorder %s39, 1
      %p361 = por %p359, %p360
      %p363 = scmp.ne.s32.totalorder %s348, %s362
      %p364 = scmp.eq.s32.totalorder %s39, 0
      %p365 = por %p363, %p364
      %s367 = sadd.s32 %s366, 1
      %p370 = scmp.eq.s32.totalorder %s33, 1
      %p371 = scmp.ne.s32.totalorder %s366, %s368
      %p372 = scmp.eq.s32.totalorder %s33, 0
      %p373 = por %p371, %p372
      %p374 = scmp.ne.s32.totalorder %s366, %s368
      %p375 = scmp.eq.s32.totalorder %s38, 1
      %p376 = por %p374, %p375
      %p377 = scmp.ne.s32.totalorder %s368, %s369
      %p378 = scmp.eq.s32.totalorder %s38, 0
      %p379 = por %p377, %p378
      %p380 = scmp.ne.s32.totalorder %s368, %s369
      %p381 = scmp.eq.s32.totalorder %s39, 1
      %p382 = por %p380, %p381
      %p384 = scmp.ne.s32.totalorder %s369, %s383
      %p385 = scmp.eq.s32.totalorder %s39, 0
      %p386 = por %p384, %p385
      %s388 = sadd.s32 %s387, 1
      %p391 = scmp.eq.s32.totalorder %s33, 1
      %p392 = scmp.ne.s32.totalorder %s387, %s389
      %p393 = scmp.eq.s32.totalorder %s33, 0
      %p394 = por %p392, %p393
      %p395 = scmp.ne.s32.totalorder %s387, %s389
      %p396 = scmp.eq.s32.totalorder %s38, 1
      %p397 = por %p395, %p396
      %p398 = scmp.ne.s32.totalorder %s389, %s390
      %p399 = scmp.eq.s32.totalorder %s38, 0
      %p400 = por %p398, %p399
      %p401 = scmp.ne.s32.totalorder %s389, %s390
      %p402 = scmp.eq.s32.totalorder %s39, 1
      %p403 = por %p401, %p402
      %p405 = scmp.ne.s32.totalorder %s390, %s404
      %p406 = scmp.eq.s32.totalorder %s39, 0
      %p407 = por %p405, %p406
      %s409 = sadd.s32 %s408, 1
      %p412 = scmp.eq.s32.totalorder %s33, 1
      %p413 = scmp.ne.s32.totalorder %s408, %s410
      %p414 = scmp.eq.s32.totalorder %s33, 0
      %p415 = por %p413, %p414
      %p416 = scmp.ne.s32.totalorder %s408, %s410
      %p417 = scmp.eq.s32.totalorder %s38, 1
      %p418 = por %p416, %p417
      %p419 = scmp.ne.s32.totalorder %s410, %s411
      %p420 = scmp.eq.s32.totalorder %s38, 0
      %p421 = por %p419, %p420
      %p422 = scmp.ne.s32.totalorder %s410, %s411
      %p423 = scmp.eq.s32.totalorder %s39, 1
      %p424 = por %p422, %p423
      %p426 = scmp.ne.s32.totalorder %s411, %s425
      %p427 = scmp.eq.s32.totalorder %s39, 0
      %p428 = por %p426, %p427
      %s430 = sadd.s32 %s429, 1
      %p433 = scmp.eq.s32.totalorder %s33, 1
      %p434 = scmp.ne.s32.totalorder %s429, %s431
      %p435 = scmp.eq.s32.totalorder %s33, 0
      %p436 = por %p434, %p435
      %p437 = scmp.ne.s32.totalorder %s429, %s431
      %p438 = scmp.eq.s32.totalorder %s38, 1
      %p439 = por %p437, %p438
      %p440 = scmp.ne.s32.totalorder %s431, %s432
      %p441 = scmp.eq.s32.totalorder %s38, 0
      %p442 = por %p440, %p441
      %p443 = scmp.ne.s32.totalorder %s431, %s432
      %p444 = scmp.eq.s32.totalorder %s39, 1
      %p445 = por %p443, %p444
      %p447 = scmp.ne.s32.totalorder %s432, %s446
      %p448 = scmp.eq.s32.totalorder %s39, 0
      %p449 = por %p447, %p448
      %s451 = sadd.s32 %s450, 1
      %p454 = scmp.eq.s32.totalorder %s33, 1
      %p455 = scmp.ne.s32.totalorder %s450, %s452
      %p456 = scmp.eq.s32.totalorder %s33, 0
      %p457 = por %p455, %p456
      %p458 = scmp.ne.s32.totalorder %s450, %s452
      %p459 = scmp.eq.s32.totalorder %s38, 1
      %p460 = por %p458, %p459
      %p461 = scmp.ne.s32.totalorder %s452, %s453
      %p462 = scmp.eq.s32.totalorder %s38, 0
      %p463 = por %p461, %p462
      %p464 = scmp.ne.s32.totalorder %s452, %s453
      %p465 = scmp.eq.s32.totalorder %s39, 1
      %p466 = por %p464, %p465
      %p468 = scmp.ne.s32.totalorder %s453, %s467
      %p469 = scmp.eq.s32.totalorder %s39, 0
      %p470 = por %p468, %p469
      %s472 = sadd.s32 %s471, 1
      %p475 = scmp.eq.s32.totalorder %s33, 1
      %p476 = scmp.ne.s32.totalorder %s471, %s473
      %p477 = scmp.eq.s32.totalorder %s33, 0
      %p478 = por %p476, %p477
      %p479 = scmp.ne.s32.totalorder %s471, %s473
      %p480 = scmp.eq.s32.totalorder %s38, 1
      %p481 = por %p479, %p480
      %p482 = scmp.ne.s32.totalorder %s473, %s474
      %p483 = scmp.eq.s32.totalorder %s38, 0
      %p484 = por %p482, %p483
      %p485 = scmp.ne.s32.totalorder %s473, %s474
      %p486 = scmp.eq.s32.totalorder %s39, 1
      %p487 = por %p485, %p486
      %p489 = scmp.ne.s32.totalorder %s474, %s488
      %p490 = scmp.eq.s32.totalorder %s39, 0
      %p491 = por %p489, %p490
      %s493 = sadd.s32 %s492, 1
      %p496 = scmp.eq.s32.totalorder %s33, 1
      %p497 = scmp.ne.s32.totalorder %s492, %s494
      %p498 = scmp.eq.s32.totalorder %s33, 0
      %p499 = por %p497, %p498
      %p500 = scmp.ne.s32.totalorder %s492, %s494
      %p501 = scmp.eq.s32.totalorder %s38, 1
      %p502 = por %p500, %p501
      %p503 = scmp.ne.s32.totalorder %s494, %s495
      %p504 = scmp.eq.s32.totalorder %s38, 0
      %p505 = por %p503, %p504
      %p506 = scmp.ne.s32.totalorder %s494, %s495
      %p507 = scmp.eq.s32.totalorder %s39, 1
      %p508 = por %p506, %p507
      %p510 = scmp.ne.s32.totalorder %s495, %s509
      %p511 = scmp.eq.s32.totalorder %s39, 0
      %p512 = por %p510, %p511
      %s514 = sadd.s32 %s513, 1
      %p517 = scmp.eq.s32.totalorder %s33, 1
      %p518 = scmp.ne.s32.totalorder %s513, %s515
      %p519 = scmp.eq.s32.totalorder %s33, 0
      %p520 = por %p518, %p519
      %p521 = scmp.ne.s32.totalorder %s513, %s515
      %p522 = scmp.eq.s32.totalorder %s38, 1
      %p523 = por %p521, %p522
      %p524 = scmp.ne.s32.totalorder %s515, %s516
      %p525 = scmp.eq.s32.totalorder %s38, 0
      %p526 = por %p524, %p525
      %p527 = scmp.ne.s32.totalorder %s515, %s516
      %p528 = scmp.eq.s32.totalorder %s39, 1
      %p529 = por %p527, %p528
      %p531 = scmp.ne.s32.totalorder %s516, %s530
      %p532 = scmp.eq.s32.totalorder %s39, 0
      %p533 = por %p531, %p532
      %s535 = sadd.s32 %s534, 1
      %p538 = scmp.eq.s32.totalorder %s33, 1
      %p539 = scmp.ne.s32.totalorder %s534, %s536
      %p540 = scmp.eq.s32.totalorder %s33, 0
      %p541 = por %p539, %p540
      %p542 = scmp.ne.s32.totalorder %s534, %s536
      %p543 = scmp.eq.s32.totalorder %s38, 1
      %p544 = por %p542, %p543
      %p545 = scmp.ne.s32.totalorder %s536, %s537
      %p546 = scmp.eq.s32.totalorder %s38, 0
      %p547 = por %p545, %p546
      %p548 = scmp.ne.s32.totalorder %s536, %s537
      %p549 = scmp.eq.s32.totalorder %s39, 1
      %p550 = por %p548, %p549
      %p552 = scmp.ne.s32.totalorder %s537, %s551
      %p553 = scmp.eq.s32.totalorder %s39, 0
      %p554 = por %p552, %p553
      %s555 = ssub.s32 %s33, %s40
      %p556 = scmp.eq.s32.totalorder %s555, 0
      %s558 = sadd.s32 %s557, 1
      %s559 = scalar_select %p556, %s557, %s558
      %p562 = pneg %p556
      %p563 = scmp.eq.s32.totalorder %s33, 1
      %p564 = por %p562, %p563
      %p565 = scmp.ne.s32.totalorder %s557, %s560
      %p566 = scmp.eq.s32.totalorder %s33, 0
      %p567 = por %p565, %p566
      %p568 = scmp.ne.s32.totalorder %s557, %s560
      %p569 = scmp.eq.s32.totalorder %s38, 1
      %p570 = por %p568, %p569
      %p571 = scmp.ne.s32.totalorder %s560, %s561
      %p572 = scmp.eq.s32.totalorder %s38, 0
      %p573 = por %p571, %p572
      %p574 = scmp.ne.s32.totalorder %s560, %s561
      %p575 = scmp.eq.s32.totalorder %s39, 1
      %p576 = por %p574, %p575
      %p578 = scmp.ne.s32.totalorder %s561, %s577
      %p579 = scmp.eq.s32.totalorder %s39, 0
      %p580 = por %p578, %p579
      %p581 = scmp.le.s32.totalorder 1, %s33
      %p582 = scmp.lt.s32.totalorder %s33, 3
      %p583 = pnand %p581, %p582
      %p584 = pneg %p583
      // Predicated region
      $region9: #{tpu_custom_call.1} parent=5 // pred_check
        _
      $region10: #{tpu_custom_call.1} parent=5 // pred_check_branch
        %586 = sbr.rel (%p583) target = $region12
      $region11: #{tpu_custom_call.1} parent=5 // pred_region
        %s587 = ssub.s32 %s33, 1
        // Predicated region
        $region13: #{tpu_custom_call.1} parent=11 // pred_check
          %p588 = pneg %p106
        $region14: #{tpu_custom_call.1} parent=11 // pred_check_branch
          %590 = sbr.rel (%p588) target = $region16
        $region15: #{tpu_custom_call.1} parent=11 // pred_region
          _
        $region16: #{tpu_custom_call.1} parent=11 // pred_fallthru
          _
        // Predicated region
        $region17: #{tpu_custom_call.1} parent=11 // pred_check
          %p591 = pneg %p127
        $region18: #{tpu_custom_call.1} parent=11 // pred_check_branch
          %593 = sbr.rel (%p591) target = $region20
        $region19: #{tpu_custom_call.1} parent=11 // pred_region
          _
        $region20: #{tpu_custom_call.1} parent=11 // pred_fallthru
          _
        // Predicated region
        $region21: #{tpu_custom_call.1} parent=11 // pred_check
          %p594 = pneg %p148
        $region22: #{tpu_custom_call.1} parent=11 // pred_check_branch
          %596 = sbr.rel (%p594) target = $region24
        $region23: #{tpu_custom_call.1} parent=11 // pred_region
          _
        $region24: #{tpu_custom_call.1} parent=11 // pred_fallthru
          _
        // Predicated region
        $region25: #{tpu_custom_call.1} parent=11 // pred_check
          %p597 = pneg %p169
        $region26: #{tpu_custom_call.1} parent=11 // pred_check_branch
          %599 = sbr.rel (%p597) target = $region28
        $region27: #{tpu_custom_call.1} parent=11 // pred_region
          _
        $region28: #{tpu_custom_call.1} parent=11 // pred_fallthru
          _
        // Predicated region
        $region29: #{tpu_custom_call.1} parent=11 // pred_check
          %p600 = pneg %p190
        $region30: #{tpu_custom_call.1} parent=11 // pred_check_branch
          %602 = sbr.rel (%p600) target = $region32
        $region31: #{tpu_custom_call.1} parent=11 // pred_region
          _
        $region32: #{tpu_custom_call.1} parent=11 // pred_fallthru
          _
        // Predicated region
        $region33: #{tpu_custom_call.1} parent=11 // pred_check
          %p603 = pneg %p211
        $region34: #{tpu_custom_call.1} parent=11 // pred_check_branch
          %605 = sbr.rel (%p603) target = $region36
        $region35: #{tpu_custom_call.1} parent=11 // pred_region
          _
        $region36: #{tpu_custom_call.1} parent=11 // pred_fallthru
          _
        // Predicated region
        $region37: #{tpu_custom_call.1} parent=11 // pred_check
          %p606 = pneg %p232
        $region38: #{tpu_custom_call.1} parent=11 // pred_check_branch
          %608 = sbr.rel (%p606) target = $region40
        $region39: #{tpu_custom_call.1} parent=11 // pred_region
          _
        $region40: #{tpu_custom_call.1} parent=11 // pred_fallthru
          _
        // Predicated region
        $region41: #{tpu_custom_call.1} parent=11 // pred_check
          %p609 = pneg %p253
        $region42: #{tpu_custom_call.1} parent=11 // pred_check_branch
          %611 = sbr.rel (%p609) target = $region44
        $region43: #{tpu_custom_call.1} parent=11 // pred_region
          _
        $region44: #{tpu_custom_call.1} parent=11 // pred_fallthru
          _
        // Predicated region
        $region45: #{tpu_custom_call.1} parent=11 // pred_check
          %p612 = pneg %p274
        $region46: #{tpu_custom_call.1} parent=11 // pred_check_branch
          %614 = sbr.rel (%p612) target = $region48
        $region47: #{tpu_custom_call.1} parent=11 // pred_region
          _
        $region48: #{tpu_custom_call.1} parent=11 // pred_fallthru
          _
        // Predicated region
        $region49: #{tpu_custom_call.1} parent=11 // pred_check
          %p615 = pneg %p295
        $region50: #{tpu_custom_call.1} parent=11 // pred_check_branch
          %617 = sbr.rel (%p615) target = $region52
        $region51: #{tpu_custom_call.1} parent=11 // pred_region
          _
        $region52: #{tpu_custom_call.1} parent=11 // pred_fallthru
          _
        // Predicated region
        $region53: #{tpu_custom_call.1} parent=11 // pred_check
          %p618 = pneg %p316
        $region54: #{tpu_custom_call.1} parent=11 // pred_check_branch
          %620 = sbr.rel (%p618) target = $region56
        $region55: #{tpu_custom_call.1} parent=11 // pred_region
          _
        $region56: #{tpu_custom_call.1} parent=11 // pred_fallthru
          _
        // Predicated region
        $region57: #{tpu_custom_call.1} parent=11 // pred_check
          %p621 = pneg %p337
        $region58: #{tpu_custom_call.1} parent=11 // pred_check_branch
          %623 = sbr.rel (%p621) target = $region60
        $region59: #{tpu_custom_call.1} parent=11 // pred_region
          _
        $region60: #{tpu_custom_call.1} parent=11 // pred_fallthru
          _
        // Predicated region
        $region61: #{tpu_custom_call.1} parent=11 // pred_check
          %p624 = pneg %p358
        $region62: #{tpu_custom_call.1} parent=11 // pred_check_branch
          %626 = sbr.rel (%p624) target = $region64
        $region63: #{tpu_custom_call.1} parent=11 // pred_region
          _
        $region64: #{tpu_custom_call.1} parent=11 // pred_fallthru
          _
        // Predicated region
        $region65: #{tpu_custom_call.1} parent=11 // pred_check
          %p627 = pneg %p379
        $region66: #{tpu_custom_call.1} parent=11 // pred_check_branch
          %629 = sbr.rel (%p627) target = $region68
        $region67: #{tpu_custom_call.1} parent=11 // pred_region
          _
        $region68: #{tpu_custom_call.1} parent=11 // pred_fallthru
          _
        // Predicated region
        $region69: #{tpu_custom_call.1} parent=11 // pred_check
          %p630 = pneg %p400
        $region70: #{tpu_custom_call.1} parent=11 // pred_check_branch
          %632 = sbr.rel (%p630) target = $region72
        $region71: #{tpu_custom_call.1} parent=11 // pred_region
          _
        $region72: #{tpu_custom_call.1} parent=11 // pred_fallthru
          _
        // Predicated region
        $region73: #{tpu_custom_call.1} parent=11 // pred_check
          %p633 = pneg %p421
        $region74: #{tpu_custom_call.1} parent=11 // pred_check_branch
          %635 = sbr.rel (%p633) target = $region76
        $region75: #{tpu_custom_call.1} parent=11 // pred_region
          _
        $region76: #{tpu_custom_call.1} parent=11 // pred_fallthru
          _
        // Predicated region
        $region77: #{tpu_custom_call.1} parent=11 // pred_check
          %p636 = pneg %p442
        $region78: #{tpu_custom_call.1} parent=11 // pred_check_branch
          %638 = sbr.rel (%p636) target = $region80
        $region79: #{tpu_custom_call.1} parent=11 // pred_region
          _
        $region80: #{tpu_custom_call.1} parent=11 // pred_fallthru
          _
        // Predicated region
        $region81: #{tpu_custom_call.1} parent=11 // pred_check
          %p639 = pneg %p463
        $region82: #{tpu_custom_call.1} parent=11 // pred_check_branch
          %641 = sbr.rel (%p639) target = $region84
        $region83: #{tpu_custom_call.1} parent=11 // pred_region
          _
        $region84: #{tpu_custom_call.1} parent=11 // pred_fallthru
          _
        // Predicated region
        $region85: #{tpu_custom_call.1} parent=11 // pred_check
          %p642 = pneg %p484
        $region86: #{tpu_custom_call.1} parent=11 // pred_check_branch
          %644 = sbr.rel (%p642) target = $region88
        $region87: #{tpu_custom_call.1} parent=11 // pred_region
          _
        $region88: #{tpu_custom_call.1} parent=11 // pred_fallthru
          _
        // Predicated region
        $region89: #{tpu_custom_call.1} parent=11 // pred_check
          %p645 = pneg %p505
        $region90: #{tpu_custom_call.1} parent=11 // pred_check_branch
          %647 = sbr.rel (%p645) target = $region92
        $region91: #{tpu_custom_call.1} parent=11 // pred_region
          _
        $region92: #{tpu_custom_call.1} parent=11 // pred_fallthru
          _
        // Predicated region
        $region93: #{tpu_custom_call.1} parent=11 // pred_check
          %p648 = pneg %p526
        $region94: #{tpu_custom_call.1} parent=11 // pred_check_branch
          %650 = sbr.rel (%p648) target = $region96
        $region95: #{tpu_custom_call.1} parent=11 // pred_region
          _
        $region96: #{tpu_custom_call.1} parent=11 // pred_fallthru
          _
        // Predicated region
        $region97: #{tpu_custom_call.1} parent=11 // pred_check
          %p651 = pneg %p547
        $region98: #{tpu_custom_call.1} parent=11 // pred_check_branch
          %653 = sbr.rel (%p651) target = $region100
        $region99: #{tpu_custom_call.1} parent=11 // pred_region
          _
        $region100: #{tpu_custom_call.1} parent=11 // pred_fallthru
          _
      $region12: #{tpu_custom_call.1} parent=5 // pred_fallthru
        _
      %p654 = scmp.lt.s32.totalorder %s33, 2
      // Predicated region
      $region101: #{tpu_custom_call.1} parent=5 // pred_check
        %p655 = pneg %p654
      $region102: #{tpu_custom_call.1} parent=5 // pred_check_branch
        %657 = sbr.rel (%p655) target = $region104
      $region103: #{tpu_custom_call.1} parent=5 // pred_region
        // Predicated region
        $region105: #{tpu_custom_call.1} parent=103 // pred_check
          %p658 = pneg %p53
        $region106: #{tpu_custom_call.1} parent=103 // pred_check_branch
          %660 = sbr.rel (%p658) target = $region108
        $region107: #{tpu_custom_call.1} parent=103 // pred_region
          %p661 = scmp.lt.s32.totalorder %s33, 1
          %s662 = scalar_select %p661, %s33, 1
          %s663 = smul.addr %s662, 2
          %s664 = smul.addr %s663, 4
          %s665 = scalar_lea.vmem %s0, %s664
        $region108: #{tpu_custom_call.1} parent=103 // pred_fallthru
          _
        // Predicated region
        $region109: #{tpu_custom_call.1} parent=103 // pred_check
          %p666 = pneg %p79
        $region110: #{tpu_custom_call.1} parent=103 // pred_check_branch
          %668 = sbr.rel (%p666) target = $region112
        $region111: #{tpu_custom_call.1} parent=103 // pred_region
          %p669 = scmp.lt.s32.totalorder %s33, 1
          %s670 = scalar_select %p669, %s33, 1
          %s671 = smul.addr %s670, 2
          %s672 = scalar_lea.vmem %s1, %s671
        $region112: #{tpu_custom_call.1} parent=103 // pred_fallthru
          _
      $region104: #{tpu_custom_call.1} parent=5 // pred_fallthru
        _
      %p673 = scmp.le.s32.totalorder 1, %s33
      %p674 = scmp.lt.s32.totalorder %s33, 3
      %p675 = pnand %p673, %p674
      %p676 = pneg %p675
      // Predicated region
      $region113: #{tpu_custom_call.1} parent=5 // pred_check
        _
      $region114: #{tpu_custom_call.1} parent=5 // pred_check_branch
        %678 = sbr.rel (%p675) target = $region116
      $region115: #{tpu_custom_call.1} parent=5 // pred_region
        %s679 = ssub.s32 %s33, 1
        %p680 = scmp.lt.s32.totalorder %s38, 1
        %s681 = scalar_select %p680, %s38, 1
        %s682 = smul.addr %s681, 2
        %s683 = smul.addr %s682, 4
        %s684 = scalar_lea.vmem %s0, %s683
        %p685 = pneg %p59
        %p686 = pneg %p56
        %p687 = scmp.lt.s32.totalorder %s38, 1
        %s688 = scalar_select %p687, %s38, 1
        %s689 = smul.addr %s688, 2
        %s690 = scalar_lea.vmem %s1, %s689
        %p691 = pneg %p85
        %p692 = pneg %p82
        %p693 = pneg %p106
        %p694 = pneg %p103
        %p695 = pneg %p127
        %p696 = pneg %p124
        %p697 = pneg %p148
        %p698 = pneg %p145
        %p699 = pneg %p169
        %p700 = pneg %p166
        %p701 = pneg %p190
        %p702 = pneg %p187
        %p703 = pneg %p211
        %p704 = pneg %p208
        %p705 = pneg %p232
        %p706 = pneg %p229
        %p707 = pneg %p253
        %p708 = pneg %p250
        %p709 = pneg %p274
        %p710 = pneg %p271
        %p711 = pneg %p295
        %p712 = pneg %p292
        %p713 = pneg %p316
        %p714 = pneg %p313
        %p715 = pneg %p337
        %p716 = pneg %p334
        %p717 = pneg %p358
        %p718 = pneg %p355
        %p719 = pneg %p379
        %p720 = pneg %p376
        %p721 = pneg %p400
        %p722 = pneg %p397
        %p723 = pneg %p421
        %p724 = pneg %p418
        %p725 = pneg %p442
        %p726 = pneg %p439
        %p727 = pneg %p463
        %p728 = pneg %p460
        %p729 = pneg %p484
        %p730 = pneg %p481
        %p731 = pneg %p505
        %p732 = pneg %p502
        %p733 = pneg %p526
        %p734 = pneg %p523
        %p735 = pneg %p547
        %p736 = pneg %p544
        %p737 = pneg %p573
        %p738 = pneg %p570
        %s739 = sand.u32 %s560, 1
        %s740 = scalar_lea.sflag [#allocation9], %s739
        %s741 = sand.u32 %s560, 1
        %s742 = smul.addr %s741, 8
        %s743 = scalar_lea.vmem [#allocation8], %s742
        %p744 = scmp.lt.s32.totalorder %s38, 1
        %s745 = scalar_select %p744, %s38, 1
        %s746 = smul.addr %s745, 2
        %s747 = smul.addr %s746, 4
        %s748 = scalar_lea.vmem %s0, %s747
        %p749 = scmp.lt.s32.totalorder %s38, 1
        %s750 = scalar_select %p749, %s38, 1
        %s751 = smul.addr %s750, 2
        %s752 = scalar_lea.vmem %s1, %s751
        %753 = vst [vmem:[#allocation2] sm:$0xff] 0.0
        %754 = vst [vmem:[#allocation2 + $0x8] sm:$0xff] 0.0
        %vm755 = vcmask 867328
        %756 = vst.msk [vmem:[#allocation2 + $0x10] sm:$0xff] %vm755, 0.0
        %757 = vst [vmem:[#allocation3] sm:$0xff] 0.0
        %758 = vst [vmem:[#allocation3 + $0x8] sm:$0xff] 0.0
        %759 = vst.msk [vmem:[#allocation3 + $0x10] sm:$0xff] %vm755, 0.0
        %vm760 = vcmask 998400
        %761 = vst.msk [vmem:[#allocation4] sm:$0xff] %vm760, 0.0
        %762 = vst.msk [vmem:[#allocation4 + $0x8] sm:$0xff] %vm760, 0.0
        %763 = vst.msk [vmem:[#allocation5] sm:$0xff] %vm760, 0.0
        %764 = vst.msk [vmem:[#allocation5 + $0x8] sm:$0xff] %vm760, 0.0
        %765 = vst.msk [vmem:[#allocation5 + $0x10] sm:$0xff] %vm760, 0.0
        %766 = vst.msk [vmem:[#allocation5 + $0x18] sm:$0xff] %vm760, 0.0
        %767 = vst [vmem:[#allocation6] sm:$0xff] 0.0
        %768 = vst [vmem:[#allocation6 + $0x8] sm:$0xff] 0.0
        %769 = vst.msk [vmem:[#allocation6 + $0x10] sm:$0xff] %vm755, 0.0
        %770 = vst [vmem:[#allocation6 + $0x18] sm:$0xff] 0.0
        %771 = vst [vmem:[#allocation6 + $0x20] sm:$0xff] 0.0
        %772 = vst.msk [vmem:[#allocation6 + $0x28] sm:$0xff] %vm755, 0.0
        %773 = vst [vmem:[#allocation7] sm:$0xff] 0.0
        %774 = vst [vmem:[#allocation7 + $0x8] sm:$0xff] 0.0
        %775 = vst.msk [vmem:[#allocation7 + $0x10] sm:$0xff] %vm755, 0.0
        %v776 = vld [vmem:[%s748] sm:$0x77]
        %v777 = vld [vmem:[%s752] sm:$0x3]
        %779 = vrot.lane.b32.xlu0 %v776, 38
        %v780 = vpop.permute.xlu0 %779
        %vm782 = vcmask 436528
        %783 = vst.msk [vmem:[#allocation2] sm:$0x7] %vm782, %v780
        %v785 = vlaneseq
        %v786 = vshrl.u32 %v785, 7
        %v787 = vsub.s32 0, %v786
        %v788 = vrot.slane %v777, %v787
        %789 = vrot.lane.b32.xlu0 %v788, 38
        %v790 = vpop.permute.xlu0 %789
        %vm792 = vcmask 434480
        %793 = vst.msk [vmem:[#allocation2 + $0x3] sm:$0x1] %vm792, %v790
        %794 = vrot.lane.b32.xlu0 %v776, 40
        %v795 = vpop.permute.xlu0 %794
        %vm797 = vcmask 584128
        %798 = vst.msk [vmem:[#allocation2] sm:$0x7] %vm797, %v795
        %799 = vrot.lane.b32.xlu0 %v788, 40
        %v800 = vpop.permute.xlu0 %799
        %vm802 = vcmask 582080
        %803 = vst.msk [vmem:[#allocation2 + $0x3] sm:$0x1] %vm802, %v800
        %804 = vrot.lane.b32.xlu0 %v776, 42
        %v805 = vpop.permute.xlu0 %804
        %vm807 = vcmask 731728
        %808 = vst.msk [vmem:[#allocation2] sm:$0x7] %vm807, %v805
        %809 = vrot.lane.b32.xlu0 %v788, 42
        %v810 = vpop.permute.xlu0 %809
        %vm812 = vcmask 729680
        %813 = vst.msk [vmem:[#allocation2 + $0x3] sm:$0x1] %vm812, %v810
        %814 = vrot.lane.b32.xlu0 %v776, 44
        %v815 = vpop.permute.xlu0 %814
        %vm817 = vcmask 879328
        %818 = vst.msk [vmem:[#allocation2] sm:$0x7] %vm817, %v815
        %819 = vrot.lane.b32.xlu0 %v788, 44
        %v820 = vpop.permute.xlu0 %819
        %vm822 = vcmask 877280
        %823 = vst.msk [vmem:[#allocation2 + $0x3] sm:$0x1] %vm822, %v820
        %824 = vrot.lane.b32.xlu0 %v776, 46
        %v825 = vpop.permute.xlu0 %824
        %vm827 = vcmask 1026928
        %828 = vst.msk [vmem:[#allocation2] sm:$0x7] %vm827, %v825
        %829 = vrot.lane.b32.xlu0 %v788, 46
        %v830 = vpop.permute.xlu0 %829
        %vm832 = vcmask 1024880
        %833 = vst.msk [vmem:[#allocation2 + $0x3] sm:$0x1] %vm832, %v830
        %834 = vrot.lane.b32.xlu0 %v776, 48
        %v835 = vpop.permute.xlu0 %834
        %vm837 = vcmask 124928
        %838 = vst.msk [vmem:[#allocation2 + $0x8] sm:$0x7] %vm837, %v835
        %839 = vrot.lane.b32.xlu0 %v788, 48
        %v840 = vpop.permute.xlu0 %839
        %vm842 = vcmask 122880
        %843 = vst.msk [vmem:[#allocation2 + $0xb] sm:$0x1] %vm842, %v840
        %844 = vrot.lane.b32.xlu0 %v776, 50
        %v845 = vpop.permute.xlu0 %844
        %vm847 = vcmask 272528
        %848 = vst.msk [vmem:[#allocation2 + $0x8] sm:$0x7] %vm847, %v845
        %849 = vrot.lane.b32.xlu0 %v788, 50
        %v850 = vpop.permute.xlu0 %849
        %vm852 = vcmask 270480
        %853 = vst.msk [vmem:[#allocation2 + $0xb] sm:$0x1] %vm852, %v850
        %854 = vrot.lane.b32.xlu0 %v776, 52
        %v855 = vpop.permute.xlu0 %854
        %vm857 = vcmask 420128
        %858 = vst.msk [vmem:[#allocation2 + $0x8] sm:$0x7] %vm857, %v855
        %859 = vrot.lane.b32.xlu0 %v788, 52
        %v860 = vpop.permute.xlu0 %859
        %vm862 = vcmask 418080
        %863 = vst.msk [vmem:[#allocation2 + $0xb] sm:$0x1] %vm862, %v860
        %v864 = vcombine.high %v776, %v776
        %865 = vrot.lane.b32.xlu0 %v864, 54
        %v866 = vpop.permute.xlu0 %865
        %vm868 = vcmask 567728
        %869 = vst.msk [vmem:[#allocation2 + $0x8] sm:$0x7] %vm868, %v866
        %v870 = vlaneseq
        %v871 = vshrl.u32 %v870, 7
        %v872 = vsub.s32 1, %v871
        %v873 = vrot.slane %v777, %v872
        %874 = vrot.lane.b32.xlu0 %v873, 54
        %v875 = vpop.permute.xlu0 %874
        %vm877 = vcmask 565680
        %878 = vst.msk [vmem:[#allocation2 + $0xb] sm:$0x1] %vm877, %v875
        %879 = vrot.lane.b32.xlu0 %v864, 56
        %v880 = vpop.permute.xlu0 %879
        %vm882 = vcmask 715328
        %883 = vst.msk [vmem:[#allocation2 + $0x8] sm:$0x7] %vm882, %v880
        %884 = vrot.lane.b32.xlu0 %v873, 56
        %v885 = vpop.permute.xlu0 %884
        %vm887 = vcmask 713280
        %888 = vst.msk [vmem:[#allocation2 + $0xb] sm:$0x1] %vm887, %v885
        %889 = vrot.lane.b32.xlu0 %v864, 58
        %v890 = vpop.permute.xlu0 %889
        %vm892 = vcmask 862928
        %893 = vst.msk [vmem:[#allocation2 + $0x8] sm:$0x7] %vm892, %v890
        %894 = vrot.lane.b32.xlu0 %v873, 58
        %v895 = vpop.permute.xlu0 %894
        %vm897 = vcmask 860880
        %898 = vst.msk [vmem:[#allocation2 + $0xb] sm:$0x1] %vm897, %v895
        %899 = vrot.lane.b32.xlu0 %v864, 60
        %v900 = vpop.permute.xlu0 %899
        %vm902 = vcmask 1010528
        %903 = vst.msk [vmem:[#allocation2 + $0x8] sm:$0x7] %vm902, %v900
        %904 = vrot.lane.b32.xlu0 %v873, 60
        %v905 = vpop.permute.xlu0 %904
        %vm907 = vcmask 1008480
        %908 = vst.msk [vmem:[#allocation2 + $0xb] sm:$0x1] %vm907, %v905
        %909 = vrot.lane.b32.xlu0 %v864, 62
        %v910 = vpop.permute.xlu0 %909
        %vm912 = vcmask 1043440
        %913 = vst.msk [vmem:[#allocation2 + $0x8] sm:$0x7] %vm912, %v910
        %vm914 = vcmask 108544
        %915 = vst.msk [vmem:[#allocation2 + $0x10] sm:$0x7] %vm914, %v910
        %916 = vrot.lane.b32.xlu0 %v873, 62
        %v917 = vpop.permute.xlu0 %916
        %vm919 = vcmask 1041392
        %920 = vst.msk [vmem:[#allocation2 + $0xb] sm:$0x1] %vm919, %v917
        %vm921 = vcmask 106496
        %922 = vst.msk [vmem:[#allocation2 + $0x13] sm:$0x1] %vm921, %v917
        %923 = vrot.lane.b32.xlu0 %v864, 64
        %v924 = vpop.permute.xlu0 %923
        %vm926 = vcmask 256128
        %927 = vst.msk [vmem:[#allocation2 + $0x10] sm:$0x7] %vm926, %v924
        %928 = vrot.lane.b32.xlu0 %v873, 64
        %v929 = vpop.permute.xlu0 %928
        %vm931 = vcmask 254080
        %932 = vst.msk [vmem:[#allocation2 + $0x13] sm:$0x1] %vm931, %v929
        %933 = vrot.lane.b32.xlu0 %v864, 66
        %v934 = vpop.permute.xlu0 %933
        %vm936 = vcmask 403728
        %937 = vst.msk [vmem:[#allocation2 + $0x10] sm:$0x7] %vm936, %v934
        %938 = vrot.lane.b32.xlu0 %v873, 66
        %v939 = vpop.permute.xlu0 %938
        %vm941 = vcmask 401680
        %942 = vst.msk [vmem:[#allocation2 + $0x13] sm:$0x1] %vm941, %v939
        %943 = vrot.lane.b32.xlu0 %v864, 68
        %v944 = vpop.permute.xlu0 %943
        %vm946 = vcmask 551328
        %947 = vst.msk [vmem:[#allocation2 + $0x10] sm:$0x7] %vm946, %v944
        %948 = vrot.lane.b32.xlu0 %v873, 68
        %v949 = vpop.permute.xlu0 %948
        %vm951 = vcmask 549280
        %952 = vst.msk [vmem:[#allocation2 + $0x13] sm:$0x1] %vm951, %v949
        %v953 = vld [vmem:[%s2] sm:$0x7]
        %v954 = vld [vmem:[#allocation2] sm:$0xff]
        %v955 = vld [vmem:[#allocation2 + $0x8] sm:$0xff]
        %v956 = vld [vmem:[#allocation2 + $0x10] sm:$0xff]
        %960 = vrot.lane.b32.xlu0 %v954, 127
        %v961 = vpop.permute.xlu0 %960
        %962 = vrot.lane.b32.xlu0 %v955, 127
        %v963 = vpop.permute.xlu0 %962
        %964 = vrot.lane.b32.xlu0 %v956, 127
        %v965 = vpop.permute.xlu0 %964
        %vm966 = vcmask 1039360
        %v967 = vsel %vm966, %v961, %v963
        %v968 = vsel %vm966, %v963, %v965
        %972 = vrot.lane.b32.xlu0 %v954, 126
        %v973 = vpop.permute.xlu0 %972
        %974 = vrot.lane.b32.xlu0 %v955, 126
        %v975 = vpop.permute.xlu0 %974
        %976 = vrot.lane.b32.xlu0 %v956, 126
        %v977 = vpop.permute.xlu0 %976
        %vm978 = vcmask 1031168
        %v979 = vsel %vm978, %v973, %v975
        %v980 = vsel %vm978, %v975, %v977
        %984 = vrot.lane.b32.xlu0 %v954, 110
        %v985 = vpop.permute.xlu0 %984
        %986 = vrot.lane.b32.xlu0 %v955, 110
        %v987 = vpop.permute.xlu0 %986
        %988 = vrot.lane.b32.xlu0 %v956, 110
        %v989 = vpop.permute.xlu0 %988
        %vm990 = vcmask 900096
        %v991 = vsel %vm990, %v985, %v987
        %v992 = vsel %vm990, %v987, %v989
        %996 = vrot.lane.b32.xlu0 %v954, 109
        %v997 = vpop.permute.xlu0 %996
        %998 = vrot.lane.b32.xlu0 %v955, 109
        %v999 = vpop.permute.xlu0 %998
        %1000 = vrot.lane.b32.xlu0 %v956, 109
        %v1001 = vpop.permute.xlu0 %1000
        %vm1002 = vcmask 891904
        %v1003 = vsel %vm1002, %v997, %v999
        %v1004 = vsel %vm1002, %v999, %v1001
        %1008 = vrot.lane.b32.xlu0 %v954, 108
        %v1009 = vpop.permute.xlu0 %1008
        %1010 = vrot.lane.b32.xlu0 %v955, 108
        %v1011 = vpop.permute.xlu0 %1010
        %1012 = vrot.lane.b32.xlu0 %v956, 108
        %v1013 = vpop.permute.xlu0 %1012
        %vm1014 = vcmask 883712
        %v1015 = vsel %vm1014, %v1009, %v1011
        %v1016 = vsel %vm1014, %v1011, %v1013
        %1020 = vrot.lane.b32.xlu0 %v954, 92
        %v1021 = vpop.permute.xlu0 %1020
        %1022 = vrot.lane.b32.xlu0 %v955, 92
        %v1023 = vpop.permute.xlu0 %1022
        %1024 = vrot.lane.b32.xlu0 %v956, 92
        %v1025 = vpop.permute.xlu0 %1024
        %vm1026 = vcmask 752640
        %v1027 = vsel %vm1026, %v1021, %v1023
        %v1028 = vsel %vm1026, %v1023, %v1025
        %1032 = vrot.lane.b32.xlu0 %v954, 91
        %v1033 = vpop.permute.xlu0 %1032
        %1034 = vrot.lane.b32.xlu0 %v955, 91
        %v1035 = vpop.permute.xlu0 %1034
        %1036 = vrot.lane.b32.xlu0 %v956, 91
        %v1037 = vpop.permute.xlu0 %1036
        %vm1038 = vcmask 744448
        %v1039 = vsel %vm1038, %v1033, %v1035
        %v1040 = vsel %vm1038, %v1035, %v1037
        %1044 = vrot.lane.b32.xlu0 %v954, 90
        %v1045 = vpop.permute.xlu0 %1044
        %1046 = vrot.lane.b32.xlu0 %v955, 90
        %v1047 = vpop.permute.xlu0 %1046
        %1048 = vrot.lane.b32.xlu0 %v956, 90
        %v1049 = vpop.permute.xlu0 %1048
        %vm1050 = vcmask 736256
        %v1051 = vsel %vm1050, %v1045, %v1047
        %v1052 = vsel %vm1050, %v1047, %v1049
        %v1056 = vld [vmem:[%s3] sm:$0xff]
        %vm1057 = vcmask 588800
        %v1059 = vsel %vm1057, %v1056, 0
        %1061 = vmatprep.subr.mxu0 %v955
        %1062 = vmatpush1.msra.mxu0 %v954
        %1063 = vmatprep.subr.mxu0 %v968
        %1064 = vmatpush1.msra.mxu0 %v967
        %1065 = vmatprep.subr.mxu0 %v980
        %1066 = vmatpush1.msra.mxu0 %v979
        %1067 = vmatprep.subr.mxu0 %v992
        %1068 = vmatpush1.msra.mxu0 %v991
        %1069 = vmatprep.subr.mxu0 %v1004
        %1070 = vmatpush1.msra.mxu0 %v1003
        %1071 = vmatprep.subr.mxu0 %v1016
        %1072 = vmatpush1.msra.mxu0 %v1015
        %1073 = vmatprep.subr.mxu0 %v1028
        %1074 = vmatpush1.msra.mxu0 %v1027
        %1075 = vmatprep.subr.mxu0 %v1040
        %1076 = vmatpush1.msra.mxu0 %v1039
        %1077 = vmatprep.subr.mxu0 %v1052
        %1078 = vmatpush1.msra.mxu0 %v1051
        %1079 = vmatprep.subr.mxu0 0.0
        %1080 = vmatpush1.msra.mxu0 0.0
        %1081 = vmatprep.subr.mxu0 0.0
        %1082 = vmatpush1.msra.mxu0 0.0
        %1083 = vmatprep.subr.mxu0 0.0
        %1084 = vmatpush1.msra.mxu0 0.0
        %1085 = vmatprep.subr.mxu0 0.0
        %1086 = vmatpush1.msra.mxu0 0.0
        %1087 = vmatprep.subr.mxu0 0.0
        %1088 = vmatpush1.msra.mxu0 0.0
        %1089 = vmatprep.subr.mxu0 0.0
        %1090 = vmatpush1.msra.mxu0 0.0
        %1091 = vmatprep.subr.mxu0 0.0
        %1092 = vmatpush1.msra.mxu0 0.0
        %1093 = vmatprep.subr.mxu0 0.0
        %1094 = vmatpush1.msra.mxu0 0.0
        %1095 = vmatprep.subr.mxu0 0.0
        %1096 = vmatpush1.msra.mxu0 0.0
        %1097 = vmatprep.subr.mxu0 0.0
        %1098 = vmatpush1.msra.mxu0 0.0
        %1099 = vmatprep.subr.mxu0 0.0
        %1100 = vmatpush1.msra.mxu0 0.0
        %1101 = vmatprep.subr.mxu0 0.0
        %1102 = vmatpush1.msra.mxu0 0.0
        %1103 = vmatprep.subr.mxu0 0.0
        %1104 = vmatpush1.msra.mxu0 0.0
        %1105 = vmatprep.subr.mxu0 0.0
        %1106 = vmatpush1.msra.mxu0 0.0
        %1107 = vmatprep.subr.mxu0 0.0
        %1108 = vmatpush1.msra.mxu0 0.0
        %1109 = vmatprep.subr.mxu0 0.0
        %1110 = vmatpush1.msra.mxu0 0.0
        %1111 = vmatprep.subr.mxu0 0.0
        %1112 = vmatpush1.msra.mxu0 0.0
        %1113 = vmatprep.subr.mxu0 0.0
        %1114 = vmatpush1.msra.mxu0 0.0
        %1115 = vmatprep.subr.mxu0 0.0
        %1116 = vmatpush1.msra.mxu0 0.0
        %1117 = vmatprep.subr.mxu0 0.0
        %1118 = vmatpush1.msra.mxu0 0.0
        %1119 = vmatprep.subr.mxu0 0.0
        %1120 = vmatpush1.msra.mxu0 0.0
        %1121 = vmatprep.subr.mxu0 0.0
        %1122 = vmatpush1.msra.mxu0 0.0
        %1123 = vmatprep.subr.mxu0 0.0
        %1124 = vmatpush1.msra.mxu0 0.0
        %1125 = vmatprep.mubr.f32.mxu0 0.0
        %1126 = vmatmul.mubr.f32.gmra.mrb[0].mxu0 %v1059
        %v1127 = vpop.f32.mrb[0].mxu0
        %v1128 = vadd.f32 0.0, %v1127
        %v1129 = vpop.f32.mrb[0].mxu0
        %v1130 = vadd.f32 0.0, %v1129
        %1131 = vdwg.mxu0
        %1132 = vmatprep.subr.mxu0 0.0
        %1133 = vmatpush1.msra.mxu0 %v956
        %1134 = vmatprep.subr.mxu0 0.0
        %1135 = vmatpush1.msra.mxu0 %v965
        %1136 = vmatprep.subr.mxu0 0.0
        %1137 = vmatpush1.msra.mxu0 %v977
        %1138 = vmatprep.subr.mxu0 0.0
        %1139 = vmatpush1.msra.mxu0 %v989
        %1140 = vmatprep.subr.mxu0 0.0
        %1141 = vmatpush1.msra.mxu0 %v1001
        %1142 = vmatprep.subr.mxu0 0.0
        %1143 = vmatpush1.msra.mxu0 %v1013
        %1144 = vmatprep.subr.mxu0 0.0
        %1145 = vmatpush1.msra.mxu0 %v1025
        %1146 = vmatprep.subr.mxu0 0.0
        %1147 = vmatpush1.msra.mxu0 %v1037
        %1148 = vmatprep.subr.mxu0 0.0
        %1149 = vmatpush1.msra.mxu0 %v1049
        %1150 = vmatprep.subr.mxu0 0.0
        %1151 = vmatpush1.msra.mxu0 0.0
        %1152 = vmatprep.subr.mxu0 0.0
        %1153 = vmatpush1.msra.mxu0 0.0
        %1154 = vmatprep.subr.mxu0 0.0
        %1155 = vmatpush1.msra.mxu0 0.0
        %1156 = vmatprep.subr.mxu0 0.0
        %1157 = vmatpush1.msra.mxu0 0.0
        %1158 = vmatprep.subr.mxu0 0.0
        %1159 = vmatpush1.msra.mxu0 0.0
        %1160 = vmatprep.subr.mxu0 0.0
        %1161 = vmatpush1.msra.mxu0 0.0
        %1162 = vmatprep.subr.mxu0 0.0
        %1163 = vmatpush1.msra.mxu0 0.0
        %1164 = vmatprep.subr.mxu0 0.0
        %1165 = vmatpush1.msra.mxu0 0.0
        %1166 = vmatprep.subr.mxu0 0.0
        %1167 = vmatpush1.msra.mxu0 0.0
        %1168 = vmatprep.subr.mxu0 0.0
        %1169 = vmatpush1.msra.mxu0 0.0
        %1170 = vmatprep.subr.mxu0 0.0
        %1171 = vmatpush1.msra.mxu0 0.0
        %1172 = vmatprep.subr.mxu0 0.0
        %1173 = vmatpush1.msra.mxu0 0.0
        %1174 = vmatprep.subr.mxu0 0.0
        %1175 = vmatpush1.msra.mxu0 0.0
        %1176 = vmatprep.subr.mxu0 0.0
        %1177 = vmatpush1.msra.mxu0 0.0
        %1178 = vmatprep.subr.mxu0 0.0
        %1179 = vmatpush1.msra.mxu0 0.0
        %1180 = vmatprep.subr.mxu0 0.0
        %1181 = vmatpush1.msra.mxu0 0.0
        %1182 = vmatprep.subr.mxu0 0.0
        %1183 = vmatpush1.msra.mxu0 0.0
        %1184 = vmatprep.subr.mxu0 0.0
        %1185 = vmatpush1.msra.mxu0 0.0
        %1186 = vmatprep.subr.mxu0 0.0
        %1187 = vmatpush1.msra.mxu0 0.0
        %1188 = vmatprep.subr.mxu0 0.0
        %1189 = vmatpush1.msra.mxu0 0.0
        %1190 = vmatprep.subr.mxu0 0.0
        %1191 = vmatpush1.msra.mxu0 0.0
        %1192 = vmatprep.subr.mxu0 0.0
        %1193 = vmatpush1.msra.mxu0 0.0
        %1194 = vmatprep.subr.mxu0 0.0
        %1195 = vmatpush1.msra.mxu0 0.0
        %1196 = vmatprep.mubr.f32.mxu0 0.0
        %1197 = vmatmul.mubr.f32.gmra.mrb[0].mxu0 %v1059
        %v1198 = vpop.f32.mrb[0].mxu0
        %v1199 = vadd.f32 0.0, %v1198
        %v1200 = vpop.f32.mrb[0].mxu0
        %1201 = vdwg.mxu0
        %v1202 = vld [vmem:[%s4] sm:$0xff]
        %1204 = vset.pattern.permute.xlu0 0
        %1205 = vperm.xlu0 %1204, %v1202
        %v1206 = vpop.permute.xlu0 %1205
        %v1208 = vmul.f32 %v1128, %v1206
        %v1209 = vmul.f32 %v1130, %v1206
        %v1210 = vmul.f32 %v1199, %v1206
        %v1211 = vld [vmem:[%s5] sm:$0xff]
        %1213 = vset.pattern.permute.xlu0 0
        %1214 = vperm.xlu0 %1213, %v1211
        %v1215 = vpop.permute.xlu0 %1214
        %v1217 = vadd.f32 %v1208, %v1215
        %v1218 = vadd.f32 %v1209, %v1215
        %v1219 = vadd.f32 %v1210, %v1215
        %v1220 = vmax.f32 %v1217, 0.0
        %v1221 = vmax.f32 %v1218, 0.0
        %v1222 = vmax.f32 %v1219, 0.0
        %v1224 = vlaneseq
        %v1225 = vshrl.u32 %v1224, 7
        %v1226 = vsub.s32 0, %v1225
        %v1227 = vrot.slane %v953, %v1226
        %v1228 = vlaneseq
        %v1229 = vshrl.u32 %v1228, 7
        %v1230 = vsub.s32 1, %v1229
        %v1231 = vrot.slane %v953, %v1230
        %v1232 = vlaneseq
        %v1233 = vshrl.u32 %v1232, 7
        %v1234 = vsub.s32 2, %v1233
        %v1235 = vrot.slane %v953, %v1234
        %v1239 = vmul.f32 %v1220, %v1227
        %v1240 = vmul.f32 %v1221, %v1231
        %v1241 = vmul.f32 %v1222, %v1235
        %1245 = vrot.lane.b32.xlu0 %v1239, 19
        %v1246 = vpop.permute.xlu0 %1245
        %1247 = vrot.lane.b32.xlu0 %v1240, 19
        %v1248 = vpop.permute.xlu0 %1247
        %1249 = vrot.lane.b32.xlu0 %v1241, 19
        %v1250 = vpop.permute.xlu0 %1249
        %vm1251 = vcmask 154624
        %v1252 = vsel %vm1251, %v1246, %v1248
        %v1253 = vsel %vm1251, %v1248, %v1250
        %vm1257 = vcmask 1047704
        %1258 = vst.msk [vmem:[#allocation3] sm:$0xff] %vm1257, %v1246
        %1259 = vst [vmem:[#allocation3 + $0x8] sm:$0xff] %v1252
        %vm1260 = vcmask 711680
        %1261 = vst.msk [vmem:[#allocation3 + $0x10] sm:$0xff] %vm1260, %v1253
        %v1262 = vld [vmem:[#allocation3] sm:$0xff]
        %v1263 = vld [vmem:[#allocation3 + $0x8] sm:$0xff]
        %v1264 = vld [vmem:[#allocation3 + $0x10] sm:$0xff]
        %1268 = vrot.lane.b32.xlu0 %v1262, 127
        %v1269 = vpop.permute.xlu0 %1268
        %1270 = vrot.lane.b32.xlu0 %v1263, 127
        %v1271 = vpop.permute.xlu0 %1270
        %1272 = vrot.lane.b32.xlu0 %v1264, 127
        %v1273 = vpop.permute.xlu0 %1272
        %v1274 = vsel %vm966, %v1269, %v1271
        %v1275 = vsel %vm966, %v1271, %v1273
        %1279 = vrot.lane.b32.xlu0 %v1262, 126
        %v1280 = vpop.permute.xlu0 %1279
        %1281 = vrot.lane.b32.xlu0 %v1263, 126
        %v1282 = vpop.permute.xlu0 %1281
        %1283 = vrot.lane.b32.xlu0 %v1264, 126
        %v1284 = vpop.permute.xlu0 %1283
        %v1285 = vsel %vm978, %v1280, %v1282
        %v1286 = vsel %vm978, %v1282, %v1284
        %1290 = vrot.lane.b32.xlu0 %v1262, 110
        %v1291 = vpop.permute.xlu0 %1290
        %1292 = vrot.lane.b32.xlu0 %v1263, 110
        %v1293 = vpop.permute.xlu0 %1292
        %1294 = vrot.lane.b32.xlu0 %v1264, 110
        %v1295 = vpop.permute.xlu0 %1294
        %v1296 = vsel %vm990, %v1291, %v1293
        %v1297 = vsel %vm990, %v1293, %v1295
        %1301 = vrot.lane.b32.xlu0 %v1262, 109
        %v1302 = vpop.permute.xlu0 %1301
        %1303 = vrot.lane.b32.xlu0 %v1263, 109
        %v1304 = vpop.permute.xlu0 %1303
        %1305 = vrot.lane.b32.xlu0 %v1264, 109
        %v1306 = vpop.permute.xlu0 %1305
        %v1307 = vsel %vm1002, %v1302, %v1304
        %v1308 = vsel %vm1002, %v1304, %v1306
        %1312 = vrot.lane.b32.xlu0 %v1262, 108
        %v1313 = vpop.permute.xlu0 %1312
        %1314 = vrot.lane.b32.xlu0 %v1263, 108
        %v1315 = vpop.permute.xlu0 %1314
        %1316 = vrot.lane.b32.xlu0 %v1264, 108
        %v1317 = vpop.permute.xlu0 %1316
        %v1318 = vsel %vm1014, %v1313, %v1315
        %v1319 = vsel %vm1014, %v1315, %v1317
        %1323 = vrot.lane.b32.xlu0 %v1262, 92
        %v1324 = vpop.permute.xlu0 %1323
        %1325 = vrot.lane.b32.xlu0 %v1263, 92
        %v1326 = vpop.permute.xlu0 %1325
        %1327 = vrot.lane.b32.xlu0 %v1264, 92
        %v1328 = vpop.permute.xlu0 %1327
        %v1329 = vsel %vm1026, %v1324, %v1326
        %v1330 = vsel %vm1026, %v1326, %v1328
        %1334 = vrot.lane.b32.xlu0 %v1262, 91
        %v1335 = vpop.permute.xlu0 %1334
        %1336 = vrot.lane.b32.xlu0 %v1263, 91
        %v1337 = vpop.permute.xlu0 %1336
        %1338 = vrot.lane.b32.xlu0 %v1264, 91
        %v1339 = vpop.permute.xlu0 %1338
        %v1340 = vsel %vm1038, %v1335, %v1337
        %v1341 = vsel %vm1038, %v1337, %v1339
        %1345 = vrot.lane.b32.xlu0 %v1262, 90
        %v1346 = vpop.permute.xlu0 %1345
        %1347 = vrot.lane.b32.xlu0 %v1263, 90
        %v1348 = vpop.permute.xlu0 %1347
        %1349 = vrot.lane.b32.xlu0 %v1264, 90
        %v1350 = vpop.permute.xlu0 %1349
        %v1351 = vsel %vm1050, %v1346, %v1348
        %v1352 = vsel %vm1050, %v1348, %v1350
        %v1356 = vld [vmem:[%s6] sm:$0xff]
        %v1357 = vld [vmem:[%s6 + $0x8] sm:$0xff]
        %v1359 = vsel %vm1057, %v1356, 0
        %v1362 = vsel %vm1057, %v1357, 0
        %1364 = vmatprep.subr.mxu0 %v1263
        %1365 = vmatpush1.msra.mxu0 %v1262
        %1366 = vmatprep.subr.mxu0 %v1275
        %1367 = vmatpush1.msra.mxu0 %v1274
        %1368 = vmatprep.subr.mxu0 %v1286
        %1369 = vmatpush1.msra.mxu0 %v1285
        %1370 = vmatprep.subr.mxu0 %v1297
        %1371 = vmatpush1.msra.mxu0 %v1296
        %1372 = vmatprep.subr.mxu0 %v1308
        %1373 = vmatpush1.msra.mxu0 %v1307
        %1374 = vmatprep.subr.mxu0 %v1319
        %1375 = vmatpush1.msra.mxu0 %v1318
        %1376 = vmatprep.subr.mxu0 %v1330
        %1377 = vmatpush1.msra.mxu0 %v1329
        %1378 = vmatprep.subr.mxu0 %v1341
        %1379 = vmatpush1.msra.mxu0 %v1340
        %1380 = vmatprep.subr.mxu0 %v1352
        %1381 = vmatpush1.msra.mxu0 %v1351
        %1382 = vmatprep.subr.mxu0 0.0
        %1383 = vmatpush1.msra.mxu0 0.0
        %1384 = vmatprep.subr.mxu0 0.0
        %1385 = vmatpush1.msra.mxu0 0.0
        %1386 = vmatprep.subr.mxu0 0.0
        %1387 = vmatpush1.msra.mxu0 0.0
        %1388 = vmatprep.subr.mxu0 0.0
        %1389 = vmatpush1.msra.mxu0 0.0
        %1390 = vmatprep.subr.mxu0 0.0
        %1391 = vmatpush1.msra.mxu0 0.0
        %1392 = vmatprep.subr.mxu0 0.0
        %1393 = vmatpush1.msra.mxu0 0.0
        %1394 = vmatprep.subr.mxu0 0.0
        %1395 = vmatpush1.msra.mxu0 0.0
        %1396 = vmatprep.subr.mxu0 0.0
        %1397 = vmatpush1.msra.mxu0 0.0
        %1398 = vmatprep.subr.mxu0 0.0
        %1399 = vmatpush1.msra.mxu0 0.0
        %1400 = vmatprep.subr.mxu0 0.0
        %1401 = vmatpush1.msra.mxu0 0.0
        %1402 = vmatprep.subr.mxu0 0.0
        %1403 = vmatpush1.msra.mxu0 0.0
        %1404 = vmatprep.subr.mxu0 0.0
        %1405 = vmatpush1.msra.mxu0 0.0
        %1406 = vmatprep.subr.mxu0 0.0
        %1407 = vmatpush1.msra.mxu0 0.0
        %1408 = vmatprep.subr.mxu0 0.0
        %1409 = vmatpush1.msra.mxu0 0.0
        %1410 = vmatprep.subr.mxu0 0.0
        %1411 = vmatpush1.msra.mxu0 0.0
        %1412 = vmatprep.subr.mxu0 0.0
        %1413 = vmatpush1.msra.mxu0 0.0
        %1414 = vmatprep.subr.mxu0 0.0
        %1415 = vmatpush1.msra.mxu0 0.0
        %1416 = vmatprep.subr.mxu0 0.0
        %1417 = vmatpush1.msra.mxu0 0.0
        %1418 = vmatprep.subr.mxu0 0.0
        %1419 = vmatpush1.msra.mxu0 0.0
        %1420 = vmatprep.subr.mxu0 0.0
        %1421 = vmatpush1.msra.mxu0 0.0
        %1422 = vmatprep.subr.mxu0 0.0
        %1423 = vmatpush1.msra.mxu0 0.0
        %1424 = vmatprep.subr.mxu0 0.0
        %1425 = vmatpush1.msra.mxu0 0.0
        %1426 = vmatprep.subr.mxu0 0.0
        %1427 = vmatpush1.msra.mxu0 0.0
        %1428 = vmatprep.mubr.f32.mxu0 0.0
        %1429 = vmatmul.mubr.f32.gmra.mrb[0].mxu0 %v1359
        %v1430 = vpop.f32.mrb[0].mxu0
        %v1431 = vadd.f32 0.0, %v1430
        %v1432 = vpop.f32.mrb[0].mxu0
        %v1433 = vadd.f32 0.0, %v1432
        %1434 = vmatprep.mubr.f32.mxu0 0.0
        %1435 = vmatmul.mubr.f32.gmra.mrb[0].mxu0 %v1362
        %v1436 = vpop.f32.mrb[0].mxu0
        %v1437 = vadd.f32 0.0, %v1436
        %v1438 = vpop.f32.mrb[0].mxu0
        %v1439 = vadd.f32 0.0, %v1438
        %1440 = vdwg.mxu0
        %1441 = vmatprep.subr.mxu0 0.0
        %1442 = vmatpush1.msra.mxu0 %v1264
        %1443 = vmatprep.subr.mxu0 0.0
        %1444 = vmatpush1.msra.mxu0 %v1273
        %1445 = vmatprep.subr.mxu0 0.0
        %1446 = vmatpush1.msra.mxu0 %v1284
        %1447 = vmatprep.subr.mxu0 0.0
        %1448 = vmatpush1.msra.mxu0 %v1295
        %1449 = vmatprep.subr.mxu0 0.0
        %1450 = vmatpush1.msra.mxu0 %v1306
        %1451 = vmatprep.subr.mxu0 0.0
        %1452 = vmatpush1.msra.mxu0 %v1317
        %1453 = vmatprep.subr.mxu0 0.0
        %1454 = vmatpush1.msra.mxu0 %v1328
        %1455 = vmatprep.subr.mxu0 0.0
        %1456 = vmatpush1.msra.mxu0 %v1339
        %1457 = vmatprep.subr.mxu0 0.0
        %1458 = vmatpush1.msra.mxu0 %v1350
        %1459 = vmatprep.subr.mxu0 0.0
        %1460 = vmatpush1.msra.mxu0 0.0
        %1461 = vmatprep.subr.mxu0 0.0
        %1462 = vmatpush1.msra.mxu0 0.0
        %1463 = vmatprep.subr.mxu0 0.0
        %1464 = vmatpush1.msra.mxu0 0.0
        %1465 = vmatprep.subr.mxu0 0.0
        %1466 = vmatpush1.msra.mxu0 0.0
        %1467 = vmatprep.subr.mxu0 0.0
        %1468 = vmatpush1.msra.mxu0 0.0
        %1469 = vmatprep.subr.mxu0 0.0
        %1470 = vmatpush1.msra.mxu0 0.0
        %1471 = vmatprep.subr.mxu0 0.0
        %1472 = vmatpush1.msra.mxu0 0.0
        %1473 = vmatprep.subr.mxu0 0.0
        %1474 = vmatpush1.msra.mxu0 0.0
        %1475 = vmatprep.subr.mxu0 0.0
        %1476 = vmatpush1.msra.mxu0 0.0
        %1477 = vmatprep.subr.mxu0 0.0
        %1478 = vmatpush1.msra.mxu0 0.0
        %1479 = vmatprep.subr.mxu0 0.0
        %1480 = vmatpush1.msra.mxu0 0.0
        %1481 = vmatprep.subr.mxu0 0.0
        %1482 = vmatpush1.msra.mxu0 0.0
        %1483 = vmatprep.subr.mxu0 0.0
        %1484 = vmatpush1.msra.mxu0 0.0
        %1485 = vmatprep.subr.mxu0 0.0
        %1486 = vmatpush1.msra.mxu0 0.0
        %1487 = vmatprep.subr.mxu0 0.0
        %1488 = vmatpush1.msra.mxu0 0.0
        %1489 = vmatprep.subr.mxu0 0.0
        %1490 = vmatpush1.msra.mxu0 0.0
        %1491 = vmatprep.subr.mxu0 0.0
        %1492 = vmatpush1.msra.mxu0 0.0
        %1493 = vmatprep.subr.mxu0 0.0
        %1494 = vmatpush1.msra.mxu0 0.0
        %1495 = vmatprep.subr.mxu0 0.0
        %1496 = vmatpush1.msra.mxu0 0.0
        %1497 = vmatprep.subr.mxu0 0.0
        %1498 = vmatpush1.msra.mxu0 0.0
        %1499 = vmatprep.subr.mxu0 0.0
        %1500 = vmatpush1.msra.mxu0 0.0
        %1501 = vmatprep.subr.mxu0 0.0
        %1502 = vmatpush1.msra.mxu0 0.0
        %1503 = vmatprep.subr.mxu0 0.0
        %1504 = vmatpush1.msra.mxu0 0.0
        %1505 = vmatprep.mubr.f32.mxu0 0.0
        %1506 = vmatmul.mubr.f32.gmra.mrb[0].mxu0 %v1359
        %v1507 = vpop.f32.mrb[0].mxu0
        %v1508 = vadd.f32 0.0, %v1507
        %v1509 = vpop.f32.mrb[0].mxu0
        %1510 = vmatprep.mubr.f32.mxu0 0.0
        %1511 = vmatmul.mubr.f32.gmra.mrb[0].mxu0 %v1362
        %v1512 = vpop.f32.mrb[0].mxu0
        %v1513 = vadd.f32 0.0, %v1512
        %v1514 = vpop.f32.mrb[0].mxu0
        %1515 = vdwg.mxu0
        %v1516 = vld [vmem:[%s7] sm:$0xff]
        %v1517 = vld [vmem:[%s7 + $0x8] sm:$0xff]
        %1519 = vset.pattern.permute.xlu0 0
        %1520 = vperm.xlu0 %1519, %v1516
        %v1521 = vpop.permute.xlu0 %1520
        %1524 = vset.pattern.permute.xlu0 0
        %1525 = vperm.xlu0 %1524, %v1517
        %v1526 = vpop.permute.xlu0 %1525
        %v1528 = vmul.f32 %v1431, %v1521
        %v1529 = vmul.f32 %v1433, %v1521
        %v1530 = vmul.f32 %v1508, %v1521
        %v1531 = vmul.f32 %v1437, %v1526
        %v1532 = vmul.f32 %v1439, %v1526
        %v1533 = vmul.f32 %v1513, %v1526
        %v1534 = vld [vmem:[%s8] sm:$0xff]
        %v1535 = vld [vmem:[%s8 + $0x8] sm:$0xff]
        %1537 = vset.pattern.permute.xlu0 0
        %1538 = vperm.xlu0 %1537, %v1534
        %v1539 = vpop.permute.xlu0 %1538
        %1542 = vset.pattern.permute.xlu0 0
        %1543 = vperm.xlu0 %1542, %v1535
        %v1544 = vpop.permute.xlu0 %1543
        %v1546 = vadd.f32 %v1528, %v1539
        %v1547 = vadd.f32 %v1529, %v1539
        %v1548 = vadd.f32 %v1530, %v1539
        %v1549 = vadd.f32 %v1531, %v1544
        %v1550 = vadd.f32 %v1532, %v1544
        %v1551 = vadd.f32 %v1533, %v1544
        %v1552 = vmax.f32 %v1546, 0.0
        %v1553 = vmax.f32 %v1547, 0.0
        %v1554 = vmax.f32 %v1548, 0.0
        %v1555 = vmax.f32 %v1549, 0.0
        %v1556 = vmax.f32 %v1550, 0.0
        %v1557 = vmax.f32 %v1551, 0.0
        %v1558 = vld [vmem:[%s21] sm:$0xff]
        %v1559 = vld [vmem:[%s21 + $0x8] sm:$0xff]
        %v1560 = vld [vmem:[%s21 + $0x10] sm:$0x3]
        %1563 = vrot.lane.b32.xlu0 %v1552, 92
        %v1564 = vpop.permute.xlu0 %1563
        %1565 = vrot.lane.b32.xlu0 %v1555, 92
        %v1566 = vpop.permute.xlu0 %1565
        %1567 = vrot.lane.b32.xlu0 %v1552, 56
        %v1568 = vpop.permute.xlu0 %1567
        %1569 = vrot.lane.b32.xlu0 %v1555, 56
        %v1570 = vpop.permute.xlu0 %1569
        %1573 = vrot.lane.b32.xlu0 %v1552, 20
        %v1574 = vpop.permute.xlu0 %1573
        %1575 = vrot.lane.b32.xlu0 %v1553, 20
        %v1576 = vpop.permute.xlu0 %1575
        %1577 = vrot.lane.b32.xlu0 %v1555, 20
        %v1578 = vpop.permute.xlu0 %1577
        %1579 = vrot.lane.b32.xlu0 %v1556, 20
        %v1580 = vpop.permute.xlu0 %1579
        %vm1581 = vcmask 162816
        %v1582 = vsel %vm1581, %v1574, %v1576
        %v1583 = vsel %vm1581, %v1578, %v1580
        %1584 = vrot.lane.b32.xlu0 %v1553, 112
        %v1585 = vpop.permute.xlu0 %1584
        %1586 = vrot.lane.b32.xlu0 %v1556, 112
        %v1587 = vpop.permute.xlu0 %1586
        %1588 = vrot.lane.b32.xlu0 %v1553, 76
        %v1589 = vpop.permute.xlu0 %1588
        %1590 = vrot.lane.b32.xlu0 %v1556, 76
        %v1591 = vpop.permute.xlu0 %1590
        %1592 = vrot.lane.b32.xlu0 %v1553, 40
        %v1593 = vpop.permute.xlu0 %1592
        %1594 = vrot.lane.b32.xlu0 %v1556, 40
        %v1595 = vpop.permute.xlu0 %1594
        %1598 = vrot.lane.b32.xlu0 %v1554, 4
        %v1599 = vpop.permute.xlu0 %1598
        %1600 = vrot.lane.b32.xlu0 %v1557, 4
        %v1601 = vpop.permute.xlu0 %1600
        %1602 = vrot.lane.b32.xlu0 %v1552, 110
        %v1603 = vpop.permute.xlu0 %1602
        %1604 = vrot.lane.b32.xlu0 %v1555, 110
        %v1605 = vpop.permute.xlu0 %1604
        %1606 = vrot.lane.b32.xlu0 %v1564, 110
        %v1607 = vpop.permute.xlu0 %1606
        %1608 = vrot.lane.b32.xlu0 %v1566, 110
        %v1609 = vpop.permute.xlu0 %1608
        %1610 = vrot.lane.b32.xlu0 %v1568, 110
        %v1611 = vpop.permute.xlu0 %1610
        %1612 = vrot.lane.b32.xlu0 %v1570, 110
        %v1613 = vpop.permute.xlu0 %1612
        %1614 = vrot.lane.b32.xlu0 %v1582, 110
        %v1615 = vpop.permute.xlu0 %1614
        %1616 = vrot.lane.b32.xlu0 %v1583, 110
        %v1617 = vpop.permute.xlu0 %1616
        %1618 = vrot.lane.b32.xlu0 %v1585, 110
        %v1619 = vpop.permute.xlu0 %1618
        %1620 = vrot.lane.b32.xlu0 %v1587, 110
        %v1621 = vpop.permute.xlu0 %1620
        %1622 = vrot.lane.b32.xlu0 %v1589, 110
        %v1623 = vpop.permute.xlu0 %1622
        %1624 = vrot.lane.b32.xlu0 %v1591, 110
        %v1625 = vpop.permute.xlu0 %1624
        %1626 = vrot.lane.b32.xlu0 %v1593, 110
        %v1627 = vpop.permute.xlu0 %1626
        %1628 = vrot.lane.b32.xlu0 %v1595, 110
        %v1629 = vpop.permute.xlu0 %1628
        %1630 = vrot.lane.b32.xlu0 %v1599, 110
        %v1631 = vpop.permute.xlu0 %1630
        %1632 = vrot.lane.b32.xlu0 %v1601, 110
        %v1633 = vpop.permute.xlu0 %1632
        %vm1634 = vcmask 146432
        %v1635 = vsel %vm1634, %v1603, 0
        %v1637 = vsel %vm1634, %v1605, 0
        %v1639 = vsel %vm1634, %v1607, 0
        %v1641 = vsel %vm1634, %v1609, 0
        %v1643 = vsel %vm1634, %v1611, 0
        %v1645 = vsel %vm1634, %v1613, 0
        %v1647 = vsel %vm1634, %v1615, 0
        %v1649 = vsel %vm1634, %v1617, 0
        %v1651 = vsel %vm1634, %v1619, 0
        %v1653 = vsel %vm1634, %v1621, 0
        %v1655 = vsel %vm1634, %v1623, 0
        %v1657 = vsel %vm1634, %v1625, 0
        %v1659 = vsel %vm1634, %v1627, 0
        %v1661 = vsel %vm1634, %v1629, 0
        %v1663 = vsel %vm1634, %v1631, 0
        %v1665 = vsel %vm1634, %v1633, 0
        %vm1667 = vcmask 1041408
        %v1669 = vsel %vm1667, %v1560, 0
        %1671 = vmatprep.subr.mxu0 0.0
        %1672 = vmatpush1.msra.mxu0 %v1558
        %1673 = vmatprep.subr.mxu0 0.0
        %1674 = vmatpush1.msra.mxu0 %v1559
        %1675 = vmatprep.subr.mxu0 0.0
        %1676 = vmatpush1.msra.mxu0 %v1669
        %1677 = vmatprep.subr.mxu0 0.0
        %1678 = vmatpush1.msra.mxu0 0.0
        %1679 = vmatprep.subr.mxu0 0.0
        %1680 = vmatpush1.msra.mxu0 0.0
        %1681 = vmatprep.subr.mxu0 0.0
        %1682 = vmatpush1.msra.mxu0 0.0
        %1683 = vmatprep.subr.mxu0 0.0
        %1684 = vmatpush1.msra.mxu0 0.0
        %1685 = vmatprep.subr.mxu0 0.0
        %1686 = vmatpush1.msra.mxu0 0.0
        %1687 = vmatprep.subr.mxu0 0.0
        %1688 = vmatpush1.msra.mxu0 0.0
        %1689 = vmatprep.subr.mxu0 0.0
        %1690 = vmatpush1.msra.mxu0 0.0
        %1691 = vmatprep.subr.mxu0 0.0
        %1692 = vmatpush1.msra.mxu0 0.0
        %1693 = vmatprep.subr.mxu0 0.0
        %1694 = vmatpush1.msra.mxu0 0.0
        %1695 = vmatprep.subr.mxu0 0.0
        %1696 = vmatpush1.msra.mxu0 0.0
        %1697 = vmatprep.subr.mxu0 0.0
        %1698 = vmatpush1.msra.mxu0 0.0
        %1699 = vmatprep.subr.mxu0 0.0
        %1700 = vmatpush1.msra.mxu0 0.0
        %1701 = vmatprep.subr.mxu0 0.0
        %1702 = vmatpush1.msra.mxu0 0.0
        %1703 = vmatprep.subr.mxu0 0.0
        %1704 = vmatpush1.msra.mxu0 0.0
        %1705 = vmatprep.subr.mxu0 0.0
        %1706 = vmatpush1.msra.mxu0 0.0
        %1707 = vmatprep.subr.mxu0 0.0
        %1708 = vmatpush1.msra.mxu0 0.0
        %1709 = vmatprep.subr.mxu0 0.0
        %1710 = vmatpush1.msra.mxu0 0.0
        %1711 = vmatprep.subr.mxu0 0.0
        %1712 = vmatpush1.msra.mxu0 0.0
        %1713 = vmatprep.subr.mxu0 0.0
        %1714 = vmatpush1.msra.mxu0 0.0
        %1715 = vmatprep.subr.mxu0 0.0
        %1716 = vmatpush1.msra.mxu0 0.0
        %1717 = vmatprep.subr.mxu0 0.0
        %1718 = vmatpush1.msra.mxu0 0.0
        %1719 = vmatprep.subr.mxu0 0.0
        %1720 = vmatpush1.msra.mxu0 0.0
        %1721 = vmatprep.subr.mxu0 0.0
        %1722 = vmatpush1.msra.mxu0 0.0
        %1723 = vmatprep.subr.mxu0 0.0
        %1724 = vmatpush1.msra.mxu0 0.0
        %1725 = vmatprep.subr.mxu0 0.0
        %1726 = vmatpush1.msra.mxu0 0.0
        %1727 = vmatprep.subr.mxu0 0.0
        %1728 = vmatpush1.msra.mxu0 0.0
        %1729 = vmatprep.subr.mxu0 0.0
        %1730 = vmatpush1.msra.mxu0 0.0
        %1731 = vmatprep.subr.mxu0 0.0
        %1732 = vmatpush1.msra.mxu0 0.0
        %1733 = vmatprep.subr.mxu0 0.0
        %1734 = vmatpush1.msra.mxu0 0.0
        %1735 = vmatprep.mubr.f32.mxu0 0.0
        %1736 = vmatmul.mubr.f32.gmra.mrb[0].mxu0 %v1635
        %v1737 = vpop.f32.mrb[0].mxu0
        %v1738 = vadd.f32 0.0, %v1737
        %v1739 = vpop.f32.mrb[0].mxu0
        %1740 = vmatprep.mubr.f32.mxu0 0.0
        %1741 = vmatmul.mubr.f32.gmra.mrb[0].mxu0 %v1637
        %v1742 = vpop.f32.mrb[0].mxu0
        %v1743 = vadd.f32 0.0, %v1742
        %v1744 = vpop.f32.mrb[0].mxu0
        %1745 = vmatprep.mubr.f32.mxu0 0.0
        %1746 = vmatmul.mubr.f32.gmra.mrb[0].mxu0 %v1639
        %v1747 = vpop.f32.mrb[0].mxu0
        %v1748 = vadd.f32 0.0, %v1747
        %v1749 = vpop.f32.mrb[0].mxu0
        %1750 = vmatprep.mubr.f32.mxu0 0.0
        %1751 = vmatmul.mubr.f32.gmra.mrb[0].mxu0 %v1641
        %v1752 = vpop.f32.mrb[0].mxu0
        %v1753 = vadd.f32 0.0, %v1752
        %v1754 = vpop.f32.mrb[0].mxu0
        %1755 = vmatprep.mubr.f32.mxu0 0.0
        %1756 = vmatmul.mubr.f32.gmra.mrb[0].mxu0 %v1643
        %v1757 = vpop.f32.mrb[0].mxu0
        %v1758 = vadd.f32 0.0, %v1757
        %v1759 = vpop.f32.mrb[0].mxu0
        %1760 = vmatprep.mubr.f32.mxu0 0.0
        %1761 = vmatmul.mubr.f32.gmra.mrb[0].mxu0 %v1645
        %v1762 = vpop.f32.mrb[0].mxu0
        %v1763 = vadd.f32 0.0, %v1762
        %v1764 = vpop.f32.mrb[0].mxu0
        %1765 = vmatprep.mubr.f32.mxu0 0.0
        %1766 = vmatmul.mubr.f32.gmra.mrb[0].mxu0 %v1647
        %v1767 = vpop.f32.mrb[0].mxu0
        %v1768 = vadd.f32 0.0, %v1767
        %v1769 = vpop.f32.mrb[0].mxu0
        %1770 = vmatprep.mubr.f32.mxu0 0.0
        %1771 = vmatmul.mubr.f32.gmra.mrb[0].mxu0 %v1649
        %v1772 = vpop.f32.mrb[0].mxu0
        %v1773 = vadd.f32 0.0, %v1772
        %v1774 = vpop.f32.mrb[0].mxu0
        %1775 = vmatprep.mubr.f32.mxu0 0.0
        %1776 = vmatmul.mubr.f32.gmra.mrb[0].mxu0 %v1651
        %v1777 = vpop.f32.mrb[0].mxu0
        %v1778 = vadd.f32 0.0, %v1777
        %v1779 = vpop.f32.mrb[0].mxu0
        %1780 = vmatprep.mubr.f32.mxu0 0.0
        %1781 = vmatmul.mubr.f32.gmra.mrb[0].mxu0 %v1653
        %v1782 = vpop.f32.mrb[0].mxu0
        %v1783 = vadd.f32 0.0, %v1782
        %v1784 = vpop.f32.mrb[0].mxu0
        %1785 = vmatprep.mubr.f32.mxu0 0.0
        %1786 = vmatmul.mubr.f32.gmra.mrb[0].mxu0 %v1655
        %v1787 = vpop.f32.mrb[0].mxu0
        %v1788 = vadd.f32 0.0, %v1787
        %v1789 = vpop.f32.mrb[0].mxu0
        %1790 = vmatprep.mubr.f32.mxu0 0.0
        %1791 = vmatmul.mubr.f32.gmra.mrb[0].mxu0 %v1657
        %v1792 = vpop.f32.mrb[0].mxu0
        %v1793 = vadd.f32 0.0, %v1792
        %v1794 = vpop.f32.mrb[0].mxu0
        %1795 = vmatprep.mubr.f32.mxu0 0.0
        %1796 = vmatmul.mubr.f32.gmra.mrb[0].mxu0 %v1659
        %v1797 = vpop.f32.mrb[0].mxu0
        %v1798 = vadd.f32 0.0, %v1797
        %v1799 = vpop.f32.mrb[0].mxu0
        %1800 = vmatprep.mubr.f32.mxu0 0.0
        %1801 = vmatmul.mubr.f32.gmra.mrb[0].mxu0 %v1661
        %v1802 = vpop.f32.mrb[0].mxu0
        %v1803 = vadd.f32 0.0, %v1802
        %v1804 = vpop.f32.mrb[0].mxu0
        %1805 = vmatprep.mubr.f32.mxu0 0.0
        %1806 = vmatmul.mubr.f32.gmra.mrb[0].mxu0 %v1663
        %v1807 = vpop.f32.mrb[0].mxu0
        %v1808 = vadd.f32 0.0, %v1807
        %v1809 = vpop.f32.mrb[0].mxu0
        %1810 = vmatprep.mubr.f32.mxu0 0.0
        %1811 = vmatmul.mubr.f32.gmra.mrb[0].mxu0 %v1665
        %v1812 = vpop.f32.mrb[0].mxu0
        %v1813 = vadd.f32 0.0, %v1812
        %v1814 = vpop.f32.mrb[0].mxu0
        %1815 = vdwg.mxu0
        %1818 = vrot.lane.b32.xlu0 %v1738, 21
        %v1819 = vpop.permute.xlu0 %1818
        %1820 = vrot.lane.b32.xlu0 %v1743, 21
        %v1821 = vpop.permute.xlu0 %1820
        %vm1824 = vcmask 253096
        %1825 = vst.msk [vmem:[#allocation4] sm:$0xff] %vm1824, %v1819
        %1826 = vst.msk [vmem:[#allocation4 + $0x8] sm:$0xff] %vm1824, %v1821
        %1829 = vrot.lane.b32.xlu0 %v1748, 31
        %v1830 = vpop.permute.xlu0 %1829
        %1831 = vrot.lane.b32.xlu0 %v1753, 31
        %v1832 = vpop.permute.xlu0 %1831
        %vm1835 = vcmask 335096
        %1836 = vst.msk [vmem:[#allocation4] sm:$0xff] %vm1835, %v1830
        %1837 = vst.msk [vmem:[#allocation4 + $0x8] sm:$0xff] %vm1835, %v1832
        %1840 = vrot.lane.b32.xlu0 %v1758, 41
        %v1841 = vpop.permute.xlu0 %1840
        %1842 = vrot.lane.b32.xlu0 %v1763, 41
        %v1843 = vpop.permute.xlu0 %1842
        %vm1846 = vcmask 417096
        %1847 = vst.msk [vmem:[#allocation4] sm:$0xff] %vm1846, %v1841
        %1848 = vst.msk [vmem:[#allocation4 + $0x8] sm:$0xff] %vm1846, %v1843
        %1851 = vrot.lane.b32.xlu0 %v1768, 51
        %v1852 = vpop.permute.xlu0 %1851
        %1853 = vrot.lane.b32.xlu0 %v1773, 51
        %v1854 = vpop.permute.xlu0 %1853
        %vm1857 = vcmask 499096
        %1858 = vst.msk [vmem:[#allocation4] sm:$0xff] %vm1857, %v1852
        %1859 = vst.msk [vmem:[#allocation4 + $0x8] sm:$0xff] %vm1857, %v1854
        %1862 = vrot.lane.b32.xlu0 %v1778, 61
        %v1863 = vpop.permute.xlu0 %1862
        %1864 = vrot.lane.b32.xlu0 %v1783, 61
        %v1865 = vpop.permute.xlu0 %1864
        %vm1868 = vcmask 581096
        %1869 = vst.msk [vmem:[#allocation4] sm:$0xff] %vm1868, %v1863
        %1870 = vst.msk [vmem:[#allocation4 + $0x8] sm:$0xff] %vm1868, %v1865
        %1873 = vrot.lane.b32.xlu0 %v1788, 71
        %v1874 = vpop.permute.xlu0 %1873
        %1875 = vrot.lane.b32.xlu0 %v1793, 71
        %v1876 = vpop.permute.xlu0 %1875
        %vm1879 = vcmask 663096
        %1880 = vst.msk [vmem:[#allocation4] sm:$0xff] %vm1879, %v1874
        %1881 = vst.msk [vmem:[#allocation4 + $0x8] sm:$0xff] %vm1879, %v1876
        %1884 = vrot.lane.b32.xlu0 %v1798, 81
        %v1885 = vpop.permute.xlu0 %1884
        %1886 = vrot.lane.b32.xlu0 %v1803, 81
        %v1887 = vpop.permute.xlu0 %1886
        %vm1890 = vcmask 745096
        %1891 = vst.msk [vmem:[#allocation4] sm:$0xff] %vm1890, %v1885
        %1892 = vst.msk [vmem:[#allocation4 + $0x8] sm:$0xff] %vm1890, %v1887
        %1895 = vrot.lane.b32.xlu0 %v1808, 91
        %v1896 = vpop.permute.xlu0 %1895
        %1897 = vrot.lane.b32.xlu0 %v1813, 91
        %v1898 = vpop.permute.xlu0 %1897
        %vm1901 = vcmask 827096
        %1902 = vst.msk [vmem:[#allocation4] sm:$0xff] %vm1901, %v1896
        %1903 = vst.msk [vmem:[#allocation4 + $0x8] sm:$0xff] %vm1901, %v1898
        %v1904 = vld [vmem:[#allocation4] sm:$0xff]
        %v1905 = vld [vmem:[#allocation4 + $0x8] sm:$0xff]
        %1908 = vrot.lane.b32.xlu0 %v1904, 127
        %v1909 = vpop.permute.xlu0 %1908
        %1910 = vrot.lane.b32.xlu0 %v1905, 127
        %v1911 = vpop.permute.xlu0 %1910
        %1914 = vrot.lane.b32.xlu0 %v1904, 126
        %v1915 = vpop.permute.xlu0 %1914
        %1916 = vrot.lane.b32.xlu0 %v1905, 126
        %v1917 = vpop.permute.xlu0 %1916
        %1920 = vrot.lane.b32.xlu0 %v1904, 118
        %v1921 = vpop.permute.xlu0 %1920
        %1922 = vrot.lane.b32.xlu0 %v1905, 118
        %v1923 = vpop.permute.xlu0 %1922
        %1926 = vrot.lane.b32.xlu0 %v1904, 117
        %v1927 = vpop.permute.xlu0 %1926
        %1928 = vrot.lane.b32.xlu0 %v1905, 117
        %v1929 = vpop.permute.xlu0 %1928
        %1932 = vrot.lane.b32.xlu0 %v1904, 116
        %v1933 = vpop.permute.xlu0 %1932
        %1934 = vrot.lane.b32.xlu0 %v1905, 116
        %v1935 = vpop.permute.xlu0 %1934
        %1938 = vrot.lane.b32.xlu0 %v1904, 108
        %v1939 = vpop.permute.xlu0 %1938
        %1940 = vrot.lane.b32.xlu0 %v1905, 108
        %v1941 = vpop.permute.xlu0 %1940
        %1944 = vrot.lane.b32.xlu0 %v1904, 107
        %v1945 = vpop.permute.xlu0 %1944
        %1946 = vrot.lane.b32.xlu0 %v1905, 107
        %v1947 = vpop.permute.xlu0 %1946
        %1950 = vrot.lane.b32.xlu0 %v1904, 106
        %v1951 = vpop.permute.xlu0 %1950
        %1952 = vrot.lane.b32.xlu0 %v1905, 106
        %v1953 = vpop.permute.xlu0 %1952
        %v1956 = vld [vmem:[%s9] sm:$0xff]
        %v1957 = vld [vmem:[%s9 + $0x8] sm:$0xff]
        %v1958 = vld [vmem:[%s9 + $0x10] sm:$0xff]
        %v1959 = vld [vmem:[%s9 + $0x18] sm:$0xff]
        %v1960 = vld [vmem:[%s9 + $0x20] sm:$0xff]
        %v1961 = vld [vmem:[%s9 + $0x28] sm:$0xff]
        %v1962 = vld [vmem:[%s9 + $0x30] sm:$0xff]
        %v1963 = vld [vmem:[%s9 + $0x38] sm:$0xff]
        %vm1964 = vcmask 130048
        %v1966 = vsel %vm1964, %v1957, 0
        %v1969 = vsel %vm1964, %v1959, 0
        %v1972 = vsel %vm1964, %v1961, 0
        %v1975 = vsel %vm1964, %v1963, 0
        %1977 = vmatprep.subr.mxu0 0.0
        %1978 = vmatpush1.msra.mxu0 %v1904
        %1979 = vmatprep.subr.mxu0 0.0
        %1980 = vmatpush1.msra.mxu0 %v1905
        %1981 = vmatprep.subr.mxu0 0.0
        %1982 = vmatpush1.msra.mxu0 %v1909
        %1983 = vmatprep.subr.mxu0 0.0
        %1984 = vmatpush1.msra.mxu0 %v1911
        %1985 = vmatprep.subr.mxu0 0.0
        %1986 = vmatpush1.msra.mxu0 %v1915
        %1987 = vmatprep.subr.mxu0 0.0
        %1988 = vmatpush1.msra.mxu0 %v1917
        %1989 = vmatprep.subr.mxu0 0.0
        %1990 = vmatpush1.msra.mxu0 %v1921
        %1991 = vmatprep.subr.mxu0 0.0
        %1992 = vmatpush1.msra.mxu0 %v1923
        %1993 = vmatprep.subr.mxu0 0.0
        %1994 = vmatpush1.msra.mxu0 %v1927
        %1995 = vmatprep.subr.mxu0 0.0
        %1996 = vmatpush1.msra.mxu0 %v1929
        %1997 = vmatprep.subr.mxu0 0.0
        %1998 = vmatpush1.msra.mxu0 %v1933
        %1999 = vmatprep.subr.mxu0 0.0
        %2000 = vmatpush1.msra.mxu0 %v1935
        %2001 = vmatprep.subr.mxu0 0.0
        %2002 = vmatpush1.msra.mxu0 %v1939
        %2003 = vmatprep.subr.mxu0 0.0
        %2004 = vmatpush1.msra.mxu0 %v1941
        %2005 = vmatprep.subr.mxu0 0.0
        %2006 = vmatpush1.msra.mxu0 %v1945
        %2007 = vmatprep.subr.mxu0 0.0
        %2008 = vmatpush1.msra.mxu0 %v1947
        %2009 = vmatprep.subr.mxu0 0.0
        %2010 = vmatpush1.msra.mxu0 %v1951
        %2011 = vmatprep.subr.mxu0 0.0
        %2012 = vmatpush1.msra.mxu0 %v1953
        %2013 = vmatprep.subr.mxu0 0.0
        %2014 = vmatpush1.msra.mxu0 0.0
        %2015 = vmatprep.subr.mxu0 0.0
        %2016 = vmatpush1.msra.mxu0 0.0
        %2017 = vmatprep.subr.mxu0 0.0
        %2018 = vmatpush1.msra.mxu0 0.0
        %2019 = vmatprep.subr.mxu0 0.0
        %2020 = vmatpush1.msra.mxu0 0.0
        %2021 = vmatprep.subr.mxu0 0.0
        %2022 = vmatpush1.msra.mxu0 0.0
        %2023 = vmatprep.subr.mxu0 0.0
        %2024 = vmatpush1.msra.mxu0 0.0
        %2025 = vmatprep.subr.mxu0 0.0
        %2026 = vmatpush1.msra.mxu0 0.0
        %2027 = vmatprep.subr.mxu0 0.0
        %2028 = vmatpush1.msra.mxu0 0.0
        %2029 = vmatprep.subr.mxu0 0.0
        %2030 = vmatpush1.msra.mxu0 0.0
        %2031 = vmatprep.subr.mxu0 0.0
        %2032 = vmatpush1.msra.mxu0 0.0
        %2033 = vmatprep.subr.mxu0 0.0
        %2034 = vmatpush1.msra.mxu0 0.0
        %2035 = vmatprep.subr.mxu0 0.0
        %2036 = vmatpush1.msra.mxu0 0.0
        %2037 = vmatprep.subr.mxu0 0.0
        %2038 = vmatpush1.msra.mxu0 0.0
        %2039 = vmatprep.subr.mxu0 0.0
        %2040 = vmatpush1.msra.mxu0 0.0
        %2041 = vmatprep.mubr.f32.mxu0 %v1966
        %2042 = vmatmul.mubr.f32.gmra.mrb[0].mxu0 %v1956
        %v2043 = vpop.f32.mrb[0].mxu0
        %v2044 = vadd.f32 0.0, %v2043
        %v2045 = vpop.f32.mrb[0].mxu0
        %2046 = vmatprep.mubr.f32.mxu0 %v1969
        %2047 = vmatmul.mubr.f32.gmra.mrb[0].mxu0 %v1958
        %v2048 = vpop.f32.mrb[0].mxu0
        %v2049 = vadd.f32 0.0, %v2048
        %v2050 = vpop.f32.mrb[0].mxu0
        %2051 = vmatprep.mubr.f32.mxu0 %v1972
        %2052 = vmatmul.mubr.f32.gmra.mrb[0].mxu0 %v1960
        %v2053 = vpop.f32.mrb[0].mxu0
        %v2054 = vadd.f32 0.0, %v2053
        %v2055 = vpop.f32.mrb[0].mxu0
        %2056 = vmatprep.mubr.f32.mxu0 %v1975
        %2057 = vmatmul.mubr.f32.gmra.mrb[0].mxu0 %v1962
        %v2058 = vpop.f32.mrb[0].mxu0
        %v2059 = vadd.f32 0.0, %v2058
        %v2060 = vpop.f32.mrb[0].mxu0
        %2061 = vdwg.mxu0
        %v2062 = vld [vmem:[%s10] sm:$0xff]
        %v2063 = vld [vmem:[%s10 + $0x8] sm:$0xff]
        %v2064 = vld [vmem:[%s10 + $0x10] sm:$0xff]
        %v2065 = vld [vmem:[%s10 + $0x18] sm:$0xff]
        %2067 = vset.pattern.permute.xlu0 0
        %2068 = vperm.xlu0 %2067, %v2062
        %v2069 = vpop.permute.xlu0 %2068
        %2072 = vset.pattern.permute.xlu0 0
        %2073 = vperm.xlu0 %2072, %v2063
        %v2074 = vpop.permute.xlu0 %2073
        %2077 = vset.pattern.permute.xlu0 0
        %2078 = vperm.xlu0 %2077, %v2064
        %v2079 = vpop.permute.xlu0 %2078
        %2082 = vset.pattern.permute.xlu0 0
        %2083 = vperm.xlu0 %2082, %v2065
        %v2084 = vpop.permute.xlu0 %2083
        %v2086 = vmul.f32 %v2044, %v2069
        %v2087 = vmul.f32 %v2049, %v2074
        %v2088 = vmul.f32 %v2054, %v2079
        %v2089 = vmul.f32 %v2059, %v2084
        %v2090 = vld [vmem:[%s11] sm:$0xff]
        %v2091 = vld [vmem:[%s11 + $0x8] sm:$0xff]
        %v2092 = vld [vmem:[%s11 + $0x10] sm:$0xff]
        %v2093 = vld [vmem:[%s11 + $0x18] sm:$0xff]
        %2095 = vset.pattern.permute.xlu0 0
        %2096 = vperm.xlu0 %2095, %v2090
        %v2097 = vpop.permute.xlu0 %2096
        %2100 = vset.pattern.permute.xlu0 0
        %2101 = vperm.xlu0 %2100, %v2091
        %v2102 = vpop.permute.xlu0 %2101
        %2105 = vset.pattern.permute.xlu0 0
        %2106 = vperm.xlu0 %2105, %v2092
        %v2107 = vpop.permute.xlu0 %2106
        %2110 = vset.pattern.permute.xlu0 0
        %2111 = vperm.xlu0 %2110, %v2093
        %v2112 = vpop.permute.xlu0 %2111
        %v2114 = vadd.f32 %v2086, %v2097
        %v2115 = vadd.f32 %v2087, %v2102
        %v2116 = vadd.f32 %v2088, %v2107
        %v2117 = vadd.f32 %v2089, %v2112
        %v2118 = vmax.f32 %v2114, 0.0
        %v2119 = vmax.f32 %v2115, 0.0
        %v2120 = vmax.f32 %v2116, 0.0
        %v2121 = vmax.f32 %v2117, 0.0
        %v2122 = vld [vmem:[%s22] sm:$0xff]
        %v2123 = vld [vmem:[%s22 + $0x8] sm:$0x3]
        %v2124 = vmul.f32 %v2118, 0.5714286
        %v2125 = vmul.f32 %v2119, 0.5714286
        %v2126 = vmul.f32 %v2120, 0.5714286
        %v2127 = vmul.f32 %v2121, 0.5714286
        %v2128 = vmul.f32 %v2118, 0.42857143
        %v2129 = vmul.f32 %v2119, 0.42857143
        %v2130 = vmul.f32 %v2120, 0.42857143
        %v2131 = vmul.f32 %v2121, 0.42857143
        %2136 = vrot.lane.b32.xlu0 %v2128, 108
        %v2137 = vpop.permute.xlu0 %2136
        %2138 = vrot.lane.b32.xlu0 %v2129, 108
        %v2139 = vpop.permute.xlu0 %2138
        %2140 = vrot.lane.b32.xlu0 %v2130, 108
        %v2141 = vpop.permute.xlu0 %2140
        %2142 = vrot.lane.b32.xlu0 %v2131, 108
        %v2143 = vpop.permute.xlu0 %2142
        %v2148 = vadd.f32 %v2124, %v2137
        %v2149 = vadd.f32 %v2125, %v2139
        %v2150 = vadd.f32 %v2126, %v2141
        %v2151 = vadd.f32 %v2127, %v2143
        %v2152 = vmul.f32 %v2118, 0.14285715
        %v2153 = vmul.f32 %v2119, 0.14285715
        %v2154 = vmul.f32 %v2120, 0.14285715
        %v2155 = vmul.f32 %v2121, 0.14285715
        %v2156 = vmul.f32 %v2118, 0.85714287
        %v2157 = vmul.f32 %v2119, 0.85714287
        %v2158 = vmul.f32 %v2120, 0.85714287
        %v2159 = vmul.f32 %v2121, 0.85714287
        %2164 = vrot.lane.b32.xlu0 %v2156, 108
        %v2165 = vpop.permute.xlu0 %2164
        %2166 = vrot.lane.b32.xlu0 %v2157, 108
        %v2167 = vpop.permute.xlu0 %2166
        %2168 = vrot.lane.b32.xlu0 %v2158, 108
        %v2169 = vpop.permute.xlu0 %2168
        %2170 = vrot.lane.b32.xlu0 %v2159, 108
        %v2171 = vpop.permute.xlu0 %2170
        %v2176 = vadd.f32 %v2152, %v2165
        %v2177 = vadd.f32 %v2153, %v2167
        %v2178 = vadd.f32 %v2154, %v2169
        %v2179 = vadd.f32 %v2155, %v2171
        %v2180 = vmul.f32 %v2118, 0.71428573
        %v2181 = vmul.f32 %v2119, 0.71428573
        %v2182 = vmul.f32 %v2120, 0.71428573
        %v2183 = vmul.f32 %v2121, 0.71428573
        %v2184 = vmul.f32 %v2118, 0.2857143
        %v2185 = vmul.f32 %v2119, 0.2857143
        %v2186 = vmul.f32 %v2120, 0.2857143
        %v2187 = vmul.f32 %v2121, 0.2857143
        %2192 = vrot.lane.b32.xlu0 %v2184, 108
        %v2193 = vpop.permute.xlu0 %2192
        %2194 = vrot.lane.b32.xlu0 %v2185, 108
        %v2195 = vpop.permute.xlu0 %2194
        %2196 = vrot.lane.b32.xlu0 %v2186, 108
        %v2197 = vpop.permute.xlu0 %2196
        %2198 = vrot.lane.b32.xlu0 %v2187, 108
        %v2199 = vpop.permute.xlu0 %2198
        %v2204 = vadd.f32 %v2180, %v2193
        %v2205 = vadd.f32 %v2181, %v2195
        %v2206 = vadd.f32 %v2182, %v2197
        %v2207 = vadd.f32 %v2183, %v2199
        %2212 = vrot.lane.b32.xlu0 %v2180, 108
        %v2213 = vpop.permute.xlu0 %2212
        %2214 = vrot.lane.b32.xlu0 %v2181, 108
        %v2215 = vpop.permute.xlu0 %2214
        %2216 = vrot.lane.b32.xlu0 %v2182, 108
        %v2217 = vpop.permute.xlu0 %2216
        %2218 = vrot.lane.b32.xlu0 %v2183, 108
        %v2219 = vpop.permute.xlu0 %2218
        %v2224 = vadd.f32 %v2184, %v2213
        %v2225 = vadd.f32 %v2185, %v2215
        %v2226 = vadd.f32 %v2186, %v2217
        %v2227 = vadd.f32 %v2187, %v2219
        %2232 = vrot.lane.b32.xlu0 %v2152, 108
        %v2233 = vpop.permute.xlu0 %2232
        %2234 = vrot.lane.b32.xlu0 %v2153, 108
        %v2235 = vpop.permute.xlu0 %2234
        %2236 = vrot.lane.b32.xlu0 %v2154, 108
        %v2237 = vpop.permute.xlu0 %2236
        %2238 = vrot.lane.b32.xlu0 %v2155, 108
        %v2239 = vpop.permute.xlu0 %2238
        %v2244 = vadd.f32 %v2156, %v2233
        %v2245 = vadd.f32 %v2157, %v2235
        %v2246 = vadd.f32 %v2158, %v2237
        %v2247 = vadd.f32 %v2159, %v2239
        %2252 = vrot.lane.b32.xlu0 %v2124, 108
        %v2253 = vpop.permute.xlu0 %2252
        %2254 = vrot.lane.b32.xlu0 %v2125, 108
        %v2255 = vpop.permute.xlu0 %2254
        %2256 = vrot.lane.b32.xlu0 %v2126, 108
        %v2257 = vpop.permute.xlu0 %2256
        %2258 = vrot.lane.b32.xlu0 %v2127, 108
        %v2259 = vpop.permute.xlu0 %2258
        %v2264 = vadd.f32 %v2128, %v2253
        %v2265 = vadd.f32 %v2129, %v2255
        %v2266 = vadd.f32 %v2130, %v2257
        %v2267 = vadd.f32 %v2131, %v2259
        %2272 = vrot.lane.b32.xlu0 %v2204, 108
        %v2273 = vpop.permute.xlu0 %2272
        %2274 = vrot.lane.b32.xlu0 %v2205, 108
        %v2275 = vpop.permute.xlu0 %2274
        %2276 = vrot.lane.b32.xlu0 %v2206, 108
        %v2277 = vpop.permute.xlu0 %2276
        %2278 = vrot.lane.b32.xlu0 %v2207, 108
        %v2279 = vpop.permute.xlu0 %2278
        %2284 = vrot.lane.b32.xlu0 %v2224, 108
        %v2285 = vpop.permute.xlu0 %2284
        %2286 = vrot.lane.b32.xlu0 %v2225, 108
        %v2287 = vpop.permute.xlu0 %2286
        %2288 = vrot.lane.b32.xlu0 %v2226, 108
        %v2289 = vpop.permute.xlu0 %2288
        %2290 = vrot.lane.b32.xlu0 %v2227, 108
        %v2291 = vpop.permute.xlu0 %2290
        %2296 = vrot.lane.b32.xlu0 %v2244, 88
        %v2297 = vpop.permute.xlu0 %2296
        %2298 = vrot.lane.b32.xlu0 %v2245, 88
        %v2299 = vpop.permute.xlu0 %2298
        %2300 = vrot.lane.b32.xlu0 %v2246, 88
        %v2301 = vpop.permute.xlu0 %2300
        %2302 = vrot.lane.b32.xlu0 %v2247, 88
        %v2303 = vpop.permute.xlu0 %2302
        %2308 = vrot.lane.b32.xlu0 %v2264, 88
        %v2309 = vpop.permute.xlu0 %2308
        %2310 = vrot.lane.b32.xlu0 %v2265, 88
        %v2311 = vpop.permute.xlu0 %2310
        %2312 = vrot.lane.b32.xlu0 %v2266, 88
        %v2313 = vpop.permute.xlu0 %2312
        %2314 = vrot.lane.b32.xlu0 %v2267, 88
        %v2315 = vpop.permute.xlu0 %2314
        %2320 = vrot.lane.b32.xlu0 %v2118, 68
        %v2321 = vpop.permute.xlu0 %2320
        %2322 = vrot.lane.b32.xlu0 %v2119, 68
        %v2323 = vpop.permute.xlu0 %2322
        %2324 = vrot.lane.b32.xlu0 %v2120, 68
        %v2325 = vpop.permute.xlu0 %2324
        %2326 = vrot.lane.b32.xlu0 %v2121, 68
        %v2327 = vpop.permute.xlu0 %2326
        %2336 = vrot.lane.b32.xlu0 %v2118, 118
        %v2337 = vpop.permute.xlu0 %2336
        %2338 = vrot.lane.b32.xlu0 %v2119, 118
        %v2339 = vpop.permute.xlu0 %2338
        %2340 = vrot.lane.b32.xlu0 %v2120, 118
        %v2341 = vpop.permute.xlu0 %2340
        %2342 = vrot.lane.b32.xlu0 %v2121, 118
        %v2343 = vpop.permute.xlu0 %2342
        %2344 = vrot.lane.b32.xlu0 %v2148, 118
        %v2345 = vpop.permute.xlu0 %2344
        %2346 = vrot.lane.b32.xlu0 %v2149, 118
        %v2347 = vpop.permute.xlu0 %2346
        %2348 = vrot.lane.b32.xlu0 %v2150, 118
        %v2349 = vpop.permute.xlu0 %2348
        %2350 = vrot.lane.b32.xlu0 %v2151, 118
        %v2351 = vpop.permute.xlu0 %2350
        %2352 = vrot.lane.b32.xlu0 %v2176, 118
        %v2353 = vpop.permute.xlu0 %2352
        %2354 = vrot.lane.b32.xlu0 %v2177, 118
        %v2355 = vpop.permute.xlu0 %2354
        %2356 = vrot.lane.b32.xlu0 %v2178, 118
        %v2357 = vpop.permute.xlu0 %2356
        %2358 = vrot.lane.b32.xlu0 %v2179, 118
        %v2359 = vpop.permute.xlu0 %2358
        %2360 = vrot.lane.b32.xlu0 %v2273, 118
        %v2361 = vpop.permute.xlu0 %2360
        %2362 = vrot.lane.b32.xlu0 %v2275, 118
        %v2363 = vpop.permute.xlu0 %2362
        %2364 = vrot.lane.b32.xlu0 %v2277, 118
        %v2365 = vpop.permute.xlu0 %2364
        %2366 = vrot.lane.b32.xlu0 %v2279, 118
        %v2367 = vpop.permute.xlu0 %2366
        %2368 = vrot.lane.b32.xlu0 %v2285, 118
        %v2369 = vpop.permute.xlu0 %2368
        %2370 = vrot.lane.b32.xlu0 %v2287, 118
        %v2371 = vpop.permute.xlu0 %2370
        %2372 = vrot.lane.b32.xlu0 %v2289, 118
        %v2373 = vpop.permute.xlu0 %2372
        %2374 = vrot.lane.b32.xlu0 %v2291, 118
        %v2375 = vpop.permute.xlu0 %2374
        %2376 = vrot.lane.b32.xlu0 %v2297, 118
        %v2377 = vpop.permute.xlu0 %2376
        %2378 = vrot.lane.b32.xlu0 %v2299, 118
        %v2379 = vpop.permute.xlu0 %2378
        %2380 = vrot.lane.b32.xlu0 %v2301, 118
        %v2381 = vpop.permute.xlu0 %2380
        %2382 = vrot.lane.b32.xlu0 %v2303, 118
        %v2383 = vpop.permute.xlu0 %2382
        %2384 = vrot.lane.b32.xlu0 %v2309, 118
        %v2385 = vpop.permute.xlu0 %2384
        %2386 = vrot.lane.b32.xlu0 %v2311, 118
        %v2387 = vpop.permute.xlu0 %2386
        %2388 = vrot.lane.b32.xlu0 %v2313, 118
        %v2389 = vpop.permute.xlu0 %2388
        %2390 = vrot.lane.b32.xlu0 %v2315, 118
        %v2391 = vpop.permute.xlu0 %2390
        %2392 = vrot.lane.b32.xlu0 %v2321, 118
        %v2393 = vpop.permute.xlu0 %2392
        %2394 = vrot.lane.b32.xlu0 %v2323, 118
        %v2395 = vpop.permute.xlu0 %2394
        %2396 = vrot.lane.b32.xlu0 %v2325, 118
        %v2397 = vpop.permute.xlu0 %2396
        %2398 = vrot.lane.b32.xlu0 %v2327, 118
        %v2399 = vpop.permute.xlu0 %2398
        %vm2400 = vcmask 80896
        %v2401 = vsel %vm2400, %v2337, 0
        %v2403 = vsel %vm2400, %v2339, 0
        %v2405 = vsel %vm2400, %v2341, 0
        %v2407 = vsel %vm2400, %v2343, 0
        %v2409 = vsel %vm2400, %v2345, 0
        %v2411 = vsel %vm2400, %v2347, 0
        %v2413 = vsel %vm2400, %v2349, 0
        %v2415 = vsel %vm2400, %v2351, 0
        %v2417 = vsel %vm2400, %v2353, 0
        %v2419 = vsel %vm2400, %v2355, 0
        %v2421 = vsel %vm2400, %v2357, 0
        %v2423 = vsel %vm2400, %v2359, 0
        %v2425 = vsel %vm2400, %v2361, 0
        %v2427 = vsel %vm2400, %v2363, 0
        %v2429 = vsel %vm2400, %v2365, 0
        %v2431 = vsel %vm2400, %v2367, 0
        %v2433 = vsel %vm2400, %v2369, 0
        %v2435 = vsel %vm2400, %v2371, 0
        %v2437 = vsel %vm2400, %v2373, 0
        %v2439 = vsel %vm2400, %v2375, 0
        %v2441 = vsel %vm2400, %v2377, 0
        %v2443 = vsel %vm2400, %v2379, 0
        %v2445 = vsel %vm2400, %v2381, 0
        %v2447 = vsel %vm2400, %v2383, 0
        %v2449 = vsel %vm2400, %v2385, 0
        %v2451 = vsel %vm2400, %v2387, 0
        %v2453 = vsel %vm2400, %v2389, 0
        %v2455 = vsel %vm2400, %v2391, 0
        %v2457 = vsel %vm2400, %v2393, 0
        %v2459 = vsel %vm2400, %v2395, 0
        %v2461 = vsel %vm2400, %v2397, 0
        %v2463 = vsel %vm2400, %v2399, 0
        %v2466 = vsel %vm1667, %v2123, 0
        %2468 = vmatprep.subr.mxu0 0.0
        %2469 = vmatpush1.msra.mxu0 %v2122
        %2470 = vmatprep.subr.mxu0 0.0
        %2471 = vmatpush1.msra.mxu0 %v2466
        %2472 = vmatprep.subr.mxu0 0.0
        %2473 = vmatpush1.msra.mxu0 0.0
        %2474 = vmatprep.subr.mxu0 0.0
        %2475 = vmatpush1.msra.mxu0 0.0
        %2476 = vmatprep.subr.mxu0 0.0
        %2477 = vmatpush1.msra.mxu0 0.0
        %2478 = vmatprep.subr.mxu0 0.0
        %2479 = vmatpush1.msra.mxu0 0.0
        %2480 = vmatprep.subr.mxu0 0.0
        %2481 = vmatpush1.msra.mxu0 0.0
        %2482 = vmatprep.subr.mxu0 0.0
        %2483 = vmatpush1.msra.mxu0 0.0
        %2484 = vmatprep.subr.mxu0 0.0
        %2485 = vmatpush1.msra.mxu0 0.0
        %2486 = vmatprep.subr.mxu0 0.0
        %2487 = vmatpush1.msra.mxu0 0.0
        %2488 = vmatprep.subr.mxu0 0.0
        %2489 = vmatpush1.msra.mxu0 0.0
        %2490 = vmatprep.subr.mxu0 0.0
        %2491 = vmatpush1.msra.mxu0 0.0
        %2492 = vmatprep.subr.mxu0 0.0
        %2493 = vmatpush1.msra.mxu0 0.0
        %2494 = vmatprep.subr.mxu0 0.0
        %2495 = vmatpush1.msra.mxu0 0.0
        %2496 = vmatprep.subr.mxu0 0.0
        %2497 = vmatpush1.msra.mxu0 0.0
        %2498 = vmatprep.subr.mxu0 0.0
        %2499 = vmatpush1.msra.mxu0 0.0
        %2500 = vmatprep.subr.mxu0 0.0
        %2501 = vmatpush1.msra.mxu0 0.0
        %2502 = vmatprep.subr.mxu0 0.0
        %2503 = vmatpush1.msra.mxu0 0.0
        %2504 = vmatprep.subr.mxu0 0.0
        %2505 = vmatpush1.msra.mxu0 0.0
        %2506 = vmatprep.subr.mxu0 0.0
        %2507 = vmatpush1.msra.mxu0 0.0
        %2508 = vmatprep.subr.mxu0 0.0
        %2509 = vmatpush1.msra.mxu0 0.0
        %2510 = vmatprep.subr.mxu0 0.0
        %2511 = vmatpush1.msra.mxu0 0.0
        %2512 = vmatprep.subr.mxu0 0.0
        %2513 = vmatpush1.msra.mxu0 0.0
        %2514 = vmatprep.subr.mxu0 0.0
        %2515 = vmatpush1.msra.mxu0 0.0
        %2516 = vmatprep.subr.mxu0 0.0
        %2517 = vmatpush1.msra.mxu0 0.0
        %2518 = vmatprep.subr.mxu0 0.0
        %2519 = vmatpush1.msra.mxu0 0.0
        %2520 = vmatprep.subr.mxu0 0.0
        %2521 = vmatpush1.msra.mxu0 0.0
        %2522 = vmatprep.subr.mxu0 0.0
        %2523 = vmatpush1.msra.mxu0 0.0
        %2524 = vmatprep.subr.mxu0 0.0
        %2525 = vmatpush1.msra.mxu0 0.0
        %2526 = vmatprep.subr.mxu0 0.0
        %2527 = vmatpush1.msra.mxu0 0.0
        %2528 = vmatprep.subr.mxu0 0.0
        %2529 = vmatpush1.msra.mxu0 0.0
        %2530 = vmatprep.subr.mxu0 0.0
        %2531 = vmatpush1.msra.mxu0 0.0
        %2532 = vmatprep.mubr.f32.mxu0 0.0
        %2533 = vmatmul.mubr.f32.gmra.mrb[0].mxu0 %v2401
        %v2534 = vpop.f32.mrb[0].mxu0
        %v2535 = vadd.f32 0.0, %v2534
        %v2536 = vpop.f32.mrb[0].mxu0
        %2537 = vmatprep.mubr.f32.mxu0 0.0
        %2538 = vmatmul.mubr.f32.gmra.mrb[0].mxu0 %v2403
        %v2539 = vpop.f32.mrb[0].mxu0
        %v2540 = vadd.f32 0.0, %v2539
        %v2541 = vpop.f32.mrb[0].mxu0
        %2542 = vmatprep.mubr.f32.mxu0 0.0
        %2543 = vmatmul.mubr.f32.gmra.mrb[0].mxu0 %v2405
        %v2544 = vpop.f32.mrb[0].mxu0
        %v2545 = vadd.f32 0.0, %v2544
        %v2546 = vpop.f32.mrb[0].mxu0
        %2547 = vmatprep.mubr.f32.mxu0 0.0
        %2548 = vmatmul.mubr.f32.gmra.mrb[0].mxu0 %v2407
        %v2549 = vpop.f32.mrb[0].mxu0
        %v2550 = vadd.f32 0.0, %v2549
        %v2551 = vpop.f32.mrb[0].mxu0
        %2552 = vmatprep.mubr.f32.mxu0 0.0
        %2553 = vmatmul.mubr.f32.gmra.mrb[0].mxu0 %v2409
        %v2554 = vpop.f32.mrb[0].mxu0
        %v2555 = vadd.f32 0.0, %v2554
        %v2556 = vpop.f32.mrb[0].mxu0
        %2557 = vmatprep.mubr.f32.mxu0 0.0
        %2558 = vmatmul.mubr.f32.gmra.mrb[0].mxu0 %v2411
        %v2559 = vpop.f32.mrb[0].mxu0
        %v2560 = vadd.f32 0.0, %v2559
        %v2561 = vpop.f32.mrb[0].mxu0
        %2562 = vmatprep.mubr.f32.mxu0 0.0
        %2563 = vmatmul.mubr.f32.gmra.mrb[0].mxu0 %v2413
        %v2564 = vpop.f32.mrb[0].mxu0
        %v2565 = vadd.f32 0.0, %v2564
        %v2566 = vpop.f32.mrb[0].mxu0
        %2567 = vmatprep.mubr.f32.mxu0 0.0
        %2568 = vmatmul.mubr.f32.gmra.mrb[0].mxu0 %v2415
        %v2569 = vpop.f32.mrb[0].mxu0
        %v2570 = vadd.f32 0.0, %v2569
        %v2571 = vpop.f32.mrb[0].mxu0
        %2572 = vmatprep.mubr.f32.mxu0 0.0
        %2573 = vmatmul.mubr.f32.gmra.mrb[0].mxu0 %v2417
        %v2574 = vpop.f32.mrb[0].mxu0
        %v2575 = vadd.f32 0.0, %v2574
        %v2576 = vpop.f32.mrb[0].mxu0
        %2577 = vmatprep.mubr.f32.mxu0 0.0
        %2578 = vmatmul.mubr.f32.gmra.mrb[0].mxu0 %v2419
        %v2579 = vpop.f32.mrb[0].mxu0
        %v2580 = vadd.f32 0.0, %v2579
        %v2581 = vpop.f32.mrb[0].mxu0
        %2582 = vmatprep.mubr.f32.mxu0 0.0
        %2583 = vmatmul.mubr.f32.gmra.mrb[0].mxu0 %v2421
        %v2584 = vpop.f32.mrb[0].mxu0
        %v2585 = vadd.f32 0.0, %v2584
        %v2586 = vpop.f32.mrb[0].mxu0
        %2587 = vmatprep.mubr.f32.mxu0 0.0
        %2588 = vmatmul.mubr.f32.gmra.mrb[0].mxu0 %v2423
        %v2589 = vpop.f32.mrb[0].mxu0
        %v2590 = vadd.f32 0.0, %v2589
        %v2591 = vpop.f32.mrb[0].mxu0
        %2592 = vmatprep.mubr.f32.mxu0 0.0
        %2593 = vmatmul.mubr.f32.gmra.mrb[0].mxu0 %v2425
        %v2594 = vpop.f32.mrb[0].mxu0
        %v2595 = vadd.f32 0.0, %v2594
        %v2596 = vpop.f32.mrb[0].mxu0
        %2597 = vmatprep.mubr.f32.mxu0 0.0
        %2598 = vmatmul.mubr.f32.gmra.mrb[0].mxu0 %v2427
        %v2599 = vpop.f32.mrb[0].mxu0
        %v2600 = vadd.f32 0.0, %v2599
        %v2601 = vpop.f32.mrb[0].mxu0
        %2602 = vmatprep.mubr.f32.mxu0 0.0
        %2603 = vmatmul.mubr.f32.gmra.mrb[0].mxu0 %v2429
        %v2604 = vpop.f32.mrb[0].mxu0
        %v2605 = vadd.f32 0.0, %v2604
        %v2606 = vpop.f32.mrb[0].mxu0
        %2607 = vmatprep.mubr.f32.mxu0 0.0
        %2608 = vmatmul.mubr.f32.gmra.mrb[0].mxu0 %v2431
        %v2609 = vpop.f32.mrb[0].mxu0
        %v2610 = vadd.f32 0.0, %v2609
        %v2611 = vpop.f32.mrb[0].mxu0
        %2612 = vmatprep.mubr.f32.mxu0 0.0
        %2613 = vmatmul.mubr.f32.gmra.mrb[0].mxu0 %v2433
        %v2614 = vpop.f32.mrb[0].mxu0
        %v2615 = vadd.f32 0.0, %v2614
        %v2616 = vpop.f32.mrb[0].mxu0
        %2617 = vmatprep.mubr.f32.mxu0 0.0
        %2618 = vmatmul.mubr.f32.gmra.mrb[0].mxu0 %v2435
        %v2619 = vpop.f32.mrb[0].mxu0
        %v2620 = vadd.f32 0.0, %v2619
        %v2621 = vpop.f32.mrb[0].mxu0
        %2622 = vmatprep.mubr.f32.mxu0 0.0
        %2623 = vmatmul.mubr.f32.gmra.mrb[0].mxu0 %v2437
        %v2624 = vpop.f32.mrb[0].mxu0
        %v2625 = vadd.f32 0.0, %v2624
        %v2626 = vpop.f32.mrb[0].mxu0
        %2627 = vmatprep.mubr.f32.mxu0 0.0
        %2628 = vmatmul.mubr.f32.gmra.mrb[0].mxu0 %v2439
        %v2629 = vpop.f32.mrb[0].mxu0
        %v2630 = vadd.f32 0.0, %v2629
        %v2631 = vpop.f32.mrb[0].mxu0
        %2632 = vmatprep.mubr.f32.mxu0 0.0
        %2633 = vmatmul.mubr.f32.gmra.mrb[0].mxu0 %v2441
        %v2634 = vpop.f32.mrb[0].mxu0
        %v2635 = vadd.f32 0.0, %v2634
        %v2636 = vpop.f32.mrb[0].mxu0
        %2637 = vmatprep.mubr.f32.mxu0 0.0
        %2638 = vmatmul.mubr.f32.gmra.mrb[0].mxu0 %v2443
        %v2639 = vpop.f32.mrb[0].mxu0
        %v2640 = vadd.f32 0.0, %v2639
        %v2641 = vpop.f32.mrb[0].mxu0
        %2642 = vmatprep.mubr.f32.mxu0 0.0
        %2643 = vmatmul.mubr.f32.gmra.mrb[0].mxu0 %v2445
        %v2644 = vpop.f32.mrb[0].mxu0
        %v2645 = vadd.f32 0.0, %v2644
        %v2646 = vpop.f32.mrb[0].mxu0
        %2647 = vmatprep.mubr.f32.mxu0 0.0
        %2648 = vmatmul.mubr.f32.gmra.mrb[0].mxu0 %v2447
        %v2649 = vpop.f32.mrb[0].mxu0
        %v2650 = vadd.f32 0.0, %v2649
        %v2651 = vpop.f32.mrb[0].mxu0
        %2652 = vmatprep.mubr.f32.mxu0 0.0
        %2653 = vmatmul.mubr.f32.gmra.mrb[0].mxu0 %v2449
        %v2654 = vpop.f32.mrb[0].mxu0
        %v2655 = vadd.f32 0.0, %v2654
        %v2656 = vpop.f32.mrb[0].mxu0
        %2657 = vmatprep.mubr.f32.mxu0 0.0
        %2658 = vmatmul.mubr.f32.gmra.mrb[0].mxu0 %v2451
        %v2659 = vpop.f32.mrb[0].mxu0
        %v2660 = vadd.f32 0.0, %v2659
        %v2661 = vpop.f32.mrb[0].mxu0
        %2662 = vmatprep.mubr.f32.mxu0 0.0
        %2663 = vmatmul.mubr.f32.gmra.mrb[0].mxu0 %v2453
        %v2664 = vpop.f32.mrb[0].mxu0
        %v2665 = vadd.f32 0.0, %v2664
        %v2666 = vpop.f32.mrb[0].mxu0
        %2667 = vmatprep.mubr.f32.mxu0 0.0
        %2668 = vmatmul.mubr.f32.gmra.mrb[0].mxu0 %v2455
        %v2669 = vpop.f32.mrb[0].mxu0
        %v2670 = vadd.f32 0.0, %v2669
        %v2671 = vpop.f32.mrb[0].mxu0
        %2672 = vmatprep.mubr.f32.mxu0 0.0
        %2673 = vmatmul.mubr.f32.gmra.mrb[0].mxu0 %v2457
        %v2674 = vpop.f32.mrb[0].mxu0
        %v2675 = vadd.f32 0.0, %v2674
        %v2676 = vpop.f32.mrb[0].mxu0
        %2677 = vmatprep.mubr.f32.mxu0 0.0
        %2678 = vmatmul.mubr.f32.gmra.mrb[0].mxu0 %v2459
        %v2679 = vpop.f32.mrb[0].mxu0
        %v2680 = vadd.f32 0.0, %v2679
        %v2681 = vpop.f32.mrb[0].mxu0
        %2682 = vmatprep.mubr.f32.mxu0 0.0
        %2683 = vmatmul.mubr.f32.gmra.mrb[0].mxu0 %v2461
        %v2684 = vpop.f32.mrb[0].mxu0
        %v2685 = vadd.f32 0.0, %v2684
        %v2686 = vpop.f32.mrb[0].mxu0
        %2687 = vmatprep.mubr.f32.mxu0 0.0
        %2688 = vmatmul.mubr.f32.gmra.mrb[0].mxu0 %v2463
        %v2689 = vpop.f32.mrb[0].mxu0
        %v2690 = vadd.f32 0.0, %v2689
        %v2691 = vpop.f32.mrb[0].mxu0
        %2692 = vdwg.mxu0
        %2697 = vrot.lane.b32.xlu0 %v2535, 21
        %v2698 = vpop.permute.xlu0 %2697
        %2699 = vrot.lane.b32.xlu0 %v2540, 21
        %v2700 = vpop.permute.xlu0 %2699
        %2701 = vrot.lane.b32.xlu0 %v2545, 21
        %v2702 = vpop.permute.xlu0 %2701
        %2703 = vrot.lane.b32.xlu0 %v2550, 21
        %v2704 = vpop.permute.xlu0 %2703
        %2709 = vst.msk [vmem:[#allocation5] sm:$0xff] %vm1824, %v2698
        %2710 = vst.msk [vmem:[#allocation5 + $0x8] sm:$0xff] %vm1824, %v2700
        %2711 = vst.msk [vmem:[#allocation5 + $0x10] sm:$0xff] %vm1824, %v2702
        %2712 = vst.msk [vmem:[#allocation5 + $0x18] sm:$0xff] %vm1824, %v2704
        %2717 = vrot.lane.b32.xlu0 %v2555, 31
        %v2718 = vpop.permute.xlu0 %2717
        %2719 = vrot.lane.b32.xlu0 %v2560, 31
        %v2720 = vpop.permute.xlu0 %2719
        %2721 = vrot.lane.b32.xlu0 %v2565, 31
        %v2722 = vpop.permute.xlu0 %2721
        %2723 = vrot.lane.b32.xlu0 %v2570, 31
        %v2724 = vpop.permute.xlu0 %2723
        %2729 = vst.msk [vmem:[#allocation5] sm:$0xff] %vm1835, %v2718
        %2730 = vst.msk [vmem:[#allocation5 + $0x8] sm:$0xff] %vm1835, %v2720
        %2731 = vst.msk [vmem:[#allocation5 + $0x10] sm:$0xff] %vm1835, %v2722
        %2732 = vst.msk [vmem:[#allocation5 + $0x18] sm:$0xff] %vm1835, %v2724
        %2737 = vrot.lane.b32.xlu0 %v2575, 41
        %v2738 = vpop.permute.xlu0 %2737
        %2739 = vrot.lane.b32.xlu0 %v2580, 41
        %v2740 = vpop.permute.xlu0 %2739
        %2741 = vrot.lane.b32.xlu0 %v2585, 41
        %v2742 = vpop.permute.xlu0 %2741
        %2743 = vrot.lane.b32.xlu0 %v2590, 41
        %v2744 = vpop.permute.xlu0 %2743
        %2749 = vst.msk [vmem:[#allocation5] sm:$0xff] %vm1846, %v2738
        %2750 = vst.msk [vmem:[#allocation5 + $0x8] sm:$0xff] %vm1846, %v2740
        %2751 = vst.msk [vmem:[#allocation5 + $0x10] sm:$0xff] %vm1846, %v2742
        %2752 = vst.msk [vmem:[#allocation5 + $0x18] sm:$0xff] %vm1846, %v2744
        %2757 = vrot.lane.b32.xlu0 %v2595, 51
        %v2758 = vpop.permute.xlu0 %2757
        %2759 = vrot.lane.b32.xlu0 %v2600, 51
        %v2760 = vpop.permute.xlu0 %2759
        %2761 = vrot.lane.b32.xlu0 %v2605, 51
        %v2762 = vpop.permute.xlu0 %2761
        %2763 = vrot.lane.b32.xlu0 %v2610, 51
        %v2764 = vpop.permute.xlu0 %2763
        %2769 = vst.msk [vmem:[#allocation5] sm:$0xff] %vm1857, %v2758
        %2770 = vst.msk [vmem:[#allocation5 + $0x8] sm:$0xff] %vm1857, %v2760
        %2771 = vst.msk [vmem:[#allocation5 + $0x10] sm:$0xff] %vm1857, %v2762
        %2772 = vst.msk [vmem:[#allocation5 + $0x18] sm:$0xff] %vm1857, %v2764
        %2777 = vrot.lane.b32.xlu0 %v2615, 61
        %v2778 = vpop.permute.xlu0 %2777
        %2779 = vrot.lane.b32.xlu0 %v2620, 61
        %v2780 = vpop.permute.xlu0 %2779
        %2781 = vrot.lane.b32.xlu0 %v2625, 61
        %v2782 = vpop.permute.xlu0 %2781
        %2783 = vrot.lane.b32.xlu0 %v2630, 61
        %v2784 = vpop.permute.xlu0 %2783
        %2789 = vst.msk [vmem:[#allocation5] sm:$0xff] %vm1868, %v2778
        %2790 = vst.msk [vmem:[#allocation5 + $0x8] sm:$0xff] %vm1868, %v2780
        %2791 = vst.msk [vmem:[#allocation5 + $0x10] sm:$0xff] %vm1868, %v2782
        %2792 = vst.msk [vmem:[#allocation5 + $0x18] sm:$0xff] %vm1868, %v2784
        %2797 = vrot.lane.b32.xlu0 %v2635, 71
        %v2798 = vpop.permute.xlu0 %2797
        %2799 = vrot.lane.b32.xlu0 %v2640, 71
        %v2800 = vpop.permute.xlu0 %2799
        %2801 = vrot.lane.b32.xlu0 %v2645, 71
        %v2802 = vpop.permute.xlu0 %2801
        %2803 = vrot.lane.b32.xlu0 %v2650, 71
        %v2804 = vpop.permute.xlu0 %2803
        %2809 = vst.msk [vmem:[#allocation5] sm:$0xff] %vm1879, %v2798
        %2810 = vst.msk [vmem:[#allocation5 + $0x8] sm:$0xff] %vm1879, %v2800
        %2811 = vst.msk [vmem:[#allocation5 + $0x10] sm:$0xff] %vm1879, %v2802
        %2812 = vst.msk [vmem:[#allocation5 + $0x18] sm:$0xff] %vm1879, %v2804
        %2817 = vrot.lane.b32.xlu0 %v2655, 81
        %v2818 = vpop.permute.xlu0 %2817
        %2819 = vrot.lane.b32.xlu0 %v2660, 81
        %v2820 = vpop.permute.xlu0 %2819
        %2821 = vrot.lane.b32.xlu0 %v2665, 81
        %v2822 = vpop.permute.xlu0 %2821
        %2823 = vrot.lane.b32.xlu0 %v2670, 81
        %v2824 = vpop.permute.xlu0 %2823
        %2829 = vst.msk [vmem:[#allocation5] sm:$0xff] %vm1890, %v2818
        %2830 = vst.msk [vmem:[#allocation5 + $0x8] sm:$0xff] %vm1890, %v2820
        %2831 = vst.msk [vmem:[#allocation5 + $0x10] sm:$0xff] %vm1890, %v2822
        %2832 = vst.msk [vmem:[#allocation5 + $0x18] sm:$0xff] %vm1890, %v2824
        %2837 = vrot.lane.b32.xlu0 %v2675, 91
        %v2838 = vpop.permute.xlu0 %2837
        %2839 = vrot.lane.b32.xlu0 %v2680, 91
        %v2840 = vpop.permute.xlu0 %2839
        %2841 = vrot.lane.b32.xlu0 %v2685, 91
        %v2842 = vpop.permute.xlu0 %2841
        %2843 = vrot.lane.b32.xlu0 %v2690, 91
        %v2844 = vpop.permute.xlu0 %2843
        %2849 = vst.msk [vmem:[#allocation5] sm:$0xff] %vm1901, %v2838
        %2850 = vst.msk [vmem:[#allocation5 + $0x8] sm:$0xff] %vm1901, %v2840
        %2851 = vst.msk [vmem:[#allocation5 + $0x10] sm:$0xff] %vm1901, %v2842
        %2852 = vst.msk [vmem:[#allocation5 + $0x18] sm:$0xff] %vm1901, %v2844
        %v2853 = vld [vmem:[#allocation5] sm:$0xff]
        %v2854 = vld [vmem:[#allocation5 + $0x8] sm:$0xff]
        %v2855 = vld [vmem:[#allocation5 + $0x10] sm:$0xff]
        %v2856 = vld [vmem:[#allocation5 + $0x18] sm:$0xff]
        %2861 = vrot.lane.b32.xlu0 %v2853, 127
        %v2862 = vpop.permute.xlu0 %2861
        %2863 = vrot.lane.b32.xlu0 %v2854, 127
        %v2864 = vpop.permute.xlu0 %2863
        %2865 = vrot.lane.b32.xlu0 %v2855, 127
        %v2866 = vpop.permute.xlu0 %2865
        %2867 = vrot.lane.b32.xlu0 %v2856, 127
        %v2868 = vpop.permute.xlu0 %2867
        %2873 = vrot.lane.b32.xlu0 %v2853, 126
        %v2874 = vpop.permute.xlu0 %2873
        %2875 = vrot.lane.b32.xlu0 %v2854, 126
        %v2876 = vpop.permute.xlu0 %2875
        %2877 = vrot.lane.b32.xlu0 %v2855, 126
        %v2878 = vpop.permute.xlu0 %2877
        %2879 = vrot.lane.b32.xlu0 %v2856, 126
        %v2880 = vpop.permute.xlu0 %2879
        %2885 = vrot.lane.b32.xlu0 %v2853, 118
        %v2886 = vpop.permute.xlu0 %2885
        %2887 = vrot.lane.b32.xlu0 %v2854, 118
        %v2888 = vpop.permute.xlu0 %2887
        %2889 = vrot.lane.b32.xlu0 %v2855, 118
        %v2890 = vpop.permute.xlu0 %2889
        %2891 = vrot.lane.b32.xlu0 %v2856, 118
        %v2892 = vpop.permute.xlu0 %2891
        %2897 = vrot.lane.b32.xlu0 %v2853, 117
        %v2898 = vpop.permute.xlu0 %2897
        %2899 = vrot.lane.b32.xlu0 %v2854, 117
        %v2900 = vpop.permute.xlu0 %2899
        %2901 = vrot.lane.b32.xlu0 %v2855, 117
        %v2902 = vpop.permute.xlu0 %2901
        %2903 = vrot.lane.b32.xlu0 %v2856, 117
        %v2904 = vpop.permute.xlu0 %2903
        %2909 = vrot.lane.b32.xlu0 %v2853, 116
        %v2910 = vpop.permute.xlu0 %2909
        %2911 = vrot.lane.b32.xlu0 %v2854, 116
        %v2912 = vpop.permute.xlu0 %2911
        %2913 = vrot.lane.b32.xlu0 %v2855, 116
        %v2914 = vpop.permute.xlu0 %2913
        %2915 = vrot.lane.b32.xlu0 %v2856, 116
        %v2916 = vpop.permute.xlu0 %2915
        %2921 = vrot.lane.b32.xlu0 %v2853, 108
        %v2922 = vpop.permute.xlu0 %2921
        %2923 = vrot.lane.b32.xlu0 %v2854, 108
        %v2924 = vpop.permute.xlu0 %2923
        %2925 = vrot.lane.b32.xlu0 %v2855, 108
        %v2926 = vpop.permute.xlu0 %2925
        %2927 = vrot.lane.b32.xlu0 %v2856, 108
        %v2928 = vpop.permute.xlu0 %2927
        %2933 = vrot.lane.b32.xlu0 %v2853, 107
        %v2934 = vpop.permute.xlu0 %2933
        %2935 = vrot.lane.b32.xlu0 %v2854, 107
        %v2936 = vpop.permute.xlu0 %2935
        %2937 = vrot.lane.b32.xlu0 %v2855, 107
        %v2938 = vpop.permute.xlu0 %2937
        %2939 = vrot.lane.b32.xlu0 %v2856, 107
        %v2940 = vpop.permute.xlu0 %2939
        %2945 = vrot.lane.b32.xlu0 %v2853, 106
        %v2946 = vpop.permute.xlu0 %2945
        %2947 = vrot.lane.b32.xlu0 %v2854, 106
        %v2948 = vpop.permute.xlu0 %2947
        %2949 = vrot.lane.b32.xlu0 %v2855, 106
        %v2950 = vpop.permute.xlu0 %2949
        %2951 = vrot.lane.b32.xlu0 %v2856, 106
        %v2952 = vpop.permute.xlu0 %2951
        %v2957 = vld [vmem:[%s12] sm:$0xff]
        %v2958 = vld [vmem:[%s12 + $0x8] sm:$0xff]
        %v2959 = vld [vmem:[%s12 + $0x10] sm:$0xff]
        %v2960 = vld [vmem:[%s12 + $0x18] sm:$0xff]
        %v2961 = vld [vmem:[%s12 + $0x20] sm:$0xff]
        %v2962 = vld [vmem:[%s12 + $0x28] sm:$0xff]
        %vm2963 = vcmask 261120
        %v2965 = vsel %vm2963, %v2959, 0
        %v2968 = vsel %vm2963, %v2962, 0
        %2970 = vmatprep.subr.mxu0 0.0
        %2971 = vmatpush1.msra.mxu0 %v2853
        %2972 = vmatprep.subr.mxu0 0.0
        %2973 = vmatpush1.msra.mxu0 %v2854
        %2974 = vmatprep.subr.mxu0 0.0
        %2975 = vmatpush1.msra.mxu0 %v2855
        %2976 = vmatprep.subr.mxu0 0.0
        %2977 = vmatpush1.msra.mxu0 %v2856
        %2978 = vmatprep.subr.mxu0 0.0
        %2979 = vmatpush1.msra.mxu0 %v2862
        %2980 = vmatprep.subr.mxu0 0.0
        %2981 = vmatpush1.msra.mxu0 %v2864
        %2982 = vmatprep.subr.mxu0 0.0
        %2983 = vmatpush1.msra.mxu0 %v2866
        %2984 = vmatprep.subr.mxu0 0.0
        %2985 = vmatpush1.msra.mxu0 %v2868
        %2986 = vmatprep.subr.mxu0 0.0
        %2987 = vmatpush1.msra.mxu0 %v2874
        %2988 = vmatprep.subr.mxu0 0.0
        %2989 = vmatpush1.msra.mxu0 %v2876
        %2990 = vmatprep.subr.mxu0 0.0
        %2991 = vmatpush1.msra.mxu0 %v2878
        %2992 = vmatprep.subr.mxu0 0.0
        %2993 = vmatpush1.msra.mxu0 %v2880
        %2994 = vmatprep.subr.mxu0 0.0
        %2995 = vmatpush1.msra.mxu0 %v2886
        %2996 = vmatprep.subr.mxu0 0.0
        %2997 = vmatpush1.msra.mxu0 %v2888
        %2998 = vmatprep.subr.mxu0 0.0
        %2999 = vmatpush1.msra.mxu0 %v2890
        %3000 = vmatprep.subr.mxu0 0.0
        %3001 = vmatpush1.msra.mxu0 %v2892
        %3002 = vmatprep.subr.mxu0 0.0
        %3003 = vmatpush1.msra.mxu0 %v2898
        %3004 = vmatprep.subr.mxu0 0.0
        %3005 = vmatpush1.msra.mxu0 %v2900
        %3006 = vmatprep.subr.mxu0 0.0
        %3007 = vmatpush1.msra.mxu0 %v2902
        %3008 = vmatprep.subr.mxu0 0.0
        %3009 = vmatpush1.msra.mxu0 %v2904
        %3010 = vmatprep.subr.mxu0 0.0
        %3011 = vmatpush1.msra.mxu0 %v2910
        %3012 = vmatprep.subr.mxu0 0.0
        %3013 = vmatpush1.msra.mxu0 %v2912
        %3014 = vmatprep.subr.mxu0 0.0
        %3015 = vmatpush1.msra.mxu0 %v2914
        %3016 = vmatprep.subr.mxu0 0.0
        %3017 = vmatpush1.msra.mxu0 %v2916
        %3018 = vmatprep.subr.mxu0 0.0
        %3019 = vmatpush1.msra.mxu0 %v2922
        %3020 = vmatprep.subr.mxu0 0.0
        %3021 = vmatpush1.msra.mxu0 %v2924
        %3022 = vmatprep.subr.mxu0 0.0
        %3023 = vmatpush1.msra.mxu0 %v2926
        %3024 = vmatprep.subr.mxu0 0.0
        %3025 = vmatpush1.msra.mxu0 %v2928
        %3026 = vmatprep.subr.mxu0 0.0
        %3027 = vmatpush1.msra.mxu0 %v2934
        %3028 = vmatprep.subr.mxu0 0.0
        %3029 = vmatpush1.msra.mxu0 %v2936
        %3030 = vmatprep.subr.mxu0 0.0
        %3031 = vmatpush1.msra.mxu0 %v2938
        %3032 = vmatprep.subr.mxu0 0.0
        %3033 = vmatpush1.msra.mxu0 %v2940
        %3034 = vmatprep.mubr.f32.mxu0 %v2958
        %3035 = vmatmul.mubr.f32.gmra.mrb[0].mxu0 %v2957
        %v3036 = vpop.f32.mrb[0].mxu0
        %v3037 = vadd.f32 0.0, %v3036
        %v3038 = vpop.f32.mrb[0].mxu0
        %3039 = vmatprep.mubr.f32.mxu0 %v2961
        %3040 = vmatmul.mubr.f32.gmra.mrb[0].mxu0 %v2960
        %v3041 = vpop.f32.mrb[0].mxu0
        %v3042 = vadd.f32 0.0, %v3041
        %v3043 = vpop.f32.mrb[0].mxu0
        %3044 = vdwg.mxu0
        %3045 = vmatprep.subr.mxu0 0.0
        %3046 = vmatpush1.msra.mxu0 %v2946
        %3047 = vmatprep.subr.mxu0 0.0
        %3048 = vmatpush1.msra.mxu0 %v2948
        %3049 = vmatprep.subr.mxu0 0.0
        %3050 = vmatpush1.msra.mxu0 %v2950
        %3051 = vmatprep.subr.mxu0 0.0
        %3052 = vmatpush1.msra.mxu0 %v2952
        %3053 = vmatprep.subr.mxu0 0.0
        %3054 = vmatpush1.msra.mxu0 0.0
        %3055 = vmatprep.subr.mxu0 0.0
        %3056 = vmatpush1.msra.mxu0 0.0
        %3057 = vmatprep.subr.mxu0 0.0
        %3058 = vmatpush1.msra.mxu0 0.0
        %3059 = vmatprep.subr.mxu0 0.0
        %3060 = vmatpush1.msra.mxu0 0.0
        %3061 = vmatprep.subr.mxu0 0.0
        %3062 = vmatpush1.msra.mxu0 0.0
        %3063 = vmatprep.subr.mxu0 0.0
        %3064 = vmatpush1.msra.mxu0 0.0
        %3065 = vmatprep.subr.mxu0 0.0
        %3066 = vmatpush1.msra.mxu0 0.0
        %3067 = vmatprep.subr.mxu0 0.0
        %3068 = vmatpush1.msra.mxu0 0.0
        %3069 = vmatprep.subr.mxu0 0.0
        %3070 = vmatpush1.msra.mxu0 0.0
        %3071 = vmatprep.subr.mxu0 0.0
        %3072 = vmatpush1.msra.mxu0 0.0
        %3073 = vmatprep.subr.mxu0 0.0
        %3074 = vmatpush1.msra.mxu0 0.0
        %3075 = vmatprep.subr.mxu0 0.0
        %3076 = vmatpush1.msra.mxu0 0.0
        %3077 = vmatprep.subr.mxu0 0.0
        %3078 = vmatpush1.msra.mxu0 0.0
        %3079 = vmatprep.subr.mxu0 0.0
        %3080 = vmatpush1.msra.mxu0 0.0
        %3081 = vmatprep.subr.mxu0 0.0
        %3082 = vmatpush1.msra.mxu0 0.0
        %3083 = vmatprep.subr.mxu0 0.0
        %3084 = vmatpush1.msra.mxu0 0.0
        %3085 = vmatprep.subr.mxu0 0.0
        %3086 = vmatpush1.msra.mxu0 0.0
        %3087 = vmatprep.subr.mxu0 0.0
        %3088 = vmatpush1.msra.mxu0 0.0
        %3089 = vmatprep.subr.mxu0 0.0
        %3090 = vmatpush1.msra.mxu0 0.0
        %3091 = vmatprep.subr.mxu0 0.0
        %3092 = vmatpush1.msra.mxu0 0.0
        %3093 = vmatprep.subr.mxu0 0.0
        %3094 = vmatpush1.msra.mxu0 0.0
        %3095 = vmatprep.subr.mxu0 0.0
        %3096 = vmatpush1.msra.mxu0 0.0
        %3097 = vmatprep.subr.mxu0 0.0
        %3098 = vmatpush1.msra.mxu0 0.0
        %3099 = vmatprep.subr.mxu0 0.0
        %3100 = vmatpush1.msra.mxu0 0.0
        %3101 = vmatprep.subr.mxu0 0.0
        %3102 = vmatpush1.msra.mxu0 0.0
        %3103 = vmatprep.subr.mxu0 0.0
        %3104 = vmatpush1.msra.mxu0 0.0
        %3105 = vmatprep.subr.mxu0 0.0
        %3106 = vmatpush1.msra.mxu0 0.0
        %3107 = vmatprep.subr.mxu0 0.0
        %3108 = vmatpush1.msra.mxu0 0.0
        %3109 = vmatprep.mubr.f32.mxu0 0.0
        %3110 = vmatmul.mubr.f32.gmra.mrb[0].mxu0 %v2965
        %v3111 = vpop.f32.mrb[0].mxu0
        %v3112 = vadd.f32 %v3037, %v3111
        %v3113 = vpop.f32.mrb[0].mxu0
        %3114 = vmatprep.mubr.f32.mxu0 0.0
        %3115 = vmatmul.mubr.f32.gmra.mrb[0].mxu0 %v2968
        %v3116 = vpop.f32.mrb[0].mxu0
        %v3117 = vadd.f32 %v3042, %v3116
        %v3118 = vpop.f32.mrb[0].mxu0
        %3119 = vdwg.mxu0
        %v3120 = vld [vmem:[%s13] sm:$0xff]
        %v3121 = vld [vmem:[%s13 + $0x8] sm:$0xff]
        %3123 = vset.pattern.permute.xlu0 0
        %3124 = vperm.xlu0 %3123, %v3120
        %v3125 = vpop.permute.xlu0 %3124
        %3128 = vset.pattern.permute.xlu0 0
        %3129 = vperm.xlu0 %3128, %v3121
        %v3130 = vpop.permute.xlu0 %3129
        %v3132 = vmul.f32 %v3112, %v3125
        %v3133 = vmul.f32 %v3117, %v3130
        %v3134 = vld [vmem:[%s14] sm:$0xff]
        %v3135 = vld [vmem:[%s14 + $0x8] sm:$0xff]
        %3137 = vset.pattern.permute.xlu0 0
        %3138 = vperm.xlu0 %3137, %v3134
        %v3139 = vpop.permute.xlu0 %3138
        %3142 = vset.pattern.permute.xlu0 0
        %3143 = vperm.xlu0 %3142, %v3135
        %v3144 = vpop.permute.xlu0 %3143
        %v3146 = vadd.f32 %v3132, %v3139
        %v3147 = vadd.f32 %v3133, %v3144
        %v3148 = vmax.f32 %v3146, 0.0
        %v3149 = vmax.f32 %v3147, 0.0
        %v3150 = vld [vmem:[%s23] sm:$0xff]
        %v3151 = vld [vmem:[%s23 + $0x8] sm:$0x3]
        %v3152 = vmul.f32 %v3148, 0.53333336
        %v3153 = vmul.f32 %v3149, 0.53333336
        %v3154 = vmul.f32 %v3148, 0.46666667
        %v3155 = vmul.f32 %v3149, 0.46666667
        %3158 = vrot.lane.b32.xlu0 %v3154, 118
        %v3159 = vpop.permute.xlu0 %3158
        %3160 = vrot.lane.b32.xlu0 %v3155, 118
        %v3161 = vpop.permute.xlu0 %3160
        %v3164 = vadd.f32 %v3152, %v3159
        %v3165 = vadd.f32 %v3153, %v3161
        %v3166 = vmul.f32 %v3148, 0.06666667
        %v3167 = vmul.f32 %v3149, 0.06666667
        %v3168 = vmul.f32 %v3148, 0.93333334
        %v3169 = vmul.f32 %v3149, 0.93333334
        %3172 = vrot.lane.b32.xlu0 %v3168, 118
        %v3173 = vpop.permute.xlu0 %3172
        %3174 = vrot.lane.b32.xlu0 %v3169, 118
        %v3175 = vpop.permute.xlu0 %3174
        %v3178 = vadd.f32 %v3166, %v3173
        %v3179 = vadd.f32 %v3167, %v3175
        %v3180 = vmul.f32 %v3148, 0.6
        %v3181 = vmul.f32 %v3149, 0.6
        %v3182 = vmul.f32 %v3148, 0.4
        %v3183 = vmul.f32 %v3149, 0.4
        %3186 = vrot.lane.b32.xlu0 %v3182, 118
        %v3187 = vpop.permute.xlu0 %3186
        %3188 = vrot.lane.b32.xlu0 %v3183, 118
        %v3189 = vpop.permute.xlu0 %3188
        %v3192 = vadd.f32 %v3180, %v3187
        %v3193 = vadd.f32 %v3181, %v3189
        %v3194 = vmul.f32 %v3148, 0.13333334
        %v3195 = vmul.f32 %v3149, 0.13333334
        %v3196 = vmul.f32 %v3148, 0.8666667
        %v3197 = vmul.f32 %v3149, 0.8666667
        %3200 = vrot.lane.b32.xlu0 %v3196, 118
        %v3201 = vpop.permute.xlu0 %3200
        %3202 = vrot.lane.b32.xlu0 %v3197, 118
        %v3203 = vpop.permute.xlu0 %3202
        %v3206 = vadd.f32 %v3194, %v3201
        %v3207 = vadd.f32 %v3195, %v3203
        %v3208 = vmul.f32 %v3148, 0.6666667
        %v3209 = vmul.f32 %v3149, 0.6666667
        %v3210 = vmul.f32 %v3148, 0.33333334
        %v3211 = vmul.f32 %v3149, 0.33333334
        %3214 = vrot.lane.b32.xlu0 %v3210, 118
        %v3215 = vpop.permute.xlu0 %3214
        %3216 = vrot.lane.b32.xlu0 %v3211, 118
        %v3217 = vpop.permute.xlu0 %3216
        %v3220 = vadd.f32 %v3208, %v3215
        %v3221 = vadd.f32 %v3209, %v3217
        %v3222 = vmul.f32 %v3148, 0.2
        %v3223 = vmul.f32 %v3149, 0.2
        %v3224 = vmul.f32 %v3148, 0.8
        %v3225 = vmul.f32 %v3149, 0.8
        %3228 = vrot.lane.b32.xlu0 %v3224, 118
        %v3229 = vpop.permute.xlu0 %3228
        %3230 = vrot.lane.b32.xlu0 %v3225, 118
        %v3231 = vpop.permute.xlu0 %3230
        %v3234 = vadd.f32 %v3222, %v3229
        %v3235 = vadd.f32 %v3223, %v3231
        %v3236 = vmul.f32 %v3148, 0.73333335
        %v3237 = vmul.f32 %v3149, 0.73333335
        %v3238 = vmul.f32 %v3148, 0.26666668
        %v3239 = vmul.f32 %v3149, 0.26666668
        %3242 = vrot.lane.b32.xlu0 %v3238, 118
        %v3243 = vpop.permute.xlu0 %3242
        %3244 = vrot.lane.b32.xlu0 %v3239, 118
        %v3245 = vpop.permute.xlu0 %3244
        %v3248 = vadd.f32 %v3236, %v3243
        %v3249 = vadd.f32 %v3237, %v3245
        %3252 = vrot.lane.b32.xlu0 %v3236, 118
        %v3253 = vpop.permute.xlu0 %3252
        %3254 = vrot.lane.b32.xlu0 %v3237, 118
        %v3255 = vpop.permute.xlu0 %3254
        %v3258 = vadd.f32 %v3238, %v3253
        %v3259 = vadd.f32 %v3239, %v3255
        %3262 = vrot.lane.b32.xlu0 %v3222, 118
        %v3263 = vpop.permute.xlu0 %3262
        %3264 = vrot.lane.b32.xlu0 %v3223, 118
        %v3265 = vpop.permute.xlu0 %3264
        %v3268 = vadd.f32 %v3224, %v3263
        %v3269 = vadd.f32 %v3225, %v3265
        %3272 = vrot.lane.b32.xlu0 %v3208, 118
        %v3273 = vpop.permute.xlu0 %3272
        %3274 = vrot.lane.b32.xlu0 %v3209, 118
        %v3275 = vpop.permute.xlu0 %3274
        %v3278 = vadd.f32 %v3210, %v3273
        %v3279 = vadd.f32 %v3211, %v3275
        %3282 = vrot.lane.b32.xlu0 %v3194, 118
        %v3283 = vpop.permute.xlu0 %3282
        %3284 = vrot.lane.b32.xlu0 %v3195, 118
        %v3285 = vpop.permute.xlu0 %3284
        %v3288 = vadd.f32 %v3196, %v3283
        %v3289 = vadd.f32 %v3197, %v3285
        %3292 = vrot.lane.b32.xlu0 %v3180, 118
        %v3293 = vpop.permute.xlu0 %3292
        %3294 = vrot.lane.b32.xlu0 %v3181, 118
        %v3295 = vpop.permute.xlu0 %3294
        %v3298 = vadd.f32 %v3182, %v3293
        %v3299 = vadd.f32 %v3183, %v3295
        %3302 = vrot.lane.b32.xlu0 %v3166, 118
        %v3303 = vpop.permute.xlu0 %3302
        %3304 = vrot.lane.b32.xlu0 %v3167, 118
        %v3305 = vpop.permute.xlu0 %3304
        %v3308 = vadd.f32 %v3168, %v3303
        %v3309 = vadd.f32 %v3169, %v3305
        %3312 = vrot.lane.b32.xlu0 %v3152, 118
        %v3313 = vpop.permute.xlu0 %3312
        %3314 = vrot.lane.b32.xlu0 %v3153, 118
        %v3315 = vpop.permute.xlu0 %3314
        %v3318 = vadd.f32 %v3154, %v3313
        %v3319 = vadd.f32 %v3155, %v3315
        %3322 = vrot.lane.b32.xlu0 %v3192, 118
        %v3323 = vpop.permute.xlu0 %3322
        %3324 = vrot.lane.b32.xlu0 %v3193, 118
        %v3325 = vpop.permute.xlu0 %3324
        %3328 = vrot.lane.b32.xlu0 %v3206, 118
        %v3329 = vpop.permute.xlu0 %3328
        %3330 = vrot.lane.b32.xlu0 %v3207, 118
        %v3331 = vpop.permute.xlu0 %3330
        %3334 = vrot.lane.b32.xlu0 %v3220, 108
        %v3335 = vpop.permute.xlu0 %3334
        %3336 = vrot.lane.b32.xlu0 %v3221, 108
        %v3337 = vpop.permute.xlu0 %3336
        %3340 = vrot.lane.b32.xlu0 %v3234, 108
        %v3341 = vpop.permute.xlu0 %3340
        %3342 = vrot.lane.b32.xlu0 %v3235, 108
        %v3343 = vpop.permute.xlu0 %3342
        %3346 = vrot.lane.b32.xlu0 %v3248, 98
        %v3347 = vpop.permute.xlu0 %3346
        %3348 = vrot.lane.b32.xlu0 %v3249, 98
        %v3349 = vpop.permute.xlu0 %3348
        %3352 = vrot.lane.b32.xlu0 %v3258, 98
        %v3353 = vpop.permute.xlu0 %3352
        %3354 = vrot.lane.b32.xlu0 %v3259, 98
        %v3355 = vpop.permute.xlu0 %3354
        %3358 = vrot.lane.b32.xlu0 %v3268, 88
        %v3359 = vpop.permute.xlu0 %3358
        %3360 = vrot.lane.b32.xlu0 %v3269, 88
        %v3361 = vpop.permute.xlu0 %3360
        %3364 = vrot.lane.b32.xlu0 %v3278, 88
        %v3365 = vpop.permute.xlu0 %3364
        %3366 = vrot.lane.b32.xlu0 %v3279, 88
        %v3367 = vpop.permute.xlu0 %3366
        %3370 = vrot.lane.b32.xlu0 %v3288, 78
        %v3371 = vpop.permute.xlu0 %3370
        %3372 = vrot.lane.b32.xlu0 %v3289, 78
        %v3373 = vpop.permute.xlu0 %3372
        %3376 = vrot.lane.b32.xlu0 %v3298, 78
        %v3377 = vpop.permute.xlu0 %3376
        %3378 = vrot.lane.b32.xlu0 %v3299, 78
        %v3379 = vpop.permute.xlu0 %3378
        %3382 = vrot.lane.b32.xlu0 %v3308, 68
        %v3383 = vpop.permute.xlu0 %3382
        %3384 = vrot.lane.b32.xlu0 %v3309, 68
        %v3385 = vpop.permute.xlu0 %3384
        %3388 = vrot.lane.b32.xlu0 %v3318, 68
        %v3389 = vpop.permute.xlu0 %3388
        %3390 = vrot.lane.b32.xlu0 %v3319, 68
        %v3391 = vpop.permute.xlu0 %3390
        %3394 = vrot.lane.b32.xlu0 %v3148, 58
        %v3395 = vpop.permute.xlu0 %3394
        %3396 = vrot.lane.b32.xlu0 %v3149, 58
        %v3397 = vpop.permute.xlu0 %3396
        %3402 = vrot.lane.b32.xlu0 %v3148, 118
        %v3403 = vpop.permute.xlu0 %3402
        %3404 = vrot.lane.b32.xlu0 %v3149, 118
        %v3405 = vpop.permute.xlu0 %3404
        %3406 = vrot.lane.b32.xlu0 %v3164, 118
        %v3407 = vpop.permute.xlu0 %3406
        %3408 = vrot.lane.b32.xlu0 %v3165, 118
        %v3409 = vpop.permute.xlu0 %3408
        %3410 = vrot.lane.b32.xlu0 %v3178, 118
        %v3411 = vpop.permute.xlu0 %3410
        %3412 = vrot.lane.b32.xlu0 %v3179, 118
        %v3413 = vpop.permute.xlu0 %3412
        %3414 = vrot.lane.b32.xlu0 %v3323, 118
        %v3415 = vpop.permute.xlu0 %3414
        %3416 = vrot.lane.b32.xlu0 %v3325, 118
        %v3417 = vpop.permute.xlu0 %3416
        %3418 = vrot.lane.b32.xlu0 %v3329, 118
        %v3419 = vpop.permute.xlu0 %3418
        %3420 = vrot.lane.b32.xlu0 %v3331, 118
        %v3421 = vpop.permute.xlu0 %3420
        %3422 = vrot.lane.b32.xlu0 %v3335, 118
        %v3423 = vpop.permute.xlu0 %3422
        %3424 = vrot.lane.b32.xlu0 %v3337, 118
        %v3425 = vpop.permute.xlu0 %3424
        %3426 = vrot.lane.b32.xlu0 %v3341, 118
        %v3427 = vpop.permute.xlu0 %3426
        %3428 = vrot.lane.b32.xlu0 %v3343, 118
        %v3429 = vpop.permute.xlu0 %3428
        %3430 = vrot.lane.b32.xlu0 %v3347, 118
        %v3431 = vpop.permute.xlu0 %3430
        %3432 = vrot.lane.b32.xlu0 %v3349, 118
        %v3433 = vpop.permute.xlu0 %3432
        %3434 = vrot.lane.b32.xlu0 %v3353, 118
        %v3435 = vpop.permute.xlu0 %3434
        %3436 = vrot.lane.b32.xlu0 %v3355, 118
        %v3437 = vpop.permute.xlu0 %3436
        %3438 = vrot.lane.b32.xlu0 %v3359, 118
        %v3439 = vpop.permute.xlu0 %3438
        %3440 = vrot.lane.b32.xlu0 %v3361, 118
        %v3441 = vpop.permute.xlu0 %3440
        %3442 = vrot.lane.b32.xlu0 %v3365, 118
        %v3443 = vpop.permute.xlu0 %3442
        %3444 = vrot.lane.b32.xlu0 %v3367, 118
        %v3445 = vpop.permute.xlu0 %3444
        %3446 = vrot.lane.b32.xlu0 %v3371, 118
        %v3447 = vpop.permute.xlu0 %3446
        %3448 = vrot.lane.b32.xlu0 %v3373, 118
        %v3449 = vpop.permute.xlu0 %3448
        %3450 = vrot.lane.b32.xlu0 %v3377, 118
        %v3451 = vpop.permute.xlu0 %3450
        %3452 = vrot.lane.b32.xlu0 %v3379, 118
        %v3453 = vpop.permute.xlu0 %3452
        %3454 = vrot.lane.b32.xlu0 %v3383, 118
        %v3455 = vpop.permute.xlu0 %3454
        %3456 = vrot.lane.b32.xlu0 %v3385, 118
        %v3457 = vpop.permute.xlu0 %3456
        %3458 = vrot.lane.b32.xlu0 %v3389, 118
        %v3459 = vpop.permute.xlu0 %3458
        %3460 = vrot.lane.b32.xlu0 %v3391, 118
        %v3461 = vpop.permute.xlu0 %3460
        %3462 = vrot.lane.b32.xlu0 %v3395, 118
        %v3463 = vpop.permute.xlu0 %3462
        %3464 = vrot.lane.b32.xlu0 %v3397, 118
        %v3465 = vpop.permute.xlu0 %3464
        %v3466 = vsel %vm2400, %v3403, 0
        %v3468 = vsel %vm2400, %v3405, 0
        %v3470 = vsel %vm2400, %v3407, 0
        %v3472 = vsel %vm2400, %v3409, 0
        %v3474 = vsel %vm2400, %v3411, 0
        %v3476 = vsel %vm2400, %v3413, 0
        %v3478 = vsel %vm2400, %v3415, 0
        %v3480 = vsel %vm2400, %v3417, 0
        %v3482 = vsel %vm2400, %v3419, 0
        %v3484 = vsel %vm2400, %v3421, 0
        %v3486 = vsel %vm2400, %v3423, 0
        %v3488 = vsel %vm2400, %v3425, 0
        %v3490 = vsel %vm2400, %v3427, 0
        %v3492 = vsel %vm2400, %v3429, 0
        %v3494 = vsel %vm2400, %v3431, 0
        %v3496 = vsel %vm2400, %v3433, 0
        %v3498 = vsel %vm2400, %v3435, 0
        %v3500 = vsel %vm2400, %v3437, 0
        %v3502 = vsel %vm2400, %v3439, 0
        %v3504 = vsel %vm2400, %v3441, 0
        %v3506 = vsel %vm2400, %v3443, 0
        %v3508 = vsel %vm2400, %v3445, 0
        %v3510 = vsel %vm2400, %v3447, 0
        %v3512 = vsel %vm2400, %v3449, 0
        %v3514 = vsel %vm2400, %v3451, 0
        %v3516 = vsel %vm2400, %v3453, 0
        %v3518 = vsel %vm2400, %v3455, 0
        %v3520 = vsel %vm2400, %v3457, 0
        %v3522 = vsel %vm2400, %v3459, 0
        %v3524 = vsel %vm2400, %v3461, 0
        %v3526 = vsel %vm2400, %v3463, 0
        %v3528 = vsel %vm2400, %v3465, 0
        %v3531 = vsel %vm1667, %v3151, 0
        %3533 = vmatprep.subr.mxu0 0.0
        %3534 = vmatpush1.msra.mxu0 %v3150
        %3535 = vmatprep.subr.mxu0 0.0
        %3536 = vmatpush1.msra.mxu0 %v3531
        %3537 = vmatprep.subr.mxu0 0.0
        %3538 = vmatpush1.msra.mxu0 0.0
        %3539 = vmatprep.subr.mxu0 0.0
        %3540 = vmatpush1.msra.mxu0 0.0
        %3541 = vmatprep.subr.mxu0 0.0
        %3542 = vmatpush1.msra.mxu0 0.0
        %3543 = vmatprep.subr.mxu0 0.0
        %3544 = vmatpush1.msra.mxu0 0.0
        %3545 = vmatprep.subr.mxu0 0.0
        %3546 = vmatpush1.msra.mxu0 0.0
        %3547 = vmatprep.subr.mxu0 0.0
        %3548 = vmatpush1.msra.mxu0 0.0
        %3549 = vmatprep.subr.mxu0 0.0
        %3550 = vmatpush1.msra.mxu0 0.0
        %3551 = vmatprep.subr.mxu0 0.0
        %3552 = vmatpush1.msra.mxu0 0.0
        %3553 = vmatprep.subr.mxu0 0.0
        %3554 = vmatpush1.msra.mxu0 0.0
        %3555 = vmatprep.subr.mxu0 0.0
        %3556 = vmatpush1.msra.mxu0 0.0
        %3557 = vmatprep.subr.mxu0 0.0
        %3558 = vmatpush1.msra.mxu0 0.0
        %3559 = vmatprep.subr.mxu0 0.0
        %3560 = vmatpush1.msra.mxu0 0.0
        %3561 = vmatprep.subr.mxu0 0.0
        %3562 = vmatpush1.msra.mxu0 0.0
        %3563 = vmatprep.subr.mxu0 0.0
        %3564 = vmatpush1.msra.mxu0 0.0
        %3565 = vmatprep.subr.mxu0 0.0
        %3566 = vmatpush1.msra.mxu0 0.0
        %3567 = vmatprep.subr.mxu0 0.0
        %3568 = vmatpush1.msra.mxu0 0.0
        %3569 = vmatprep.subr.mxu0 0.0
        %3570 = vmatpush1.msra.mxu0 0.0
        %3571 = vmatprep.subr.mxu0 0.0
        %3572 = vmatpush1.msra.mxu0 0.0
        %3573 = vmatprep.subr.mxu0 0.0
        %3574 = vmatpush1.msra.mxu0 0.0
        %3575 = vmatprep.subr.mxu0 0.0
        %3576 = vmatpush1.msra.mxu0 0.0
        %3577 = vmatprep.subr.mxu0 0.0
        %3578 = vmatpush1.msra.mxu0 0.0
        %3579 = vmatprep.subr.mxu0 0.0
        %3580 = vmatpush1.msra.mxu0 0.0
        %3581 = vmatprep.subr.mxu0 0.0
        %3582 = vmatpush1.msra.mxu0 0.0
        %3583 = vmatprep.subr.mxu0 0.0
        %3584 = vmatpush1.msra.mxu0 0.0
        %3585 = vmatprep.subr.mxu0 0.0
        %3586 = vmatpush1.msra.mxu0 0.0
        %3587 = vmatprep.subr.mxu0 0.0
        %3588 = vmatpush1.msra.mxu0 0.0
        %3589 = vmatprep.subr.mxu0 0.0
        %3590 = vmatpush1.msra.mxu0 0.0
        %3591 = vmatprep.subr.mxu0 0.0
        %3592 = vmatpush1.msra.mxu0 0.0
        %3593 = vmatprep.subr.mxu0 0.0
        %3594 = vmatpush1.msra.mxu0 0.0
        %3595 = vmatprep.subr.mxu0 0.0
        %3596 = vmatpush1.msra.mxu0 0.0
        %3597 = vmatprep.mubr.f32.mxu0 0.0
        %3598 = vmatmul.mubr.f32.gmra.mrb[0].mxu0 %v3466
        %v3599 = vpop.f32.mrb[0].mxu0
        %v3600 = vadd.f32 0.0, %v3599
        %v3601 = vpop.f32.mrb[0].mxu0
        %3602 = vmatprep.mubr.f32.mxu0 0.0
        %3603 = vmatmul.mubr.f32.gmra.mrb[0].mxu0 %v3468
        %v3604 = vpop.f32.mrb[0].mxu0
        %v3605 = vadd.f32 0.0, %v3604
        %v3606 = vpop.f32.mrb[0].mxu0
        %3607 = vmatprep.mubr.f32.mxu0 0.0
        %3608 = vmatmul.mubr.f32.gmra.mrb[0].mxu0 %v3470
        %v3609 = vpop.f32.mrb[0].mxu0
        %v3610 = vadd.f32 0.0, %v3609
        %v3611 = vpop.f32.mrb[0].mxu0
        %3612 = vmatprep.mubr.f32.mxu0 0.0
        %3613 = vmatmul.mubr.f32.gmra.mrb[0].mxu0 %v3472
        %v3614 = vpop.f32.mrb[0].mxu0
        %v3615 = vadd.f32 0.0, %v3614
        %v3616 = vpop.f32.mrb[0].mxu0
        %3617 = vmatprep.mubr.f32.mxu0 0.0
        %3618 = vmatmul.mubr.f32.gmra.mrb[0].mxu0 %v3474
        %v3619 = vpop.f32.mrb[0].mxu0
        %v3620 = vadd.f32 0.0, %v3619
        %v3621 = vpop.f32.mrb[0].mxu0
        %3622 = vmatprep.mubr.f32.mxu0 0.0
        %3623 = vmatmul.mubr.f32.gmra.mrb[0].mxu0 %v3476
        %v3624 = vpop.f32.mrb[0].mxu0
        %v3625 = vadd.f32 0.0, %v3624
        %v3626 = vpop.f32.mrb[0].mxu0
        %3627 = vmatprep.mubr.f32.mxu0 0.0
        %3628 = vmatmul.mubr.f32.gmra.mrb[0].mxu0 %v3478
        %v3629 = vpop.f32.mrb[0].mxu0
        %v3630 = vadd.f32 0.0, %v3629
        %v3631 = vpop.f32.mrb[0].mxu0
        %3632 = vmatprep.mubr.f32.mxu0 0.0
        %3633 = vmatmul.mubr.f32.gmra.mrb[0].mxu0 %v3480
        %v3634 = vpop.f32.mrb[0].mxu0
        %v3635 = vadd.f32 0.0, %v3634
        %v3636 = vpop.f32.mrb[0].mxu0
        %3637 = vmatprep.mubr.f32.mxu0 0.0
        %3638 = vmatmul.mubr.f32.gmra.mrb[0].mxu0 %v3482
        %v3639 = vpop.f32.mrb[0].mxu0
        %v3640 = vadd.f32 0.0, %v3639
        %v3641 = vpop.f32.mrb[0].mxu0
        %3642 = vmatprep.mubr.f32.mxu0 0.0
        %3643 = vmatmul.mubr.f32.gmra.mrb[0].mxu0 %v3484
        %v3644 = vpop.f32.mrb[0].mxu0
        %v3645 = vadd.f32 0.0, %v3644
        %v3646 = vpop.f32.mrb[0].mxu0
        %3647 = vmatprep.mubr.f32.mxu0 0.0
        %3648 = vmatmul.mubr.f32.gmra.mrb[0].mxu0 %v3486
        %v3649 = vpop.f32.mrb[0].mxu0
        %v3650 = vadd.f32 0.0, %v3649
        %v3651 = vpop.f32.mrb[0].mxu0
        %3652 = vmatprep.mubr.f32.mxu0 0.0
        %3653 = vmatmul.mubr.f32.gmra.mrb[0].mxu0 %v3488
        %v3654 = vpop.f32.mrb[0].mxu0
        %v3655 = vadd.f32 0.0, %v3654
        %v3656 = vpop.f32.mrb[0].mxu0
        %3657 = vmatprep.mubr.f32.mxu0 0.0
        %3658 = vmatmul.mubr.f32.gmra.mrb[0].mxu0 %v3490
        %v3659 = vpop.f32.mrb[0].mxu0
        %v3660 = vadd.f32 0.0, %v3659
        %v3661 = vpop.f32.mrb[0].mxu0
        %3662 = vmatprep.mubr.f32.mxu0 0.0
        %3663 = vmatmul.mubr.f32.gmra.mrb[0].mxu0 %v3492
        %v3664 = vpop.f32.mrb[0].mxu0
        %v3665 = vadd.f32 0.0, %v3664
        %v3666 = vpop.f32.mrb[0].mxu0
        %3667 = vmatprep.mubr.f32.mxu0 0.0
        %3668 = vmatmul.mubr.f32.gmra.mrb[0].mxu0 %v3494
        %v3669 = vpop.f32.mrb[0].mxu0
        %v3670 = vadd.f32 0.0, %v3669
        %v3671 = vpop.f32.mrb[0].mxu0
        %3672 = vmatprep.mubr.f32.mxu0 0.0
        %3673 = vmatmul.mubr.f32.gmra.mrb[0].mxu0 %v3496
        %v3674 = vpop.f32.mrb[0].mxu0
        %v3675 = vadd.f32 0.0, %v3674
        %v3676 = vpop.f32.mrb[0].mxu0
        %3677 = vmatprep.mubr.f32.mxu0 0.0
        %3678 = vmatmul.mubr.f32.gmra.mrb[0].mxu0 %v3498
        %v3679 = vpop.f32.mrb[0].mxu0
        %v3680 = vadd.f32 0.0, %v3679
        %v3681 = vpop.f32.mrb[0].mxu0
        %3682 = vmatprep.mubr.f32.mxu0 0.0
        %3683 = vmatmul.mubr.f32.gmra.mrb[0].mxu0 %v3500
        %v3684 = vpop.f32.mrb[0].mxu0
        %v3685 = vadd.f32 0.0, %v3684
        %v3686 = vpop.f32.mrb[0].mxu0
        %3687 = vmatprep.mubr.f32.mxu0 0.0
        %3688 = vmatmul.mubr.f32.gmra.mrb[0].mxu0 %v3502
        %v3689 = vpop.f32.mrb[0].mxu0
        %v3690 = vadd.f32 0.0, %v3689
        %v3691 = vpop.f32.mrb[0].mxu0
        %3692 = vmatprep.mubr.f32.mxu0 0.0
        %3693 = vmatmul.mubr.f32.gmra.mrb[0].mxu0 %v3504
        %v3694 = vpop.f32.mrb[0].mxu0
        %v3695 = vadd.f32 0.0, %v3694
        %v3696 = vpop.f32.mrb[0].mxu0
        %3697 = vmatprep.mubr.f32.mxu0 0.0
        %3698 = vmatmul.mubr.f32.gmra.mrb[0].mxu0 %v3506
        %v3699 = vpop.f32.mrb[0].mxu0
        %v3700 = vadd.f32 0.0, %v3699
        %v3701 = vpop.f32.mrb[0].mxu0
        %3702 = vmatprep.mubr.f32.mxu0 0.0
        %3703 = vmatmul.mubr.f32.gmra.mrb[0].mxu0 %v3508
        %v3704 = vpop.f32.mrb[0].mxu0
        %v3705 = vadd.f32 0.0, %v3704
        %v3706 = vpop.f32.mrb[0].mxu0
        %3707 = vmatprep.mubr.f32.mxu0 0.0
        %3708 = vmatmul.mubr.f32.gmra.mrb[0].mxu0 %v3510
        %v3709 = vpop.f32.mrb[0].mxu0
        %v3710 = vadd.f32 0.0, %v3709
        %v3711 = vpop.f32.mrb[0].mxu0
        %3712 = vmatprep.mubr.f32.mxu0 0.0
        %3713 = vmatmul.mubr.f32.gmra.mrb[0].mxu0 %v3512
        %v3714 = vpop.f32.mrb[0].mxu0
        %v3715 = vadd.f32 0.0, %v3714
        %v3716 = vpop.f32.mrb[0].mxu0
        %3717 = vmatprep.mubr.f32.mxu0 0.0
        %3718 = vmatmul.mubr.f32.gmra.mrb[0].mxu0 %v3514
        %v3719 = vpop.f32.mrb[0].mxu0
        %v3720 = vadd.f32 0.0, %v3719
        %v3721 = vpop.f32.mrb[0].mxu0
        %3722 = vmatprep.mubr.f32.mxu0 0.0
        %3723 = vmatmul.mubr.f32.gmra.mrb[0].mxu0 %v3516
        %v3724 = vpop.f32.mrb[0].mxu0
        %v3725 = vadd.f32 0.0, %v3724
        %v3726 = vpop.f32.mrb[0].mxu0
        %3727 = vmatprep.mubr.f32.mxu0 0.0
        %3728 = vmatmul.mubr.f32.gmra.mrb[0].mxu0 %v3518
        %v3729 = vpop.f32.mrb[0].mxu0
        %v3730 = vadd.f32 0.0, %v3729
        %v3731 = vpop.f32.mrb[0].mxu0
        %3732 = vmatprep.mubr.f32.mxu0 0.0
        %3733 = vmatmul.mubr.f32.gmra.mrb[0].mxu0 %v3520
        %v3734 = vpop.f32.mrb[0].mxu0
        %v3735 = vadd.f32 0.0, %v3734
        %v3736 = vpop.f32.mrb[0].mxu0
        %3737 = vmatprep.mubr.f32.mxu0 0.0
        %3738 = vmatmul.mubr.f32.gmra.mrb[0].mxu0 %v3522
        %v3739 = vpop.f32.mrb[0].mxu0
        %v3740 = vadd.f32 0.0, %v3739
        %v3741 = vpop.f32.mrb[0].mxu0
        %3742 = vmatprep.mubr.f32.mxu0 0.0
        %3743 = vmatmul.mubr.f32.gmra.mrb[0].mxu0 %v3524
        %v3744 = vpop.f32.mrb[0].mxu0
        %v3745 = vadd.f32 0.0, %v3744
        %v3746 = vpop.f32.mrb[0].mxu0
        %3747 = vmatprep.mubr.f32.mxu0 0.0
        %3748 = vmatmul.mubr.f32.gmra.mrb[0].mxu0 %v3526
        %v3749 = vpop.f32.mrb[0].mxu0
        %v3750 = vadd.f32 0.0, %v3749
        %v3751 = vpop.f32.mrb[0].mxu0
        %3752 = vmatprep.mubr.f32.mxu0 0.0
        %3753 = vmatmul.mubr.f32.gmra.mrb[0].mxu0 %v3528
        %v3754 = vpop.f32.mrb[0].mxu0
        %v3755 = vadd.f32 0.0, %v3754
        %v3756 = vpop.f32.mrb[0].mxu0
        %3757 = vdwg.mxu0
        %3760 = vrot.lane.b32.xlu0 %v3600, 37
        %v3761 = vpop.permute.xlu0 %3760
        %3762 = vrot.lane.b32.xlu0 %v3605, 37
        %v3763 = vpop.permute.xlu0 %3762
        %vm3766 = vcmask 449832
        %3767 = vst.msk [vmem:[#allocation6] sm:$0xff] %vm3766, %v3761
        %3768 = vst.msk [vmem:[#allocation6 + $0x18] sm:$0xff] %vm3766, %v3763
        %3771 = vrot.lane.b32.xlu0 %v3610, 55
        %v3772 = vpop.permute.xlu0 %3771
        %3773 = vrot.lane.b32.xlu0 %v3615, 55
        %v3774 = vpop.permute.xlu0 %3773
        %vm3777 = vcmask 597432
        %3778 = vst.msk [vmem:[#allocation6] sm:$0xff] %vm3777, %v3772
        %3779 = vst.msk [vmem:[#allocation6 + $0x18] sm:$0xff] %vm3777, %v3774
        %3782 = vrot.lane.b32.xlu0 %v3620, 73
        %v3783 = vpop.permute.xlu0 %3782
        %3784 = vrot.lane.b32.xlu0 %v3625, 73
        %v3785 = vpop.permute.xlu0 %3784
        %vm3788 = vcmask 745032
        %3789 = vst.msk [vmem:[#allocation6] sm:$0xff] %vm3788, %v3783
        %3790 = vst.msk [vmem:[#allocation6 + $0x18] sm:$0xff] %vm3788, %v3785
        %3793 = vrot.lane.b32.xlu0 %v3630, 91
        %v3794 = vpop.permute.xlu0 %3793
        %3795 = vrot.lane.b32.xlu0 %v3635, 91
        %v3796 = vpop.permute.xlu0 %3795
        %vm3799 = vcmask 892632
        %3800 = vst.msk [vmem:[#allocation6] sm:$0xff] %vm3799, %v3794
        %3801 = vst.msk [vmem:[#allocation6 + $0x18] sm:$0xff] %vm3799, %v3796
        %3804 = vrot.lane.b32.xlu0 %v3640, 109
        %v3805 = vpop.permute.xlu0 %3804
        %3806 = vrot.lane.b32.xlu0 %v3645, 109
        %v3807 = vpop.permute.xlu0 %3806
        %vm3810 = vcmask 1040232
        %3811 = vst.msk [vmem:[#allocation6] sm:$0xff] %vm3810, %v3805
        %3812 = vst.msk [vmem:[#allocation6 + $0x18] sm:$0xff] %vm3810, %v3807
        %3815 = vrot.lane.b32.xlu0 %v3650, 127
        %v3816 = vpop.permute.xlu0 %3815
        %3817 = vrot.lane.b32.xlu0 %v3655, 127
        %v3818 = vpop.permute.xlu0 %3817
        %vm3821 = vcmask 1048568
        %3822 = vst.msk [vmem:[#allocation6] sm:$0xff] %vm3821, %v3816
        %vm3823 = vcmask 138240
        %3824 = vst.msk [vmem:[#allocation6 + $0x8] sm:$0xff] %vm3823, %v3816
        %3825 = vst.msk [vmem:[#allocation6 + $0x18] sm:$0xff] %vm3821, %v3818
        %3826 = vst.msk [vmem:[#allocation6 + $0x20] sm:$0xff] %vm3823, %v3818
        %3829 = vrot.lane.b32.xlu0 %v3660, 17
        %v3830 = vpop.permute.xlu0 %3829
        %3831 = vrot.lane.b32.xlu0 %v3665, 17
        %v3832 = vpop.permute.xlu0 %3831
        %vm3835 = vcmask 285832
        %3836 = vst.msk [vmem:[#allocation6 + $0x8] sm:$0xff] %vm3835, %v3830
        %3837 = vst.msk [vmem:[#allocation6 + $0x20] sm:$0xff] %vm3835, %v3832
        %3840 = vrot.lane.b32.xlu0 %v3670, 35
        %v3841 = vpop.permute.xlu0 %3840
        %3842 = vrot.lane.b32.xlu0 %v3675, 35
        %v3843 = vpop.permute.xlu0 %3842
        %vm3846 = vcmask 433432
        %3847 = vst.msk [vmem:[#allocation6 + $0x8] sm:$0xff] %vm3846, %v3841
        %3848 = vst.msk [vmem:[#allocation6 + $0x20] sm:$0xff] %vm3846, %v3843
        %3851 = vrot.lane.b32.xlu0 %v3680, 53
        %v3852 = vpop.permute.xlu0 %3851
        %3853 = vrot.lane.b32.xlu0 %v3685, 53
        %v3854 = vpop.permute.xlu0 %3853
        %vm3857 = vcmask 581032
        %3858 = vst.msk [vmem:[#allocation6 + $0x8] sm:$0xff] %vm3857, %v3852
        %3859 = vst.msk [vmem:[#allocation6 + $0x20] sm:$0xff] %vm3857, %v3854
        %3862 = vrot.lane.b32.xlu0 %v3690, 71
        %v3863 = vpop.permute.xlu0 %3862
        %3864 = vrot.lane.b32.xlu0 %v3695, 71
        %v3865 = vpop.permute.xlu0 %3864
        %vm3868 = vcmask 728632
        %3869 = vst.msk [vmem:[#allocation6 + $0x8] sm:$0xff] %vm3868, %v3863
        %3870 = vst.msk [vmem:[#allocation6 + $0x20] sm:$0xff] %vm3868, %v3865
        %3873 = vrot.lane.b32.xlu0 %v3700, 89
        %v3874 = vpop.permute.xlu0 %3873
        %3875 = vrot.lane.b32.xlu0 %v3705, 89
        %v3876 = vpop.permute.xlu0 %3875
        %vm3879 = vcmask 876232
        %3880 = vst.msk [vmem:[#allocation6 + $0x8] sm:$0xff] %vm3879, %v3874
        %3881 = vst.msk [vmem:[#allocation6 + $0x20] sm:$0xff] %vm3879, %v3876
        %3884 = vrot.lane.b32.xlu0 %v3710, 107
        %v3885 = vpop.permute.xlu0 %3884
        %3886 = vrot.lane.b32.xlu0 %v3715, 107
        %v3887 = vpop.permute.xlu0 %3886
        %vm3890 = vcmask 1023832
        %3891 = vst.msk [vmem:[#allocation6 + $0x8] sm:$0xff] %vm3890, %v3885
        %3892 = vst.msk [vmem:[#allocation6 + $0x20] sm:$0xff] %vm3890, %v3887
        %3895 = vrot.lane.b32.xlu0 %v3720, 125
        %v3896 = vpop.permute.xlu0 %3895
        %3897 = vrot.lane.b32.xlu0 %v3725, 125
        %v3898 = vpop.permute.xlu0 %3897
        %vm3901 = vcmask 1048552
        %3902 = vst.msk [vmem:[#allocation6 + $0x8] sm:$0xff] %vm3901, %v3896
        %vm3903 = vcmask 121856
        %3904 = vst.msk [vmem:[#allocation6 + $0x10] sm:$0xff] %vm3903, %v3896
        %3905 = vst.msk [vmem:[#allocation6 + $0x20] sm:$0xff] %vm3901, %v3898
        %3906 = vst.msk [vmem:[#allocation6 + $0x28] sm:$0xff] %vm3903, %v3898
        %3909 = vrot.lane.b32.xlu0 %v3730, 15
        %v3910 = vpop.permute.xlu0 %3909
        %3911 = vrot.lane.b32.xlu0 %v3735, 15
        %v3912 = vpop.permute.xlu0 %3911
        %vm3915 = vcmask 269432
        %3916 = vst.msk [vmem:[#allocation6 + $0x10] sm:$0xff] %vm3915, %v3910
        %3917 = vst.msk [vmem:[#allocation6 + $0x28] sm:$0xff] %vm3915, %v3912
        %3920 = vrot.lane.b32.xlu0 %v3740, 33
        %v3921 = vpop.permute.xlu0 %3920
        %3922 = vrot.lane.b32.xlu0 %v3745, 33
        %v3923 = vpop.permute.xlu0 %3922
        %vm3926 = vcmask 417032
        %3927 = vst.msk [vmem:[#allocation6 + $0x10] sm:$0xff] %vm3926, %v3921
        %3928 = vst.msk [vmem:[#allocation6 + $0x28] sm:$0xff] %vm3926, %v3923
        %3931 = vrot.lane.b32.xlu0 %v3750, 51
        %v3932 = vpop.permute.xlu0 %3931
        %3933 = vrot.lane.b32.xlu0 %v3755, 51
        %v3934 = vpop.permute.xlu0 %3933
        %vm3937 = vcmask 564632
        %3938 = vst.msk [vmem:[#allocation6 + $0x10] sm:$0xff] %vm3937, %v3932
        %3939 = vst.msk [vmem:[#allocation6 + $0x28] sm:$0xff] %vm3937, %v3934
        %v3940 = vld [vmem:[#allocation6] sm:$0xff]
        %v3941 = vld [vmem:[#allocation6 + $0x8] sm:$0xff]
        %v3942 = vld [vmem:[#allocation6 + $0x10] sm:$0xff]
        %v3943 = vld [vmem:[#allocation6 + $0x18] sm:$0xff]
        %v3944 = vld [vmem:[#allocation6 + $0x20] sm:$0xff]
        %v3945 = vld [vmem:[#allocation6 + $0x28] sm:$0xff]
        %3952 = vrot.lane.b32.xlu0 %v3940, 127
        %v3953 = vpop.permute.xlu0 %3952
        %3954 = vrot.lane.b32.xlu0 %v3941, 127
        %v3955 = vpop.permute.xlu0 %3954
        %3956 = vrot.lane.b32.xlu0 %v3942, 127
        %v3957 = vpop.permute.xlu0 %3956
        %3958 = vrot.lane.b32.xlu0 %v3943, 127
        %v3959 = vpop.permute.xlu0 %3958
        %3960 = vrot.lane.b32.xlu0 %v3944, 127
        %v3961 = vpop.permute.xlu0 %3960
        %3962 = vrot.lane.b32.xlu0 %v3945, 127
        %v3963 = vpop.permute.xlu0 %3962
        %v3964 = vsel %vm966, %v3953, %v3955
        %v3965 = vsel %vm966, %v3955, %v3957
        %v3966 = vsel %vm966, %v3959, %v3961
        %v3967 = vsel %vm966, %v3961, %v3963
        %3974 = vrot.lane.b32.xlu0 %v3940, 126
        %v3975 = vpop.permute.xlu0 %3974
        %3976 = vrot.lane.b32.xlu0 %v3941, 126
        %v3977 = vpop.permute.xlu0 %3976
        %3978 = vrot.lane.b32.xlu0 %v3942, 126
        %v3979 = vpop.permute.xlu0 %3978
        %3980 = vrot.lane.b32.xlu0 %v3943, 126
        %v3981 = vpop.permute.xlu0 %3980
        %3982 = vrot.lane.b32.xlu0 %v3944, 126
        %v3983 = vpop.permute.xlu0 %3982
        %3984 = vrot.lane.b32.xlu0 %v3945, 126
        %v3985 = vpop.permute.xlu0 %3984
        %v3986 = vsel %vm978, %v3975, %v3977
        %v3987 = vsel %vm978, %v3977, %v3979
        %v3988 = vsel %vm978, %v3981, %v3983
        %v3989 = vsel %vm978, %v3983, %v3985
        %3996 = vrot.lane.b32.xlu0 %v3940, 110
        %v3997 = vpop.permute.xlu0 %3996
        %3998 = vrot.lane.b32.xlu0 %v3941, 110
        %v3999 = vpop.permute.xlu0 %3998
        %4000 = vrot.lane.b32.xlu0 %v3942, 110
        %v4001 = vpop.permute.xlu0 %4000
        %4002 = vrot.lane.b32.xlu0 %v3943, 110
        %v4003 = vpop.permute.xlu0 %4002
        %4004 = vrot.lane.b32.xlu0 %v3944, 110
        %v4005 = vpop.permute.xlu0 %4004
        %4006 = vrot.lane.b32.xlu0 %v3945, 110
        %v4007 = vpop.permute.xlu0 %4006
        %v4008 = vsel %vm990, %v3997, %v3999
        %v4009 = vsel %vm990, %v3999, %v4001
        %v4010 = vsel %vm990, %v4003, %v4005
        %v4011 = vsel %vm990, %v4005, %v4007
        %4018 = vrot.lane.b32.xlu0 %v3940, 109
        %v4019 = vpop.permute.xlu0 %4018
        %4020 = vrot.lane.b32.xlu0 %v3941, 109
        %v4021 = vpop.permute.xlu0 %4020
        %4022 = vrot.lane.b32.xlu0 %v3942, 109
        %v4023 = vpop.permute.xlu0 %4022
        %4024 = vrot.lane.b32.xlu0 %v3943, 109
        %v4025 = vpop.permute.xlu0 %4024
        %4026 = vrot.lane.b32.xlu0 %v3944, 109
        %v4027 = vpop.permute.xlu0 %4026
        %4028 = vrot.lane.b32.xlu0 %v3945, 109
        %v4029 = vpop.permute.xlu0 %4028
        %v4030 = vsel %vm1002, %v4019, %v4021
        %v4031 = vsel %vm1002, %v4021, %v4023
        %v4032 = vsel %vm1002, %v4025, %v4027
        %v4033 = vsel %vm1002, %v4027, %v4029
        %4040 = vrot.lane.b32.xlu0 %v3940, 108
        %v4041 = vpop.permute.xlu0 %4040
        %4042 = vrot.lane.b32.xlu0 %v3941, 108
        %v4043 = vpop.permute.xlu0 %4042
        %4044 = vrot.lane.b32.xlu0 %v3942, 108
        %v4045 = vpop.permute.xlu0 %4044
        %4046 = vrot.lane.b32.xlu0 %v3943, 108
        %v4047 = vpop.permute.xlu0 %4046
        %4048 = vrot.lane.b32.xlu0 %v3944, 108
        %v4049 = vpop.permute.xlu0 %4048
        %4050 = vrot.lane.b32.xlu0 %v3945, 108
        %v4051 = vpop.permute.xlu0 %4050
        %v4052 = vsel %vm1014, %v4041, %v4043
        %v4053 = vsel %vm1014, %v4043, %v4045
        %v4054 = vsel %vm1014, %v4047, %v4049
        %v4055 = vsel %vm1014, %v4049, %v4051
        %4062 = vrot.lane.b32.xlu0 %v3940, 92
        %v4063 = vpop.permute.xlu0 %4062
        %4064 = vrot.lane.b32.xlu0 %v3941, 92
        %v4065 = vpop.permute.xlu0 %4064
        %4066 = vrot.lane.b32.xlu0 %v3942, 92
        %v4067 = vpop.permute.xlu0 %4066
        %4068 = vrot.lane.b32.xlu0 %v3943, 92
        %v4069 = vpop.permute.xlu0 %4068
        %4070 = vrot.lane.b32.xlu0 %v3944, 92
        %v4071 = vpop.permute.xlu0 %4070
        %4072 = vrot.lane.b32.xlu0 %v3945, 92
        %v4073 = vpop.permute.xlu0 %4072
        %v4074 = vsel %vm1026, %v4063, %v4065
        %v4075 = vsel %vm1026, %v4065, %v4067
        %v4076 = vsel %vm1026, %v4069, %v4071
        %v4077 = vsel %vm1026, %v4071, %v4073
        %4084 = vrot.lane.b32.xlu0 %v3940, 91
        %v4085 = vpop.permute.xlu0 %4084
        %4086 = vrot.lane.b32.xlu0 %v3941, 91
        %v4087 = vpop.permute.xlu0 %4086
        %4088 = vrot.lane.b32.xlu0 %v3942, 91
        %v4089 = vpop.permute.xlu0 %4088
        %4090 = vrot.lane.b32.xlu0 %v3943, 91
        %v4091 = vpop.permute.xlu0 %4090
        %4092 = vrot.lane.b32.xlu0 %v3944, 91
        %v4093 = vpop.permute.xlu0 %4092
        %4094 = vrot.lane.b32.xlu0 %v3945, 91
        %v4095 = vpop.permute.xlu0 %4094
        %v4096 = vsel %vm1038, %v4085, %v4087
        %v4097 = vsel %vm1038, %v4087, %v4089
        %v4098 = vsel %vm1038, %v4091, %v4093
        %v4099 = vsel %vm1038, %v4093, %v4095
        %4106 = vrot.lane.b32.xlu0 %v3940, 90
        %v4107 = vpop.permute.xlu0 %4106
        %4108 = vrot.lane.b32.xlu0 %v3941, 90
        %v4109 = vpop.permute.xlu0 %4108
        %4110 = vrot.lane.b32.xlu0 %v3942, 90
        %v4111 = vpop.permute.xlu0 %4110
        %4112 = vrot.lane.b32.xlu0 %v3943, 90
        %v4113 = vpop.permute.xlu0 %4112
        %4114 = vrot.lane.b32.xlu0 %v3944, 90
        %v4115 = vpop.permute.xlu0 %4114
        %4116 = vrot.lane.b32.xlu0 %v3945, 90
        %v4117 = vpop.permute.xlu0 %4116
        %v4118 = vsel %vm1050, %v4107, %v4109
        %v4119 = vsel %vm1050, %v4109, %v4111
        %v4120 = vsel %vm1050, %v4113, %v4115
        %v4121 = vsel %vm1050, %v4115, %v4117
        %v4128 = vld [vmem:[%s15] sm:$0xff]
        %v4129 = vld [vmem:[%s15 + $0x8] sm:$0xff]
        %v4131 = vsel %vm1964, %v4129, 0
        %4133 = vmatprep.subr.mxu0 %v3941
        %4134 = vmatpush1.msra.mxu0 %v3940
        %4135 = vmatprep.subr.mxu0 %v3944
        %4136 = vmatpush1.msra.mxu0 %v3943
        %4137 = vmatprep.subr.mxu0 %v3965
        %4138 = vmatpush1.msra.mxu0 %v3964
        %4139 = vmatprep.subr.mxu0 %v3967
        %4140 = vmatpush1.msra.mxu0 %v3966
        %4141 = vmatprep.subr.mxu0 %v3987
        %4142 = vmatpush1.msra.mxu0 %v3986
        %4143 = vmatprep.subr.mxu0 %v3989
        %4144 = vmatpush1.msra.mxu0 %v3988
        %4145 = vmatprep.subr.mxu0 %v4009
        %4146 = vmatpush1.msra.mxu0 %v4008
        %4147 = vmatprep.subr.mxu0 %v4011
        %4148 = vmatpush1.msra.mxu0 %v4010
        %4149 = vmatprep.subr.mxu0 %v4031
        %4150 = vmatpush1.msra.mxu0 %v4030
        %4151 = vmatprep.subr.mxu0 %v4033
        %4152 = vmatpush1.msra.mxu0 %v4032
        %4153 = vmatprep.subr.mxu0 %v4053
        %4154 = vmatpush1.msra.mxu0 %v4052
        %4155 = vmatprep.subr.mxu0 %v4055
        %4156 = vmatpush1.msra.mxu0 %v4054
        %4157 = vmatprep.subr.mxu0 %v4075
        %4158 = vmatpush1.msra.mxu0 %v4074
        %4159 = vmatprep.subr.mxu0 %v4077
        %4160 = vmatpush1.msra.mxu0 %v4076
        %4161 = vmatprep.subr.mxu0 %v4097
        %4162 = vmatpush1.msra.mxu0 %v4096
        %4163 = vmatprep.subr.mxu0 %v4099
        %4164 = vmatpush1.msra.mxu0 %v4098
        %4165 = vmatprep.subr.mxu0 %v4119
        %4166 = vmatpush1.msra.mxu0 %v4118
        %4167 = vmatprep.subr.mxu0 %v4121
        %4168 = vmatpush1.msra.mxu0 %v4120
        %4169 = vmatprep.subr.mxu0 0.0
        %4170 = vmatpush1.msra.mxu0 0.0
        %4171 = vmatprep.subr.mxu0 0.0
        %4172 = vmatpush1.msra.mxu0 0.0
        %4173 = vmatprep.subr.mxu0 0.0
        %4174 = vmatpush1.msra.mxu0 0.0
        %4175 = vmatprep.subr.mxu0 0.0
        %4176 = vmatpush1.msra.mxu0 0.0
        %4177 = vmatprep.subr.mxu0 0.0
        %4178 = vmatpush1.msra.mxu0 0.0
        %4179 = vmatprep.subr.mxu0 0.0
        %4180 = vmatpush1.msra.mxu0 0.0
        %4181 = vmatprep.subr.mxu0 0.0
        %4182 = vmatpush1.msra.mxu0 0.0
        %4183 = vmatprep.subr.mxu0 0.0
        %4184 = vmatpush1.msra.mxu0 0.0
        %4185 = vmatprep.subr.mxu0 0.0
        %4186 = vmatpush1.msra.mxu0 0.0
        %4187 = vmatprep.subr.mxu0 0.0
        %4188 = vmatpush1.msra.mxu0 0.0
        %4189 = vmatprep.subr.mxu0 0.0
        %4190 = vmatpush1.msra.mxu0 0.0
        %4191 = vmatprep.subr.mxu0 0.0
        %4192 = vmatpush1.msra.mxu0 0.0
        %4193 = vmatprep.subr.mxu0 0.0
        %4194 = vmatpush1.msra.mxu0 0.0
        %4195 = vmatprep.subr.mxu0 0.0
        %4196 = vmatpush1.msra.mxu0 0.0
        %4197 = vmatprep.mubr.f32.mxu0 %v4131
        %4198 = vmatmul.mubr.f32.gmra.mrb[0].mxu0 %v4128
        %v4199 = vpop.f32.mrb[0].mxu0
        %v4200 = vadd.f32 0.0, %v4199
        %v4201 = vpop.f32.mrb[0].mxu0
        %v4202 = vadd.f32 0.0, %v4201
        %4203 = vdwg.mxu0
        %4204 = vmatprep.subr.mxu0 0.0
        %4205 = vmatpush1.msra.mxu0 %v3942
        %4206 = vmatprep.subr.mxu0 0.0
        %4207 = vmatpush1.msra.mxu0 %v3945
        %4208 = vmatprep.subr.mxu0 0.0
        %4209 = vmatpush1.msra.mxu0 %v3957
        %4210 = vmatprep.subr.mxu0 0.0
        %4211 = vmatpush1.msra.mxu0 %v3963
        %4212 = vmatprep.subr.mxu0 0.0
        %4213 = vmatpush1.msra.mxu0 %v3979
        %4214 = vmatprep.subr.mxu0 0.0
        %4215 = vmatpush1.msra.mxu0 %v3985
        %4216 = vmatprep.subr.mxu0 0.0
        %4217 = vmatpush1.msra.mxu0 %v4001
        %4218 = vmatprep.subr.mxu0 0.0
        %4219 = vmatpush1.msra.mxu0 %v4007
        %4220 = vmatprep.subr.mxu0 0.0
        %4221 = vmatpush1.msra.mxu0 %v4023
        %4222 = vmatprep.subr.mxu0 0.0
        %4223 = vmatpush1.msra.mxu0 %v4029
        %4224 = vmatprep.subr.mxu0 0.0
        %4225 = vmatpush1.msra.mxu0 %v4045
        %4226 = vmatprep.subr.mxu0 0.0
        %4227 = vmatpush1.msra.mxu0 %v4051
        %4228 = vmatprep.subr.mxu0 0.0
        %4229 = vmatpush1.msra.mxu0 %v4067
        %4230 = vmatprep.subr.mxu0 0.0
        %4231 = vmatpush1.msra.mxu0 %v4073
        %4232 = vmatprep.subr.mxu0 0.0
        %4233 = vmatpush1.msra.mxu0 %v4089
        %4234 = vmatprep.subr.mxu0 0.0
        %4235 = vmatpush1.msra.mxu0 %v4095
        %4236 = vmatprep.subr.mxu0 0.0
        %4237 = vmatpush1.msra.mxu0 %v4111
        %4238 = vmatprep.subr.mxu0 0.0
        %4239 = vmatpush1.msra.mxu0 %v4117
        %4240 = vmatprep.subr.mxu0 0.0
        %4241 = vmatpush1.msra.mxu0 0.0
        %4242 = vmatprep.subr.mxu0 0.0
        %4243 = vmatpush1.msra.mxu0 0.0
        %4244 = vmatprep.subr.mxu0 0.0
        %4245 = vmatpush1.msra.mxu0 0.0
        %4246 = vmatprep.subr.mxu0 0.0
        %4247 = vmatpush1.msra.mxu0 0.0
        %4248 = vmatprep.subr.mxu0 0.0
        %4249 = vmatpush1.msra.mxu0 0.0
        %4250 = vmatprep.subr.mxu0 0.0
        %4251 = vmatpush1.msra.mxu0 0.0
        %4252 = vmatprep.subr.mxu0 0.0
        %4253 = vmatpush1.msra.mxu0 0.0
        %4254 = vmatprep.subr.mxu0 0.0
        %4255 = vmatpush1.msra.mxu0 0.0
        %4256 = vmatprep.subr.mxu0 0.0
        %4257 = vmatpush1.msra.mxu0 0.0
        %4258 = vmatprep.subr.mxu0 0.0
        %4259 = vmatpush1.msra.mxu0 0.0
        %4260 = vmatprep.subr.mxu0 0.0
        %4261 = vmatpush1.msra.mxu0 0.0
        %4262 = vmatprep.subr.mxu0 0.0
        %4263 = vmatpush1.msra.mxu0 0.0
        %4264 = vmatprep.subr.mxu0 0.0
        %4265 = vmatpush1.msra.mxu0 0.0
        %4266 = vmatprep.subr.mxu0 0.0
        %4267 = vmatpush1.msra.mxu0 0.0
        %4268 = vmatprep.mubr.f32.mxu0 %v4131
        %4269 = vmatmul.mubr.f32.gmra.mrb[0].mxu0 %v4128
        %v4270 = vpop.f32.mrb[0].mxu0
        %v4271 = vadd.f32 0.0, %v4270
        %v4272 = vpop.f32.mrb[0].mxu0
        %4273 = vdwg.mxu0
        %v4274 = vld [vmem:[%s16] sm:$0xff]
        %4276 = vset.pattern.permute.xlu0 0
        %4277 = vperm.xlu0 %4276, %v4274
        %v4278 = vpop.permute.xlu0 %4277
        %v4280 = vmul.f32 %v4200, %v4278
        %v4281 = vmul.f32 %v4202, %v4278
        %v4282 = vmul.f32 %v4271, %v4278
        %v4283 = vld [vmem:[%s17] sm:$0xff]
        %4285 = vset.pattern.permute.xlu0 0
        %4286 = vperm.xlu0 %4285, %v4283
        %v4287 = vpop.permute.xlu0 %4286
        %v4289 = vadd.f32 %v4280, %v4287
        %v4290 = vadd.f32 %v4281, %v4287
        %v4291 = vadd.f32 %v4282, %v4287
        %v4292 = vmax.f32 %v4289, 0.0
        %v4293 = vmax.f32 %v4290, 0.0
        %v4294 = vmax.f32 %v4291, 0.0
        %v4295 = vmul.f32 %v4292, %v1227
        %v4296 = vmul.f32 %v4293, %v1231
        %v4297 = vmul.f32 %v4294, %v1235
        %v4298 = vld [vmem:[#allocation3] sm:$0xff]
        %v4299 = vld [vmem:[#allocation3 + $0x8] sm:$0xff]
        %v4300 = vld [vmem:[#allocation3 + $0x10] sm:$0xff]
        %4304 = vrot.lane.b32.xlu0 %v4298, 109
        %v4305 = vpop.permute.xlu0 %4304
        %4306 = vrot.lane.b32.xlu0 %v4299, 109
        %v4307 = vpop.permute.xlu0 %4306
        %4308 = vrot.lane.b32.xlu0 %v4300, 109
        %v4309 = vpop.permute.xlu0 %4308
        %v4310 = vsel %vm1002, %v4305, %v4307
        %v4311 = vsel %vm1002, %v4307, %v4309
        %v4315 = vadd.f32 %v4295, %v4310
        %v4316 = vadd.f32 %v4296, %v4311
        %v4317 = vadd.f32 %v4297, %v4309
        %4321 = vrot.lane.b32.xlu0 %v4315, 19
        %v4322 = vpop.permute.xlu0 %4321
        %4323 = vrot.lane.b32.xlu0 %v4316, 19
        %v4324 = vpop.permute.xlu0 %4323
        %4325 = vrot.lane.b32.xlu0 %v4317, 19
        %v4326 = vpop.permute.xlu0 %4325
        %v4327 = vsel %vm1251, %v4322, %v4324
        %v4328 = vsel %vm1251, %v4324, %v4326
        %4332 = vst.msk [vmem:[#allocation7] sm:$0xff] %vm1257, %v4322
        %4333 = vst [vmem:[#allocation7 + $0x8] sm:$0xff] %v4327
        %4334 = vst.msk [vmem:[#allocation7 + $0x10] sm:$0xff] %vm1260, %v4328
        %v4335 = vld [vmem:[#allocation7] sm:$0xff]
        %v4336 = vld [vmem:[#allocation7 + $0x8] sm:$0xff]
        %v4337 = vld [vmem:[#allocation7 + $0x10] sm:$0xff]
        %4341 = vrot.lane.b32.xlu0 %v4335, 127
        %v4342 = vpop.permute.xlu0 %4341
        %4343 = vrot.lane.b32.xlu0 %v4336, 127
        %v4344 = vpop.permute.xlu0 %4343
        %4345 = vrot.lane.b32.xlu0 %v4337, 127
        %v4346 = vpop.permute.xlu0 %4345
        %v4347 = vsel %vm966, %v4342, %v4344
        %v4348 = vsel %vm966, %v4344, %v4346
        %4352 = vrot.lane.b32.xlu0 %v4335, 126
        %v4353 = vpop.permute.xlu0 %4352
        %4354 = vrot.lane.b32.xlu0 %v4336, 126
        %v4355 = vpop.permute.xlu0 %4354
        %4356 = vrot.lane.b32.xlu0 %v4337, 126
        %v4357 = vpop.permute.xlu0 %4356
        %v4358 = vsel %vm978, %v4353, %v4355
        %v4359 = vsel %vm978, %v4355, %v4357
        %4363 = vrot.lane.b32.xlu0 %v4335, 110
        %v4364 = vpop.permute.xlu0 %4363
        %4365 = vrot.lane.b32.xlu0 %v4336, 110
        %v4366 = vpop.permute.xlu0 %4365
        %4367 = vrot.lane.b32.xlu0 %v4337, 110
        %v4368 = vpop.permute.xlu0 %4367
        %v4369 = vsel %vm990, %v4364, %v4366
        %v4370 = vsel %vm990, %v4366, %v4368
        %4374 = vrot.lane.b32.xlu0 %v4335, 109
        %v4375 = vpop.permute.xlu0 %4374
        %4376 = vrot.lane.b32.xlu0 %v4336, 109
        %v4377 = vpop.permute.xlu0 %4376
        %4378 = vrot.lane.b32.xlu0 %v4337, 109
        %v4379 = vpop.permute.xlu0 %4378
        %v4380 = vsel %vm1002, %v4375, %v4377
        %v4381 = vsel %vm1002, %v4377, %v4379
        %4385 = vrot.lane.b32.xlu0 %v4335, 108
        %v4386 = vpop.permute.xlu0 %4385
        %4387 = vrot.lane.b32.xlu0 %v4336, 108
        %v4388 = vpop.permute.xlu0 %4387
        %4389 = vrot.lane.b32.xlu0 %v4337, 108
        %v4390 = vpop.permute.xlu0 %4389
        %v4391 = vsel %vm1014, %v4386, %v4388
        %v4392 = vsel %vm1014, %v4388, %v4390
        %4396 = vrot.lane.b32.xlu0 %v4335, 92
        %v4397 = vpop.permute.xlu0 %4396
        %4398 = vrot.lane.b32.xlu0 %v4336, 92
        %v4399 = vpop.permute.xlu0 %4398
        %4400 = vrot.lane.b32.xlu0 %v4337, 92
        %v4401 = vpop.permute.xlu0 %4400
        %v4402 = vsel %vm1026, %v4397, %v4399
        %v4403 = vsel %vm1026, %v4399, %v4401
        %4407 = vrot.lane.b32.xlu0 %v4335, 91
        %v4408 = vpop.permute.xlu0 %4407
        %4409 = vrot.lane.b32.xlu0 %v4336, 91
        %v4410 = vpop.permute.xlu0 %4409
        %4411 = vrot.lane.b32.xlu0 %v4337, 91
        %v4412 = vpop.permute.xlu0 %4411
        %v4413 = vsel %vm1038, %v4408, %v4410
        %v4414 = vsel %vm1038, %v4410, %v4412
        %4418 = vrot.lane.b32.xlu0 %v4335, 90
        %v4419 = vpop.permute.xlu0 %4418
        %4420 = vrot.lane.b32.xlu0 %v4336, 90
        %v4421 = vpop.permute.xlu0 %4420
        %4422 = vrot.lane.b32.xlu0 %v4337, 90
        %v4423 = vpop.permute.xlu0 %4422
        %v4424 = vsel %vm1050, %v4419, %v4421
        %v4425 = vsel %vm1050, %v4421, %v4423
        %v4429 = vld [vmem:[%s18] sm:$0xf]
        %v4431 = vsel %vm1057, %v4429, 0
        %4433 = vmatprep.subr.mxu0 %v4336
        %4434 = vmatpush1.msra.mxu0 %v4335
        %4435 = vmatprep.subr.mxu0 %v4348
        %4436 = vmatpush1.msra.mxu0 %v4347
        %4437 = vmatprep.subr.mxu0 %v4359
        %4438 = vmatpush1.msra.mxu0 %v4358
        %4439 = vmatprep.subr.mxu0 %v4370
        %4440 = vmatpush1.msra.mxu0 %v4369
        %4441 = vmatprep.subr.mxu0 %v4381
        %4442 = vmatpush1.msra.mxu0 %v4380
        %4443 = vmatprep.subr.mxu0 %v4392
        %4444 = vmatpush1.msra.mxu0 %v4391
        %4445 = vmatprep.subr.mxu0 %v4403
        %4446 = vmatpush1.msra.mxu0 %v4402
        %4447 = vmatprep.subr.mxu0 %v4414
        %4448 = vmatpush1.msra.mxu0 %v4413
        %4449 = vmatprep.subr.mxu0 %v4425
        %4450 = vmatpush1.msra.mxu0 %v4424
        %4451 = vmatprep.subr.mxu0 0.0
        %4452 = vmatpush1.msra.mxu0 0.0
        %4453 = vmatprep.subr.mxu0 0.0
        %4454 = vmatpush1.msra.mxu0 0.0
        %4455 = vmatprep.subr.mxu0 0.0
        %4456 = vmatpush1.msra.mxu0 0.0
        %4457 = vmatprep.subr.mxu0 0.0
        %4458 = vmatpush1.msra.mxu0 0.0
        %4459 = vmatprep.subr.mxu0 0.0
        %4460 = vmatpush1.msra.mxu0 0.0
        %4461 = vmatprep.subr.mxu0 0.0
        %4462 = vmatpush1.msra.mxu0 0.0
        %4463 = vmatprep.subr.mxu0 0.0
        %4464 = vmatpush1.msra.mxu0 0.0
        %4465 = vmatprep.subr.mxu0 0.0
        %4466 = vmatpush1.msra.mxu0 0.0
        %4467 = vmatprep.subr.mxu0 0.0
        %4468 = vmatpush1.msra.mxu0 0.0
        %4469 = vmatprep.subr.mxu0 0.0
        %4470 = vmatpush1.msra.mxu0 0.0
        %4471 = vmatprep.subr.mxu0 0.0
        %4472 = vmatpush1.msra.mxu0 0.0
        %4473 = vmatprep.subr.mxu0 0.0
        %4474 = vmatpush1.msra.mxu0 0.0
        %4475 = vmatprep.subr.mxu0 0.0
        %4476 = vmatpush1.msra.mxu0 0.0
        %4477 = vmatprep.subr.mxu0 0.0
        %4478 = vmatpush1.msra.mxu0 0.0
        %4479 = vmatprep.subr.mxu0 0.0
        %4480 = vmatpush1.msra.mxu0 0.0
        %4481 = vmatprep.subr.mxu0 0.0
        %4482 = vmatpush1.msra.mxu0 0.0
        %4483 = vmatprep.subr.mxu0 0.0
        %4484 = vmatpush1.msra.mxu0 0.0
        %4485 = vmatprep.subr.mxu0 0.0
        %4486 = vmatpush1.msra.mxu0 0.0
        %4487 = vmatprep.subr.mxu0 0.0
        %4488 = vmatpush1.msra.mxu0 0.0
        %4489 = vmatprep.subr.mxu0 0.0
        %4490 = vmatpush1.msra.mxu0 0.0
        %4491 = vmatprep.subr.mxu0 0.0
        %4492 = vmatpush1.msra.mxu0 0.0
        %4493 = vmatprep.subr.mxu0 0.0
        %4494 = vmatpush1.msra.mxu0 0.0
        %4495 = vmatprep.subr.mxu0 0.0
        %4496 = vmatpush1.msra.mxu0 0.0
        %4497 = vmatprep.mubr.f32.mxu0 0.0
        %4498 = vmatmul.mubr.f32.gmra.mrb[0].mxu0 %v4431
        %v4499 = vpop.f32.mrb[0].mxu0
        %v4500 = vadd.f32 0.0, %v4499
        %v4501 = vpop.f32.mrb[0].mxu0
        %v4502 = vadd.f32 0.0, %v4501
        %4503 = vdwg.mxu0
        %4504 = vmatprep.subr.mxu0 0.0
        %4505 = vmatpush1.msra.mxu0 %v4337
        %4506 = vmatprep.subr.mxu0 0.0
        %4507 = vmatpush1.msra.mxu0 %v4346
        %4508 = vmatprep.subr.mxu0 0.0
        %4509 = vmatpush1.msra.mxu0 %v4357
        %4510 = vmatprep.subr.mxu0 0.0
        %4511 = vmatpush1.msra.mxu0 %v4368
        %4512 = vmatprep.subr.mxu0 0.0
        %4513 = vmatpush1.msra.mxu0 %v4379
        %4514 = vmatprep.subr.mxu0 0.0
        %4515 = vmatpush1.msra.mxu0 %v4390
        %4516 = vmatprep.subr.mxu0 0.0
        %4517 = vmatpush1.msra.mxu0 %v4401
        %4518 = vmatprep.subr.mxu0 0.0
        %4519 = vmatpush1.msra.mxu0 %v4412
        %4520 = vmatprep.subr.mxu0 0.0
        %4521 = vmatpush1.msra.mxu0 %v4423
        %4522 = vmatprep.subr.mxu0 0.0
        %4523 = vmatpush1.msra.mxu0 0.0
        %4524 = vmatprep.subr.mxu0 0.0
        %4525 = vmatpush1.msra.mxu0 0.0
        %4526 = vmatprep.subr.mxu0 0.0
        %4527 = vmatpush1.msra.mxu0 0.0
        %4528 = vmatprep.subr.mxu0 0.0
        %4529 = vmatpush1.msra.mxu0 0.0
        %4530 = vmatprep.subr.mxu0 0.0
        %4531 = vmatpush1.msra.mxu0 0.0
        %4532 = vmatprep.subr.mxu0 0.0
        %4533 = vmatpush1.msra.mxu0 0.0
        %4534 = vmatprep.subr.mxu0 0.0
        %4535 = vmatpush1.msra.mxu0 0.0
        %4536 = vmatprep.subr.mxu0 0.0
        %4537 = vmatpush1.msra.mxu0 0.0
        %4538 = vmatprep.subr.mxu0 0.0
        %4539 = vmatpush1.msra.mxu0 0.0
        %4540 = vmatprep.subr.mxu0 0.0
        %4541 = vmatpush1.msra.mxu0 0.0
        %4542 = vmatprep.subr.mxu0 0.0
        %4543 = vmatpush1.msra.mxu0 0.0
        %4544 = vmatprep.subr.mxu0 0.0
        %4545 = vmatpush1.msra.mxu0 0.0
        %4546 = vmatprep.subr.mxu0 0.0
        %4547 = vmatpush1.msra.mxu0 0.0
        %4548 = vmatprep.subr.mxu0 0.0
        %4549 = vmatpush1.msra.mxu0 0.0
        %4550 = vmatprep.subr.mxu0 0.0
        %4551 = vmatpush1.msra.mxu0 0.0
        %4552 = vmatprep.subr.mxu0 0.0
        %4553 = vmatpush1.msra.mxu0 0.0
        %4554 = vmatprep.subr.mxu0 0.0
        %4555 = vmatpush1.msra.mxu0 0.0
        %4556 = vmatprep.subr.mxu0 0.0
        %4557 = vmatpush1.msra.mxu0 0.0
        %4558 = vmatprep.subr.mxu0 0.0
        %4559 = vmatpush1.msra.mxu0 0.0
        %4560 = vmatprep.subr.mxu0 0.0
        %4561 = vmatpush1.msra.mxu0 0.0
        %4562 = vmatprep.subr.mxu0 0.0
        %4563 = vmatpush1.msra.mxu0 0.0
        %4564 = vmatprep.subr.mxu0 0.0
        %4565 = vmatpush1.msra.mxu0 0.0
        %4566 = vmatprep.subr.mxu0 0.0
        %4567 = vmatpush1.msra.mxu0 0.0
        %4568 = vmatprep.mubr.f32.mxu0 0.0
        %4569 = vmatmul.mubr.f32.gmra.mrb[0].mxu0 %v4431
        %v4570 = vpop.f32.mrb[0].mxu0
        %v4571 = vadd.f32 0.0, %v4570
        %v4572 = vpop.f32.mrb[0].mxu0
        %4573 = vdwg.mxu0
        %v4574 = vld [vmem:[%s19] sm:$0xf]
        %4576 = vset.pattern.permute.xlu0 0
        %4577 = vperm.xlu0 %4576, %v4574
        %v4578 = vpop.permute.xlu0 %4577
        %v4580 = vmul.f32 %v4500, %v4578
        %v4581 = vmul.f32 %v4502, %v4578
        %v4582 = vmul.f32 %v4571, %v4578
        %v4583 = vld [vmem:[%s20] sm:$0xf]
        %4585 = vset.pattern.permute.xlu0 0
        %4586 = vperm.xlu0 %4585, %v4583
        %v4587 = vpop.permute.xlu0 %4586
        %v4589 = vadd.f32 %v4580, %v4587
        %v4590 = vadd.f32 %v4581, %v4587
        %v4591 = vadd.f32 %v4582, %v4587
        %v4592 = vmax.f32 %v4589, 0.0
        %v4593 = vmax.f32 %v4590, 0.0
        %v4594 = vmax.f32 %v4591, 0.0
        %4596 = vrot.lane.b32.xlu0 %v4592, 109
        %v4597 = vpop.permute.xlu0 %4596
        %vm4599 = vcmask 125952
        %4600 = vst.msk [vmem:[%s743] sm:$0xf] %vm4599, %v4597
        %4601 = vrot.lane.b32.xlu0 %v4592, 107
        %v4602 = vpop.permute.xlu0 %4601
        %vm4604 = vcmask 257152
        %4605 = vst.msk [vmem:[%s743] sm:$0xf] %vm4604, %v4602
        %4606 = vrot.lane.b32.xlu0 %v4592, 105
        %v4607 = vpop.permute.xlu0 %4606
        %vm4609 = vcmask 388352
        %4610 = vst.msk [vmem:[%s743] sm:$0xf] %vm4609, %v4607
        %4611 = vrot.lane.b32.xlu0 %v4592, 103
        %v4612 = vpop.permute.xlu0 %4611
        %vm4614 = vcmask 519552
        %4615 = vst.msk [vmem:[%s743] sm:$0xf] %vm4614, %v4612
        %4616 = vrot.lane.b32.xlu0 %v4592, 101
        %v4617 = vpop.permute.xlu0 %4616
        %vm4619 = vcmask 650752
        %4620 = vst.msk [vmem:[%s743] sm:$0xf] %vm4619, %v4617
        %4621 = vrot.lane.b32.xlu0 %v4592, 99
        %v4622 = vpop.permute.xlu0 %4621
        %vm4624 = vcmask 781952
        %4625 = vst.msk [vmem:[%s743] sm:$0xf] %vm4624, %v4622
        %v4627 = vcombine.low %v4592, %v4593
        %4628 = vrot.lane.b32.xlu0 %v4627, 97
        %v4629 = vpop.permute.xlu0 %4628
        %v4630 = vrot.slane %v4629, 4
        %vm4631 = vcmask 793600
        %v4632 = vsel %vm4631, %v4629, %v4630
        %vm4634 = vcmask 913152
        %4635 = vst.msk [vmem:[%s743] sm:$0xf] %vm4634, %v4632
        %4636 = vrot.lane.b32.xlu0 %v4593, 95
        %v4637 = vpop.permute.xlu0 %4636
        %vm4639 = vcmask 1044352
        %4640 = vst.msk [vmem:[%s743] sm:$0xf] %vm4639, %v4637
        %4641 = vrot.lane.b32.xlu0 %v4593, 93
        %v4642 = vpop.permute.xlu0 %4641
        %4644 = vst.msk [vmem:[%s743 + $0x4] sm:$0xf] %vm4599, %v4642
        %4645 = vrot.lane.b32.xlu0 %v4593, 91
        %v4646 = vpop.permute.xlu0 %4645
        %4648 = vst.msk [vmem:[%s743 + $0x4] sm:$0xf] %vm4604, %v4646
        %4649 = vrot.lane.b32.xlu0 %v4593, 89
        %v4650 = vpop.permute.xlu0 %4649
        %4652 = vst.msk [vmem:[%s743 + $0x4] sm:$0xf] %vm4609, %v4650
        %4653 = vrot.lane.b32.xlu0 %v4593, 87
        %v4654 = vpop.permute.xlu0 %4653
        %4656 = vst.msk [vmem:[%s743 + $0x4] sm:$0xf] %vm4614, %v4654
        %4657 = vrot.lane.b32.xlu0 %v4593, 85
        %v4658 = vpop.permute.xlu0 %4657
        %4660 = vst.msk [vmem:[%s743 + $0x4] sm:$0xf] %vm4619, %v4658
        %v4662 = vcombine.low %v4593, %v4594
        %4663 = vrot.lane.b32.xlu0 %v4662, 83
        %v4664 = vpop.permute.xlu0 %4663
        %v4665 = vrot.slane %v4664, 4
        %vm4666 = vcmask 678912
        %v4667 = vsel %vm4666, %v4664, %v4665
        %4669 = vst.msk [vmem:[%s743 + $0x4] sm:$0xf] %vm4624, %v4667
        %4670 = vrot.lane.b32.xlu0 %v4594, 81
        %v4671 = vpop.permute.xlu0 %4670
        %4673 = vst.msk [vmem:[%s743 + $0x4] sm:$0xf] %vm4634, %v4671
        %4674 = vrot.lane.b32.xlu0 %v4594, 79
        %v4675 = vpop.permute.xlu0 %4674
        %4677 = vst.msk [vmem:[%s743 + $0x4] sm:$0xf] %vm4639, %v4675
        %s4678 = sand.u32 %s560, 1
        %s4679 = scalar_lea.sflag [#allocation9], %s4678
        %s4680 = sand.u32 %s560, 1
        %s4681 = smul.addr %s4680, 8
        %s4682 = scalar_lea.vmem [#allocation8], %s4681
        // Predicated region
        $region117: #{tpu_custom_call.1} parent=115 // pred_check
          %p4683 = pneg %p570
        $region118: #{tpu_custom_call.1} parent=115 // pred_check_branch
          %4685 = sbr.rel (%p4683) target = $region120
        $region119: #{tpu_custom_call.1} parent=115 // pred_region
          %s4687 = ssub.s32 128, 128
          %4688 = vsyncadd %s4679, %s4687
          %s4689 = smul.addr %s38, 2
          %s4690 = smul.addr %s4689, 64
          %s4691 = scalar_lea.hbm %s24, %s4690
          %s4693 = sshll.u32 %s4682, 4
          %s4694 = int_to_ptr.vmem [resolvable:$true] %s4693
          %4696 = dma.vmem_to_hbm [thread:$0]  %s4694, 128, %s4691, %s4679
        $region120: #{tpu_custom_call.1} parent=115 // pred_fallthru
          _
      $region116: #{tpu_custom_call.1} parent=5 // pred_fallthru
        _
      %p4697 = scmp.le.s32.totalorder 2, %s33
      // Predicated region
      $region121: #{tpu_custom_call.1} parent=5 // pred_check
        %p4698 = pneg %p4697
      $region122: #{tpu_custom_call.1} parent=5 // pred_check_branch
        %4700 = sbr.rel (%p4698) target = $region124
      $region123: #{tpu_custom_call.1} parent=5 // pred_region
        %s4701 = ssub.s32 %s33, 2
        // Predicated region
        $region125: #{tpu_custom_call.1} parent=123 // pred_check
          %p4702 = pneg %p576
        $region126: #{tpu_custom_call.1} parent=123 // pred_check_branch
          %4704 = sbr.rel (%p4702) target = $region128
        $region127: #{tpu_custom_call.1} parent=123 // pred_region
          %s4705 = sand.u32 %s561, 1
          %s4706 = scalar_lea.sflag [#allocation9], %s4705
          %s4707 = sand.u32 %s561, 1
          %s4708 = smul.addr %s4707, 8
          %s4709 = scalar_lea.vmem [#allocation8], %s4708
          %4710 = dma.done %s4706, 128
        $region128: #{tpu_custom_call.1} parent=123 // pred_fallthru
          _
      $region124: #{tpu_custom_call.1} parent=5 // pred_fallthru
        _
    $region6: #{tpu_custom_call.1} parent=1 // loop_footer
      %s37 = sadd.s32 1, %s33
    $region7: #{tpu_custom_call.1} parent=1 // loop_footer_branch
      %32 = sbr.rel target = $region3
    $region8: #{tpu_custom_call.1} parent=1 // loop_exit
      _
    %4711 = vsyncpa [#allocation9], 1
    %s4712 = scalar_lea.sflag [#allocation9], 1
    %4713 = vsyncpa %s4712, 1

</llo_original>
